<compile_context>
chip_gen: v6e
topology: v6e:2x2x1
jax: 0.10.0
libtpu: 0.0.40
codegen_flags: <defaults>
</compile_context>

<pallas_src>
import math

import numpy as np
import jax
import jax.numpy as jnp
from jax import lax
from jax.experimental import pallas as pl
from jax.experimental.pallas import tpu as pltpu

# ----------------- synthetic CMDMAE hyper-params (small) -----------------
B           = 2        # batch
SEQ_V       = 8        # seq_length_v
SEQ_A       = 8        # seq_length_a
C_V         = 24       # raw visual channels (input of proj_v)
C_A         = 20       # raw audio channels  (input of proj_a)
NUM_IDX_V   = 2
EMB_DIM_V   = 16
NUM_IDX_A   = 2
EMB_DIM_A   = 16
D           = NUM_IDX_V * EMB_DIM_V      # == NUM_IDX_A * EMB_DIM_A == 32
NUM_HEADS   = 4
HEAD_DIM    = D // NUM_HEADS
MLP_RATIO   = 4
NUM_CLASSES = 7
LN_EPS      = 1e-5

T  = SEQ_V + SEQ_A          # tokens per example
R  = B * T                  # total token rows in the fused kernel
DP = 128                    # lane-padded feature width
HP = MLP_RATIO * D          # MLP hidden (already lane-dense)

assert D == NUM_IDX_A * EMB_DIM_A
assert HP == 128, "MLP hidden assumed lane-dense (128)"
assert R % 8 == 0 and (B * SEQ_V) % 8 == 0


# ======================= fused Pallas kernel =======================

def _fused_classifier_kernel(
    xv_ref, xa_ref,
    wpv_ref, bpv_ref, wpa_ref, bpa_ref,
    posmod_v_ref, posmod_a_ref,
    ln1_g_ref, ln1_b_ref,
    wqkv_ref, bqkv_ref,
    wo_ref, bo_ref,
    ln2_g_ref, ln2_b_ref,
    wfc1_ref, bfc1_ref,
    wfc2_ref, bfc2_ref,
    lnf_g_ref, lnf_b_ref,
    attn_bias_ref, pool_v_ref, pool_a_ref,
    whead_a_ref, whead_v_ref, bhead_ref,
    out_ref,
):
    f32, bf16 = jnp.float32, jnp.bfloat16

    # Lane index / mask of the real (un-padded) feature columns.
    col = lax.broadcasted_iota(jnp.int32, (1, DP), 1)
    feat_mask = (col < D).astype(f32)                      # (1, DP)

    def layernorm(x, g, b):
        # LayerNorm over the real D features only; padded lanes stay zero.
        xm = x * feat_mask
        mu = jnp.sum(xm, axis=-1, keepdims=True) * (1.0 / D)
        xc = (x - mu) * feat_mask
        var = jnp.sum(xc * xc, axis=-1, keepdims=True) * (1.0 / D)
        inv = lax.rsqrt(var + LN_EPS)
        return xc * inv * g + b

    def linear(x, w_ref, b_ref):
        # bf16 MXU operands, f32 accumulation, f32 bias.
        y = jnp.dot(x.astype(bf16), w_ref[...], preferred_element_type=f32)
        return y + b_ref[...]

    # ---- modality projections + (positional + modality) embeddings --------
    hv = linear(xv_ref[...], wpv_ref, bpv_ref) + posmod_v_ref[...]   # (B*SEQ_V, DP)
    ha = linear(xa_ref[...], wpa_ref, bpa_ref) + posmod_a_ref[...]   # (B*SEQ_A, DP)
    x = jnp.concatenate([hv, ha], axis=0)                            # (R, DP)

    # ---- shared pre-norm transformer block --------------------------------
    h1 = layernorm(x, ln1_g_ref[...], ln1_b_ref[...])
    qkv = linear(h1, wqkv_ref, bqkv_ref)                             # (R, 3*DP)
    q32 = qkv[:, 0 * DP:1 * DP]
    k32 = qkv[:, 1 * DP:2 * DP]
    v32 = qkv[:, 2 * DP:3 * DP]
    q_bf = q32.astype(bf16)

    scale = 1.0 / math.sqrt(HEAD_DIM)
    bias = attn_bias_ref[...]                                        # (R, R): 0 / -1e30
    attn = jnp.zeros((R, DP), dtype=f32)
    for h in range(NUM_HEADS):                                       # static unroll (4)
        hmask = jnp.logical_and(col >= h * HEAD_DIM,
                                col < (h + 1) * HEAD_DIM).astype(f32)  # (1, DP)
        kh = (k32 * hmask).astype(bf16)
        vh = (v32 * hmask).astype(bf16)
        # scores: full 128-lane contraction (masked to this head's features)
        s = lax.dot_general(q_bf, kh, (((1,), (1,)), ((), ())),
                            preferred_element_type=f32) * scale + bias  # (R, R)
        m = jnp.max(s, axis=-1, keepdims=True)
        p = jnp.exp(s - m)
        p = p * pl.reciprocal(jnp.sum(p, axis=-1, keepdims=True), approx=True)
        # heads write disjoint feature columns -> plain accumulation is exact
        attn = attn + jnp.dot(p.astype(bf16), vh, preferred_element_type=f32)

    x = x + linear(attn, wo_ref, bo_ref)                             # residual 1

    h2 = layernorm(x, ln2_g_ref[...], ln2_b_ref[...])
    h2 = jax.nn.gelu(linear(h2, wfc1_ref, bfc1_ref), approximate=True)  # (R, HP)
    x = x + linear(h2, wfc2_ref, bfc2_ref)                           # residual 2

    # ---- final LayerNorm + per-modality mean pooling (as tiny matmuls) ----
    z = layernorm(x, lnf_g_ref[...], lnf_b_ref[...]).astype(bf16)    # (R, DP)
    cls_v = jnp.dot(pool_v_ref[...], z, preferred_element_type=f32)  # (B, DP)
    cls_a = jnp.dot(pool_a_ref[...], z, preferred_element_type=f32)  # (B, DP)

    # ---- classification head: cat(cls_a, cls_v) @ W_head + b --------------
    logits = (jnp.dot(cls_a.astype(bf16), whead_a_ref[...], preferred_element_type=f32)
              + jnp.dot(cls_v.astype(bf16), whead_v_ref[...], preferred_element_type=f32)
              + bhead_ref[...])                                      # (B, DP), cols >=7 junk-free (zero weights)
    out_ref[...] = logits


_VMEM_SPEC = pl.BlockSpec(memory_space=pltpu.MemorySpace.VMEM)


def _fused_forward(packed, xv_pad, xa_pad):
    args = (
        xv_pad, xa_pad,
        packed["wpv"], packed["bpv"], packed["wpa"], packed["bpa"],
        packed["posmod_v"], packed["posmod_a"],
        packed["ln1_g"], packed["ln1_b"],
        packed["wqkv"], packed["bqkv"],
        packed["wo"], packed["bo"],
        packed["ln2_g"], packed["ln2_b"],
        packed["wfc1"], packed["bfc1"],
        packed["wfc2"], packed["bfc2"],
        packed["lnf_g"], packed["lnf_b"],
        packed["attn_bias"], packed["pool_v"], packed["pool_a"],
        packed["whead_a"], packed["whead_v"], packed["bhead"],
    )
    return pl.pallas_call(
        _fused_classifier_kernel,
        out_shape=jax.ShapeDtypeStruct((B, DP), jnp.float32),
        in_specs=[_VMEM_SPEC] * len(args),
        out_specs=_VMEM_SPEC,
    )(*args)


# ======================= parameters & packing =======================

def init_params(key):
    def dense(k, fan_in, fan_out):
        k1, k2 = jax.random.split(k)
        w = jax.random.normal(k1, (fan_in, fan_out), jnp.float32) / math.sqrt(fan_in)
        b = 0.02 * jax.random.normal(k2, (fan_out,), jnp.float32)
        return w, b

    ks = jax.random.split(key, 12)
    p = {}
    p["proj_v_w"], p["proj_v_b"] = dense(ks[0], C_V, D)
    p["proj_a_w"], p["proj_a_b"] = dense(ks[1], C_A, D)
    p["pos_v"] = 0.02 * jax.random.normal(ks[2], (SEQ_V, 1, D), jnp.float32)
    p["pos_a"] = 0.02 * jax.random.normal(ks[3], (SEQ_A, 1, D), jnp.float32)
    p["mod_v"] = 0.02 * jax.random.normal(ks[4], (1, 1, D), jnp.float32)
    p["mod_a"] = 0.02 * jax.random.normal(ks[5], (1, 1, D), jnp.float32)
    # one pre-norm transformer block
    p["ln1_g"], p["ln1_b"] = jnp.ones((D,), jnp.float32), jnp.zeros((D,), jnp.float32)
    p["qkv_w"], p["qkv_b"] = dense(ks[6], D, 3 * D)
    p["attn_proj_w"], p["attn_proj_b"] = dense(ks[7], D, D)
    p["ln2_g"], p["ln2_b"] = jnp.ones((D,), jnp.float32), jnp.zeros((D,), jnp.float32)
    p["fc1_w"], p["fc1_b"] = dense(ks[8], D, HP)
    p["fc2_w"], p["fc2_b"] = dense(ks[9], HP, D)
    # final layer_norm
    p["lnf_g"], p["lnf_b"] = jnp.ones((D,), jnp.float32), jnp.zeros((D,), jnp.float32)
    # classification head (input = cat(cls_a, cls_v))
    head_in = NUM_IDX_A * EMB_DIM_A + NUM_IDX_V * EMB_DIM_V
    p["head_w"], p["head_b"] = dense(ks[10], head_in, NUM_CLASSES)
    return p


def pack_params(p):
    """Pad weights to lane-dense 128-wide layouts, cast MXU operands to bf16,
    and precompute the structural constants (batch mask, pooling matrices)."""
    f32, bf16 = jnp.float32, jnp.bfloat16

    def padw(w, rows=DP, cols=DP):
        w = jnp.asarray(w, f32)
        return jnp.pad(w, ((0, rows - w.shape[0]), (0, cols - w.shape[1]))).astype(bf16)

    def padb(b, cols=DP):
        b = jnp.asarray(b, f32).reshape(1, -1)
        return jnp.pad(b, ((0, 0), (0, cols - b.shape[1])))

    q = {}
    q["wpv"], q["bpv"] = padw(p["proj_v_w"]), padb(p["proj_v_b"])
    q["wpa"], q["bpa"] = padw(p["proj_a_w"]), padb(p["proj_a_b"])

    # fold positional + modality embeddings; tile over batch (row = b*SEQ + t)
    pm_v = p["pos_v"][:, 0, :] + p["mod_v"][0, 0, :]
    pm_a = p["pos_a"][:, 0, :] + p["mod_a"][0, 0, :]
    q["posmod_v"] = jnp.tile(jnp.pad(pm_v, ((0, 0), (0, DP - D))), (B, 1))
    q["posmod_a"] = jnp.tile(jnp.pad(pm_a, ((0, 0), (0, DP - D))), (B, 1))

    q["ln1_g"], q["ln1_b"] = padb(p["ln1_g"]), padb(p["ln1_b"])

    # QKV weight: each of the q/k/v blocks gets its own 128-lane section
    wqkv = jnp.zeros((DP, 3 * DP), f32)
    bqkv = jnp.zeros((1, 3 * DP), f32)
    for s in range(3):
        wqkv = wqkv.at[:D, s * DP:s * DP + D].set(p["qkv_w"][:, s * D:(s + 1) * D])
        bqkv = bqkv.at[0, s * DP:s * DP + D].set(p["qkv_b"][s * D:(s + 1) * D])
    q["wqkv"], q["bqkv"] = wqkv.astype(bf16), bqkv

    q["wo"], q["bo"] = padw(p["attn_proj_w"]), padb(p["attn_proj_b"])
    q["ln2_g"], q["ln2_b"] = padb(p["ln2_g"]), padb(p["ln2_b"])
    q["wfc1"], q["bfc1"] = padw(p["fc1_w"], DP, HP), padb(p["fc1_b"], HP)
    q["wfc2"], q["bfc2"] = padw(p["fc2_w"], HP, DP), padb(p["fc2_b"])
    q["lnf_g"], q["lnf_b"] = padb(p["lnf_g"]), padb(p["lnf_b"])

    d_a = NUM_IDX_A * EMB_DIM_A
    q["whead_a"] = padw(p["head_w"][:d_a])        # audio half of the head
    q["whead_v"] = padw(p["head_w"][d_a:])        # visual half of the head
    q["bhead"] = padb(p["head_b"])

    # structural constants (token layout: visual b-major, then audio b-major)
    batch_id = np.concatenate([np.repeat(np.arange(B), SEQ_V),
                               np.repeat(np.arange(B), SEQ_A)])
    attn_bias = np.where(batch_id[:, None] == batch_id[None, :], 0.0, -1e30)
    q["attn_bias"] = jnp.asarray(attn_bias, f32)

    pool_v = np.zeros((B, R), np.float32)
    pool_a = np.zeros((B, R), np.float32)
    for b in range(B):
        pool_v[b, b * SEQ_V:(b + 1) * SEQ_V] = 1.0 / SEQ_V
        pool_a[b, B * SEQ_V + b * SEQ_A:B * SEQ_V + (b + 1) * SEQ_A] = 1.0 / SEQ_A
    q["pool_v"] = jnp.asarray(pool_v, bf16)
    q["pool_a"] = jnp.asarray(pool_a, bf16)
    return q


# ======================= forward wrapper =======================

def classifier_forward(packed, x_v, x_a):
    # x_v: (B, SEQ_V, C_V), x_a: (B, SEQ_A, C_A)
    # zero-pad channels to 128 lanes and flatten tokens to rows (b-major)
    xv = jnp.pad(x_v, ((0, 0), (0, 0), (0, DP - C_V))).reshape(B * SEQ_V, DP)
    xa = jnp.pad(x_a, ((0, 0), (0, 0), (0, DP - C_A))).reshape(B * SEQ_A, DP)
    logits_pad = _fused_forward(packed, xv, xa)          # (B, 128)
    return logits_pad[:, :NUM_CLASSES]                   # padded head cols are zero


if __name__ == "__main__":
    key = jax.random.PRNGKey(0)
    kp, kv, ka = jax.random.split(key, 3)
    params = init_params(kp)
    packed = pack_params(params)

    x_v = jax.random.normal(kv, (B, SEQ_V, C_V), jnp.float32)
    x_a = jax.random.normal(ka, (B, SEQ_A, C_A), jnp.float32)

    logits = jax.jit(classifier_forward)(packed, x_v, x_a)
    logits = jax.block_until_ready(logits)
    assert logits.shape == (B, NUM_CLASSES)
    assert bool(jnp.all(jnp.isfinite(logits)))
    print("KERNEL_OK")
</pallas_src>

<mosaic_0001>
module attributes {stable_mosaic.version = 11 : i64} {
  func.func @_fused_classifier_kernel(%arg0: memref<16x128xf32, #tpu.memory_space<vmem>>, %arg1: memref<16x128xf32, #tpu.memory_space<vmem>>, %arg2: memref<128x128xbf16, #tpu.memory_space<vmem>>, %arg3: memref<1x128xf32, #tpu.memory_space<vmem>>, %arg4: memref<128x128xbf16, #tpu.memory_space<vmem>>, %arg5: memref<1x128xf32, #tpu.memory_space<vmem>>, %arg6: memref<16x128xf32, #tpu.memory_space<vmem>>, %arg7: memref<16x128xf32, #tpu.memory_space<vmem>>, %arg8: memref<1x128xf32, #tpu.memory_space<vmem>>, %arg9: memref<1x128xf32, #tpu.memory_space<vmem>>, %arg10: memref<128x384xbf16, #tpu.memory_space<vmem>>, %arg11: memref<1x384xf32, #tpu.memory_space<vmem>>, %arg12: memref<128x128xbf16, #tpu.memory_space<vmem>>, %arg13: memref<1x128xf32, #tpu.memory_space<vmem>>, %arg14: memref<1x128xf32, #tpu.memory_space<vmem>>, %arg15: memref<1x128xf32, #tpu.memory_space<vmem>>, %arg16: memref<128x128xbf16, #tpu.memory_space<vmem>>, %arg17: memref<1x128xf32, #tpu.memory_space<vmem>>, %arg18: memref<128x128xbf16, #tpu.memory_space<vmem>>, %arg19: memref<1x128xf32, #tpu.memory_space<vmem>>, %arg20: memref<1x128xf32, #tpu.memory_space<vmem>>, %arg21: memref<1x128xf32, #tpu.memory_space<vmem>>, %arg22: memref<32x32xf32, #tpu.memory_space<vmem>>, %arg23: memref<2x32xbf16, #tpu.memory_space<vmem>>, %arg24: memref<2x32xbf16, #tpu.memory_space<vmem>>, %arg25: memref<128x128xbf16, #tpu.memory_space<vmem>>, %arg26: memref<128x128xbf16, #tpu.memory_space<vmem>>, %arg27: memref<1x128xf32, #tpu.memory_space<vmem>>, %arg28: memref<2x128xf32, #tpu.memory_space<vmem>>) attributes {dimension_semantics = [], scalar_prefetch = 0 : i64, scratch_operands = 0 : i64, tpu.core_type = #tpu.core_type<tc>} {
    %0 = tpu.iota {dimensions = array<i32: 1>} : vector<1x128xi32>
    %c32_i32 = arith.constant 32 : i32
    %1 = vector.broadcast %c32_i32 : i32 to vector<1x128xi32>
    %2 = arith.cmpi slt, %0, %1 : vector<1x128xi32>
    %3 = arith.extui %2 : vector<1x128xi1> to vector<1x128xi32>
    %4 = arith.sitofp %3 : vector<1x128xi32> to vector<1x128xf32>
    %c0 = arith.constant 0 : index
    %c0_0 = arith.constant 0 : index
    %5 = vector.load %arg0[%c0, %c0_0] : memref<16x128xf32, #tpu.memory_space<vmem>>, vector<16x128xf32>
    %6 = arith.truncf %5 : vector<16x128xf32> to vector<16x128xbf16>
    %c0_1 = arith.constant 0 : index
    %c0_2 = arith.constant 0 : index
    %7 = vector.load %arg2[%c0_1, %c0_2] : memref<128x128xbf16, #tpu.memory_space<vmem>>, vector<128x128xbf16>
    %cst = arith.constant dense<0.000000e+00> : vector<16x128xf32>
    %8 = tpu.matmul %6, %7, %cst {dimension_numbers = #tpu.dot_dimension_numbers<[1], [0], [0], [1], [0, 0, 1, 1], [], []>} : vector<16x128xbf16>, vector<128x128xbf16>, vector<16x128xf32> -> vector<16x128xf32>
    %c0_3 = arith.constant 0 : index
    %c0_4 = arith.constant 0 : index
    %9 = vector.load %arg3[%c0_3, %c0_4] : memref<1x128xf32, #tpu.memory_space<vmem>>, vector<1x128xf32>
    %10 = vector.broadcast %9 : vector<1x128xf32> to vector<16x128xf32>
    %11 = arith.addf %8, %10 : vector<16x128xf32>
    %c0_5 = arith.constant 0 : index
    %c0_6 = arith.constant 0 : index
    %12 = vector.load %arg6[%c0_5, %c0_6] : memref<16x128xf32, #tpu.memory_space<vmem>>, vector<16x128xf32>
    %13 = arith.addf %11, %12 : vector<16x128xf32>
    %c0_7 = arith.constant 0 : index
    %c0_8 = arith.constant 0 : index
    %14 = vector.load %arg1[%c0_7, %c0_8] : memref<16x128xf32, #tpu.memory_space<vmem>>, vector<16x128xf32>
    %15 = arith.truncf %14 : vector<16x128xf32> to vector<16x128xbf16>
    %c0_9 = arith.constant 0 : index
    %c0_10 = arith.constant 0 : index
    %16 = vector.load %arg4[%c0_9, %c0_10] : memref<128x128xbf16, #tpu.memory_space<vmem>>, vector<128x128xbf16>
    %cst_11 = arith.constant dense<0.000000e+00> : vector<16x128xf32>
    %17 = tpu.matmul %15, %16, %cst_11 {dimension_numbers = #tpu.dot_dimension_numbers<[1], [0], [0], [1], [0, 0, 1, 1], [], []>} : vector<16x128xbf16>, vector<128x128xbf16>, vector<16x128xf32> -> vector<16x128xf32>
    %c0_12 = arith.constant 0 : index
    %c0_13 = arith.constant 0 : index
    %18 = vector.load %arg5[%c0_12, %c0_13] : memref<1x128xf32, #tpu.memory_space<vmem>>, vector<1x128xf32>
    %19 = vector.broadcast %18 : vector<1x128xf32> to vector<16x128xf32>
    %20 = arith.addf %17, %19 : vector<16x128xf32>
    %c0_14 = arith.constant 0 : index
    %c0_15 = arith.constant 0 : index
    %21 = vector.load %arg7[%c0_14, %c0_15] : memref<16x128xf32, #tpu.memory_space<vmem>>, vector<16x128xf32>
    %22 = arith.addf %20, %21 : vector<16x128xf32>
    %23 = tpu.concatenate %13, %22 in 0 : vector<16x128xf32>, vector<16x128xf32> -> vector<32x128xf32>
    %c0_16 = arith.constant 0 : index
    %c0_17 = arith.constant 0 : index
    %24 = vector.load %arg8[%c0_16, %c0_17] : memref<1x128xf32, #tpu.memory_space<vmem>>, vector<1x128xf32>
    %c0_18 = arith.constant 0 : index
    %c0_19 = arith.constant 0 : index
    %25 = vector.load %arg9[%c0_18, %c0_19] : memref<1x128xf32, #tpu.memory_space<vmem>>, vector<1x128xf32>
    %26 = vector.broadcast %4 : vector<1x128xf32> to vector<32x128xf32>
    %27 = arith.mulf %23, %26 : vector<32x128xf32>
    %cst_20 = arith.constant dense<0.000000e+00> : vector<32xf32>
    %28 = vector.multi_reduction <add>, %27, %cst_20 [1] : vector<32x128xf32> to vector<32xf32>
    %29 = vector.shape_cast %28 : vector<32xf32> to vector<32x1xf32>
    %cst_21 = arith.constant 3.125000e-02 : f32
    %30 = vector.broadcast %cst_21 : f32 to vector<32x1xf32>
    %31 = arith.mulf %29, %30 : vector<32x1xf32>
    %32 = vector.broadcast %31 : vector<32x1xf32> to vector<32x128xf32>
    %33 = arith.subf %23, %32 : vector<32x128xf32>
    %34 = vector.broadcast %4 : vector<1x128xf32> to vector<32x128xf32>
    %35 = arith.mulf %33, %34 : vector<32x128xf32>
    %36 = arith.mulf %35, %35 : vector<32x128xf32>
    %cst_22 = arith.constant dense<0.000000e+00> : vector<32xf32>
    %37 = vector.multi_reduction <add>, %36, %cst_22 [1] : vector<32x128xf32> to vector<32xf32>
    %38 = vector.shape_cast %37 : vector<32xf32> to vector<32x1xf32>
    %cst_23 = arith.constant 3.125000e-02 : f32
    %39 = vector.broadcast %cst_23 : f32 to vector<32x1xf32>
    %40 = arith.mulf %38, %39 : vector<32x1xf32>
    %cst_24 = arith.constant 9.99999974E-6 : f32
    %41 = vector.broadcast %cst_24 : f32 to vector<32x1xf32>
    %42 = arith.addf %40, %41 : vector<32x1xf32>
    %43 = math.rsqrt %42 : vector<32x1xf32>
    %44 = vector.broadcast %43 : vector<32x1xf32> to vector<32x128xf32>
    %45 = arith.mulf %35, %44 : vector<32x128xf32>
    %46 = vector.broadcast %24 : vector<1x128xf32> to vector<32x128xf32>
    %47 = arith.mulf %45, %46 : vector<32x128xf32>
    %48 = vector.broadcast %25 : vector<1x128xf32> to vector<32x128xf32>
    %49 = arith.addf %47, %48 : vector<32x128xf32>
    %50 = arith.truncf %49 : vector<32x128xf32> to vector<32x128xbf16>
    %c0_25 = arith.constant 0 : index
    %c0_26 = arith.constant 0 : index
    %51 = vector.load %arg10[%c0_25, %c0_26] : memref<128x384xbf16, #tpu.memory_space<vmem>>, vector<128x384xbf16>
    %cst_27 = arith.constant dense<0.000000e+00> : vector<32x384xf32>
    %52 = tpu.matmul %50, %51, %cst_27 {dimension_numbers = #tpu.dot_dimension_numbers<[1], [0], [0], [1], [0, 0, 1, 1], [], []>} : vector<32x128xbf16>, vector<128x384xbf16>, vector<32x384xf32> -> vector<32x384xf32>
    %c0_28 = arith.constant 0 : index
    %c0_29 = arith.constant 0 : index
    %53 = vector.load %arg11[%c0_28, %c0_29] : memref<1x384xf32, #tpu.memory_space<vmem>>, vector<1x384xf32>
    %54 = vector.broadcast %53 : vector<1x384xf32> to vector<32x384xf32>
    %55 = arith.addf %52, %54 : vector<32x384xf32>
    %56 = vector.extract_strided_slice %55 {offsets = [0, 0], sizes = [32, 128], strides = [1, 1]} : vector<32x384xf32> to vector<32x128xf32>
    %57 = vector.extract_strided_slice %55 {offsets = [0, 128], sizes = [32, 128], strides = [1, 1]} : vector<32x384xf32> to vector<32x128xf32>
    %58 = vector.extract_strided_slice %55 {offsets = [0, 256], sizes = [32, 128], strides = [1, 1]} : vector<32x384xf32> to vector<32x128xf32>
    %59 = arith.truncf %56 : vector<32x128xf32> to vector<32x128xbf16>
    %c0_30 = arith.constant 0 : index
    %c0_31 = arith.constant 0 : index
    %60 = vector.load %arg22[%c0_30, %c0_31] : memref<32x32xf32, #tpu.memory_space<vmem>>, vector<32x32xf32>
    %cst_32 = arith.constant 0.000000e+00 : f32
    %61 = vector.broadcast %cst_32 : f32 to vector<32x128xf32>
    %c0_i32 = arith.constant 0 : i32
    %62 = vector.broadcast %c0_i32 : i32 to vector<1x128xi32>
    %63 = arith.cmpi sge, %0, %62 : vector<1x128xi32>
    %c8_i32 = arith.constant 8 : i32
    %64 = vector.broadcast %c8_i32 : i32 to vector<1x128xi32>
    %65 = arith.cmpi slt, %0, %64 : vector<1x128xi32>
    %66 = arith.andi %63, %65 : vector<1x128xi1>
    %67 = arith.extui %66 : vector<1x128xi1> to vector<1x128xi32>
    %68 = arith.sitofp %67 : vector<1x128xi32> to vector<1x128xf32>
    %69 = vector.broadcast %68 : vector<1x128xf32> to vector<32x128xf32>
    %70 = arith.mulf %57, %69 : vector<32x128xf32>
    %71 = arith.truncf %70 : vector<32x128xf32> to vector<32x128xbf16>
    %72 = vector.broadcast %68 : vector<1x128xf32> to vector<32x128xf32>
    %73 = arith.mulf %58, %72 : vector<32x128xf32>
    %74 = arith.truncf %73 : vector<32x128xf32> to vector<32x128xbf16>
    %cst_33 = arith.constant dense<0.000000e+00> : vector<32x32xf32>
    %75 = tpu.matmul %59, %71, %cst_33 {dimension_numbers = #tpu.dot_dimension_numbers<[1], [1], [0], [0], [0, 0, 1, 0], [], []>} : vector<32x128xbf16>, vector<32x128xbf16>, vector<32x32xf32> -> vector<32x32xf32>
    %cst_34 = arith.constant 0.353553385 : f32
    %76 = vector.broadcast %cst_34 : f32 to vector<32x32xf32>
    %77 = arith.mulf %75, %76 : vector<32x32xf32>
    %78 = arith.addf %77, %60 : vector<32x32xf32>
    %cst_35 = arith.constant dense<0xFF800000> : vector<32xf32>
    %79 = vector.multi_reduction <maximumf>, %78, %cst_35 [1] : vector<32x32xf32> to vector<32xf32>
    %80 = vector.shape_cast %79 : vector<32xf32> to vector<32x1xf32>
    %81 = vector.broadcast %80 : vector<32x1xf32> to vector<32x32xf32>
    %82 = arith.subf %78, %81 : vector<32x32xf32>
    %83 = math.exp %82 : vector<32x32xf32>
    %cst_36 = arith.constant dense<0.000000e+00> : vector<32xf32>
    %84 = vector.multi_reduction <add>, %83, %cst_36 [1] : vector<32x32xf32> to vector<32xf32>
    %85 = vector.shape_cast %84 : vector<32xf32> to vector<32x1xf32>
    %86 = tpu.reciprocal %85 {approx = true} : vector<32x1xf32> -> vector<32x1xf32>
    %87 = vector.broadcast %86 : vector<32x1xf32> to vector<32x32xf32>
    %88 = arith.mulf %83, %87 : vector<32x32xf32>
    %89 = arith.truncf %88 : vector<32x32xf32> to vector<32x32xbf16>
    %cst_37 = arith.constant dense<0.000000e+00> : vector<32x128xf32>
    %90 = tpu.matmul %89, %74, %cst_37 {dimension_numbers = #tpu.dot_dimension_numbers<[1], [0], [0], [1], [0, 0, 1, 1], [], []>} : vector<32x32xbf16>, vector<32x128xbf16>, vector<32x128xf32> -> vector<32x128xf32>
    %91 = arith.addf %61, %90 : vector<32x128xf32>
    %c8_i32_38 = arith.constant 8 : i32
    %92 = vector.broadcast %c8_i32_38 : i32 to vector<1x128xi32>
    %93 = arith.cmpi sge, %0, %92 : vector<1x128xi32>
    %c16_i32 = arith.constant 16 : i32
    %94 = vector.broadcast %c16_i32 : i32 to vector<1x128xi32>
    %95 = arith.cmpi slt, %0, %94 : vector<1x128xi32>
    %96 = arith.andi %93, %95 : vector<1x128xi1>
    %97 = arith.extui %96 : vector<1x128xi1> to vector<1x128xi32>
    %98 = arith.sitofp %97 : vector<1x128xi32> to vector<1x128xf32>
    %99 = vector.broadcast %98 : vector<1x128xf32> to vector<32x128xf32>
    %100 = arith.mulf %57, %99 : vector<32x128xf32>
    %101 = arith.truncf %100 : vector<32x128xf32> to vector<32x128xbf16>
    %102 = vector.broadcast %98 : vector<1x128xf32> to vector<32x128xf32>
    %103 = arith.mulf %58, %102 : vector<32x128xf32>
    %104 = arith.truncf %103 : vector<32x128xf32> to vector<32x128xbf16>
    %cst_39 = arith.constant dense<0.000000e+00> : vector<32x32xf32>
    %105 = tpu.matmul %59, %101, %cst_39 {dimension_numbers = #tpu.dot_dimension_numbers<[1], [1], [0], [0], [0, 0, 1, 0], [], []>} : vector<32x128xbf16>, vector<32x128xbf16>, vector<32x32xf32> -> vector<32x32xf32>
    %cst_40 = arith.constant 0.353553385 : f32
    %106 = vector.broadcast %cst_40 : f32 to vector<32x32xf32>
    %107 = arith.mulf %105, %106 : vector<32x32xf32>
    %108 = arith.addf %107, %60 : vector<32x32xf32>
    %cst_41 = arith.constant dense<0xFF800000> : vector<32xf32>
    %109 = vector.multi_reduction <maximumf>, %108, %cst_41 [1] : vector<32x32xf32> to vector<32xf32>
    %110 = vector.shape_cast %109 : vector<32xf32> to vector<32x1xf32>
    %111 = vector.broadcast %110 : vector<32x1xf32> to vector<32x32xf32>
    %112 = arith.subf %108, %111 : vector<32x32xf32>
    %113 = math.exp %112 : vector<32x32xf32>
    %cst_42 = arith.constant dense<0.000000e+00> : vector<32xf32>
    %114 = vector.multi_reduction <add>, %113, %cst_42 [1] : vector<32x32xf32> to vector<32xf32>
    %115 = vector.shape_cast %114 : vector<32xf32> to vector<32x1xf32>
    %116 = tpu.reciprocal %115 {approx = true} : vector<32x1xf32> -> vector<32x1xf32>
    %117 = vector.broadcast %116 : vector<32x1xf32> to vector<32x32xf32>
    %118 = arith.mulf %113, %117 : vector<32x32xf32>
    %119 = arith.truncf %118 : vector<32x32xf32> to vector<32x32xbf16>
    %cst_43 = arith.constant dense<0.000000e+00> : vector<32x128xf32>
    %120 = tpu.matmul %119, %104, %cst_43 {dimension_numbers = #tpu.dot_dimension_numbers<[1], [0], [0], [1], [0, 0, 1, 1], [], []>} : vector<32x32xbf16>, vector<32x128xbf16>, vector<32x128xf32> -> vector<32x128xf32>
    %121 = arith.addf %91, %120 : vector<32x128xf32>
    %c16_i32_44 = arith.constant 16 : i32
    %122 = vector.broadcast %c16_i32_44 : i32 to vector<1x128xi32>
    %123 = arith.cmpi sge, %0, %122 : vector<1x128xi32>
    %c24_i32 = arith.constant 24 : i32
    %124 = vector.broadcast %c24_i32 : i32 to vector<1x128xi32>
    %125 = arith.cmpi slt, %0, %124 : vector<1x128xi32>
    %126 = arith.andi %123, %125 : vector<1x128xi1>
    %127 = arith.extui %126 : vector<1x128xi1> to vector<1x128xi32>
    %128 = arith.sitofp %127 : vector<1x128xi32> to vector<1x128xf32>
    %129 = vector.broadcast %128 : vector<1x128xf32> to vector<32x128xf32>
    %130 = arith.mulf %57, %129 : vector<32x128xf32>
    %131 = arith.truncf %130 : vector<32x128xf32> to vector<32x128xbf16>
    %132 = vector.broadcast %128 : vector<1x128xf32> to vector<32x128xf32>
    %133 = arith.mulf %58, %132 : vector<32x128xf32>
    %134 = arith.truncf %133 : vector<32x128xf32> to vector<32x128xbf16>
    %cst_45 = arith.constant dense<0.000000e+00> : vector<32x32xf32>
    %135 = tpu.matmul %59, %131, %cst_45 {dimension_numbers = #tpu.dot_dimension_numbers<[1], [1], [0], [0], [0, 0, 1, 0], [], []>} : vector<32x128xbf16>, vector<32x128xbf16>, vector<32x32xf32> -> vector<32x32xf32>
    %cst_46 = arith.constant 0.353553385 : f32
    %136 = vector.broadcast %cst_46 : f32 to vector<32x32xf32>
    %137 = arith.mulf %135, %136 : vector<32x32xf32>
    %138 = arith.addf %137, %60 : vector<32x32xf32>
    %cst_47 = arith.constant dense<0xFF800000> : vector<32xf32>
    %139 = vector.multi_reduction <maximumf>, %138, %cst_47 [1] : vector<32x32xf32> to vector<32xf32>
    %140 = vector.shape_cast %139 : vector<32xf32> to vector<32x1xf32>
    %141 = vector.broadcast %140 : vector<32x1xf32> to vector<32x32xf32>
    %142 = arith.subf %138, %141 : vector<32x32xf32>
    %143 = math.exp %142 : vector<32x32xf32>
    %cst_48 = arith.constant dense<0.000000e+00> : vector<32xf32>
    %144 = vector.multi_reduction <add>, %143, %cst_48 [1] : vector<32x32xf32> to vector<32xf32>
    %145 = vector.shape_cast %144 : vector<32xf32> to vector<32x1xf32>
    %146 = tpu.reciprocal %145 {approx = true} : vector<32x1xf32> -> vector<32x1xf32>
    %147 = vector.broadcast %146 : vector<32x1xf32> to vector<32x32xf32>
    %148 = arith.mulf %143, %147 : vector<32x32xf32>
    %149 = arith.truncf %148 : vector<32x32xf32> to vector<32x32xbf16>
    %cst_49 = arith.constant dense<0.000000e+00> : vector<32x128xf32>
    %150 = tpu.matmul %149, %134, %cst_49 {dimension_numbers = #tpu.dot_dimension_numbers<[1], [0], [0], [1], [0, 0, 1, 1], [], []>} : vector<32x32xbf16>, vector<32x128xbf16>, vector<32x128xf32> -> vector<32x128xf32>
    %151 = arith.addf %121, %150 : vector<32x128xf32>
    %c24_i32_50 = arith.constant 24 : i32
    %152 = vector.broadcast %c24_i32_50 : i32 to vector<1x128xi32>
    %153 = arith.cmpi sge, %0, %152 : vector<1x128xi32>
    %c32_i32_51 = arith.constant 32 : i32
    %154 = vector.broadcast %c32_i32_51 : i32 to vector<1x128xi32>
    %155 = arith.cmpi slt, %0, %154 : vector<1x128xi32>
    %156 = arith.andi %153, %155 : vector<1x128xi1>
    %157 = arith.extui %156 : vector<1x128xi1> to vector<1x128xi32>
    %158 = arith.sitofp %157 : vector<1x128xi32> to vector<1x128xf32>
    %159 = vector.broadcast %158 : vector<1x128xf32> to vector<32x128xf32>
    %160 = arith.mulf %57, %159 : vector<32x128xf32>
    %161 = arith.truncf %160 : vector<32x128xf32> to vector<32x128xbf16>
    %162 = vector.broadcast %158 : vector<1x128xf32> to vector<32x128xf32>
    %163 = arith.mulf %58, %162 : vector<32x128xf32>
    %164 = arith.truncf %163 : vector<32x128xf32> to vector<32x128xbf16>
    %cst_52 = arith.constant dense<0.000000e+00> : vector<32x32xf32>
    %165 = tpu.matmul %59, %161, %cst_52 {dimension_numbers = #tpu.dot_dimension_numbers<[1], [1], [0], [0], [0, 0, 1, 0], [], []>} : vector<32x128xbf16>, vector<32x128xbf16>, vector<32x32xf32> -> vector<32x32xf32>
    %cst_53 = arith.constant 0.353553385 : f32
    %166 = vector.broadcast %cst_53 : f32 to vector<32x32xf32>
    %167 = arith.mulf %165, %166 : vector<32x32xf32>
    %168 = arith.addf %167, %60 : vector<32x32xf32>
    %cst_54 = arith.constant dense<0xFF800000> : vector<32xf32>
    %169 = vector.multi_reduction <maximumf>, %168, %cst_54 [1] : vector<32x32xf32> to vector<32xf32>
    %170 = vector.shape_cast %169 : vector<32xf32> to vector<32x1xf32>
    %171 = vector.broadcast %170 : vector<32x1xf32> to vector<32x32xf32>
    %172 = arith.subf %168, %171 : vector<32x32xf32>
    %173 = math.exp %172 : vector<32x32xf32>
    %cst_55 = arith.constant dense<0.000000e+00> : vector<32xf32>
    %174 = vector.multi_reduction <add>, %173, %cst_55 [1] : vector<32x32xf32> to vector<32xf32>
    %175 = vector.shape_cast %174 : vector<32xf32> to vector<32x1xf32>
    %176 = tpu.reciprocal %175 {approx = true} : vector<32x1xf32> -> vector<32x1xf32>
    %177 = vector.broadcast %176 : vector<32x1xf32> to vector<32x32xf32>
    %178 = arith.mulf %173, %177 : vector<32x32xf32>
    %179 = arith.truncf %178 : vector<32x32xf32> to vector<32x32xbf16>
    %cst_56 = arith.constant dense<0.000000e+00> : vector<32x128xf32>
    %180 = tpu.matmul %179, %164, %cst_56 {dimension_numbers = #tpu.dot_dimension_numbers<[1], [0], [0], [1], [0, 0, 1, 1], [], []>} : vector<32x32xbf16>, vector<32x128xbf16>, vector<32x128xf32> -> vector<32x128xf32>
    %181 = arith.addf %151, %180 : vector<32x128xf32>
    %182 = arith.truncf %181 : vector<32x128xf32> to vector<32x128xbf16>
    %c0_57 = arith.constant 0 : index
    %c0_58 = arith.constant 0 : index
    %183 = vector.load %arg12[%c0_57, %c0_58] : memref<128x128xbf16, #tpu.memory_space<vmem>>, vector<128x128xbf16>
    %cst_59 = arith.constant dense<0.000000e+00> : vector<32x128xf32>
    %184 = tpu.matmul %182, %183, %cst_59 {dimension_numbers = #tpu.dot_dimension_numbers<[1], [0], [0], [1], [0, 0, 1, 1], [], []>} : vector<32x128xbf16>, vector<128x128xbf16>, vector<32x128xf32> -> vector<32x128xf32>
    %c0_60 = arith.constant 0 : index
    %c0_61 = arith.constant 0 : index
    %185 = vector.load %arg13[%c0_60, %c0_61] : memref<1x128xf32, #tpu.memory_space<vmem>>, vector<1x128xf32>
    %186 = vector.broadcast %185 : vector<1x128xf32> to vector<32x128xf32>
    %187 = arith.addf %184, %186 : vector<32x128xf32>
    %188 = arith.addf %23, %187 : vector<32x128xf32>
    %c0_62 = arith.constant 0 : index
    %c0_63 = arith.constant 0 : index
    %189 = vector.load %arg14[%c0_62, %c0_63] : memref<1x128xf32, #tpu.memory_space<vmem>>, vector<1x128xf32>
    %c0_64 = arith.constant 0 : index
    %c0_65 = arith.constant 0 : index
    %190 = vector.load %arg15[%c0_64, %c0_65] : memref<1x128xf32, #tpu.memory_space<vmem>>, vector<1x128xf32>
    %191 = vector.broadcast %4 : vector<1x128xf32> to vector<32x128xf32>
    %192 = arith.mulf %188, %191 : vector<32x128xf32>
    %cst_66 = arith.constant dense<0.000000e+00> : vector<32xf32>
    %193 = vector.multi_reduction <add>, %192, %cst_66 [1] : vector<32x128xf32> to vector<32xf32>
    %194 = vector.shape_cast %193 : vector<32xf32> to vector<32x1xf32>
    %cst_67 = arith.constant 3.125000e-02 : f32
    %195 = vector.broadcast %cst_67 : f32 to vector<32x1xf32>
    %196 = arith.mulf %194, %195 : vector<32x1xf32>
    %197 = vector.broadcast %196 : vector<32x1xf32> to vector<32x128xf32>
    %198 = arith.subf %188, %197 : vector<32x128xf32>
    %199 = vector.broadcast %4 : vector<1x128xf32> to vector<32x128xf32>
    %200 = arith.mulf %198, %199 : vector<32x128xf32>
    %201 = arith.mulf %200, %200 : vector<32x128xf32>
    %cst_68 = arith.constant dense<0.000000e+00> : vector<32xf32>
    %202 = vector.multi_reduction <add>, %201, %cst_68 [1] : vector<32x128xf32> to vector<32xf32>
    %203 = vector.shape_cast %202 : vector<32xf32> to vector<32x1xf32>
    %cst_69 = arith.constant 3.125000e-02 : f32
    %204 = vector.broadcast %cst_69 : f32 to vector<32x1xf32>
    %205 = arith.mulf %203, %204 : vector<32x1xf32>
    %cst_70 = arith.constant 9.99999974E-6 : f32
    %206 = vector.broadcast %cst_70 : f32 to vector<32x1xf32>
    %207 = arith.addf %205, %206 : vector<32x1xf32>
    %208 = math.rsqrt %207 : vector<32x1xf32>
    %209 = vector.broadcast %208 : vector<32x1xf32> to vector<32x128xf32>
    %210 = arith.mulf %200, %209 : vector<32x128xf32>
    %211 = vector.broadcast %189 : vector<1x128xf32> to vector<32x128xf32>
    %212 = arith.mulf %210, %211 : vector<32x128xf32>
    %213 = vector.broadcast %190 : vector<1x128xf32> to vector<32x128xf32>
    %214 = arith.addf %212, %213 : vector<32x128xf32>
    %215 = arith.truncf %214 : vector<32x128xf32> to vector<32x128xbf16>
    %c0_71 = arith.constant 0 : index
    %c0_72 = arith.constant 0 : index
    %216 = vector.load %arg16[%c0_71, %c0_72] : memref<128x128xbf16, #tpu.memory_space<vmem>>, vector<128x128xbf16>
    %cst_73 = arith.constant dense<0.000000e+00> : vector<32x128xf32>
    %217 = tpu.matmul %215, %216, %cst_73 {dimension_numbers = #tpu.dot_dimension_numbers<[1], [0], [0], [1], [0, 0, 1, 1], [], []>} : vector<32x128xbf16>, vector<128x128xbf16>, vector<32x128xf32> -> vector<32x128xf32>
    %c0_74 = arith.constant 0 : index
    %c0_75 = arith.constant 0 : index
    %218 = vector.load %arg17[%c0_74, %c0_75] : memref<1x128xf32, #tpu.memory_space<vmem>>, vector<1x128xf32>
    %219 = vector.broadcast %218 : vector<1x128xf32> to vector<32x128xf32>
    %220 = arith.addf %217, %219 : vector<32x128xf32>
    %221 = arith.mulf %220, %220 : vector<32x128xf32>
    %222 = arith.mulf %220, %221 : vector<32x128xf32>
    %cst_76 = arith.constant 4.471500e-02 : f32
    %223 = vector.broadcast %cst_76 : f32 to vector<32x128xf32>
    %224 = arith.mulf %223, %222 : vector<32x128xf32>
    %225 = arith.addf %220, %224 : vector<32x128xf32>
    %cst_77 = arith.constant 0.797884583 : f32
    %226 = vector.broadcast %cst_77 : f32 to vector<32x128xf32>
    %227 = arith.mulf %226, %225 : vector<32x128xf32>
    %228 = math.tanh %227 : vector<32x128xf32>
    %cst_78 = arith.constant 1.000000e+00 : f32
    %229 = vector.broadcast %cst_78 : f32 to vector<32x128xf32>
    %230 = arith.addf %229, %228 : vector<32x128xf32>
    %cst_79 = arith.constant 5.000000e-01 : f32
    %231 = vector.broadcast %cst_79 : f32 to vector<32x128xf32>
    %232 = arith.mulf %231, %230 : vector<32x128xf32>
    %233 = arith.mulf %220, %232 : vector<32x128xf32>
    %234 = arith.truncf %233 : vector<32x128xf32> to vector<32x128xbf16>
    %c0_80 = arith.constant 0 : index
    %c0_81 = arith.constant 0 : index
    %235 = vector.load %arg18[%c0_80, %c0_81] : memref<128x128xbf16, #tpu.memory_space<vmem>>, vector<128x128xbf16>
    %cst_82 = arith.constant dense<0.000000e+00> : vector<32x128xf32>
    %236 = tpu.matmul %234, %235, %cst_82 {dimension_numbers = #tpu.dot_dimension_numbers<[1], [0], [0], [1], [0, 0, 1, 1], [], []>} : vector<32x128xbf16>, vector<128x128xbf16>, vector<32x128xf32> -> vector<32x128xf32>
    %c0_83 = arith.constant 0 : index
    %c0_84 = arith.constant 0 : index
    %237 = vector.load %arg19[%c0_83, %c0_84] : memref<1x128xf32, #tpu.memory_space<vmem>>, vector<1x128xf32>
    %238 = vector.broadcast %237 : vector<1x128xf32> to vector<32x128xf32>
    %239 = arith.addf %236, %238 : vector<32x128xf32>
    %240 = arith.addf %188, %239 : vector<32x128xf32>
    %c0_85 = arith.constant 0 : index
    %c0_86 = arith.constant 0 : index
    %241 = vector.load %arg20[%c0_85, %c0_86] : memref<1x128xf32, #tpu.memory_space<vmem>>, vector<1x128xf32>
    %c0_87 = arith.constant 0 : index
    %c0_88 = arith.constant 0 : index
    %242 = vector.load %arg21[%c0_87, %c0_88] : memref<1x128xf32, #tpu.memory_space<vmem>>, vector<1x128xf32>
    %243 = vector.broadcast %4 : vector<1x128xf32> to vector<32x128xf32>
    %244 = arith.mulf %240, %243 : vector<32x128xf32>
    %cst_89 = arith.constant dense<0.000000e+00> : vector<32xf32>
    %245 = vector.multi_reduction <add>, %244, %cst_89 [1] : vector<32x128xf32> to vector<32xf32>
    %246 = vector.shape_cast %245 : vector<32xf32> to vector<32x1xf32>
    %cst_90 = arith.constant 3.125000e-02 : f32
    %247 = vector.broadcast %cst_90 : f32 to vector<32x1xf32>
    %248 = arith.mulf %246, %247 : vector<32x1xf32>
    %249 = vector.broadcast %248 : vector<32x1xf32> to vector<32x128xf32>
    %250 = arith.subf %240, %249 : vector<32x128xf32>
    %251 = vector.broadcast %4 : vector<1x128xf32> to vector<32x128xf32>
    %252 = arith.mulf %250, %251 : vector<32x128xf32>
    %253 = arith.mulf %252, %252 : vector<32x128xf32>
    %cst_91 = arith.constant dense<0.000000e+00> : vector<32xf32>
    %254 = vector.multi_reduction <add>, %253, %cst_91 [1] : vector<32x128xf32> to vector<32xf32>
    %255 = vector.shape_cast %254 : vector<32xf32> to vector<32x1xf32>
    %cst_92 = arith.constant 3.125000e-02 : f32
    %256 = vector.broadcast %cst_92 : f32 to vector<32x1xf32>
    %257 = arith.mulf %255, %256 : vector<32x1xf32>
    %cst_93 = arith.constant 9.99999974E-6 : f32
    %258 = vector.broadcast %cst_93 : f32 to vector<32x1xf32>
    %259 = arith.addf %257, %258 : vector<32x1xf32>
    %260 = math.rsqrt %259 : vector<32x1xf32>
    %261 = vector.broadcast %260 : vector<32x1xf32> to vector<32x128xf32>
    %262 = arith.mulf %252, %261 : vector<32x128xf32>
    %263 = vector.broadcast %241 : vector<1x128xf32> to vector<32x128xf32>
    %264 = arith.mulf %262, %263 : vector<32x128xf32>
    %265 = vector.broadcast %242 : vector<1x128xf32> to vector<32x128xf32>
    %266 = arith.addf %264, %265 : vector<32x128xf32>
    %267 = arith.truncf %266 : vector<32x128xf32> to vector<32x128xbf16>
    %c0_94 = arith.constant 0 : index
    %c0_95 = arith.constant 0 : index
    %268 = vector.load %arg23[%c0_94, %c0_95] : memref<2x32xbf16, #tpu.memory_space<vmem>>, vector<2x32xbf16>
    %cst_96 = arith.constant dense<0.000000e+00> : vector<2x128xf32>
    %269 = tpu.matmul %268, %267, %cst_96 {dimension_numbers = #tpu.dot_dimension_numbers<[1], [0], [0], [1], [0, 0, 1, 1], [], []>} : vector<2x32xbf16>, vector<32x128xbf16>, vector<2x128xf32> -> vector<2x128xf32>
    %c0_97 = arith.constant 0 : index
    %c0_98 = arith.constant 0 : index
    %270 = vector.load %arg24[%c0_97, %c0_98] : memref<2x32xbf16, #tpu.memory_space<vmem>>, vector<2x32xbf16>
    %cst_99 = arith.constant dense<0.000000e+00> : vector<2x128xf32>
    %271 = tpu.matmul %270, %267, %cst_99 {dimension_numbers = #tpu.dot_dimension_numbers<[1], [0], [0], [1], [0, 0, 1, 1], [], []>} : vector<2x32xbf16>, vector<32x128xbf16>, vector<2x128xf32> -> vector<2x128xf32>
    %272 = arith.truncf %271 : vector<2x128xf32> to vector<2x128xbf16>
    %c0_100 = arith.constant 0 : index
    %c0_101 = arith.constant 0 : index
    %273 = vector.load %arg25[%c0_100, %c0_101] : memref<128x128xbf16, #tpu.memory_space<vmem>>, vector<128x128xbf16>
    %cst_102 = arith.constant dense<0.000000e+00> : vector<2x128xf32>
    %274 = tpu.matmul %272, %273, %cst_102 {dimension_numbers = #tpu.dot_dimension_numbers<[1], [0], [0], [1], [0, 0, 1, 1], [], []>} : vector<2x128xbf16>, vector<128x128xbf16>, vector<2x128xf32> -> vector<2x128xf32>
    %275 = arith.truncf %269 : vector<2x128xf32> to vector<2x128xbf16>
    %c0_103 = arith.constant 0 : index
    %c0_104 = arith.constant 0 : index
    %276 = vector.load %arg26[%c0_103, %c0_104] : memref<128x128xbf16, #tpu.memory_space<vmem>>, vector<128x128xbf16>
    %cst_105 = arith.constant dense<0.000000e+00> : vector<2x128xf32>
    %277 = tpu.matmul %275, %276, %cst_105 {dimension_numbers = #tpu.dot_dimension_numbers<[1], [0], [0], [1], [0, 0, 1, 1], [], []>} : vector<2x128xbf16>, vector<128x128xbf16>, vector<2x128xf32> -> vector<2x128xf32>
    %278 = arith.addf %274, %277 : vector<2x128xf32>
    %c0_106 = arith.constant 0 : index
    %c0_107 = arith.constant 0 : index
    %279 = vector.load %arg27[%c0_106, %c0_107] : memref<1x128xf32, #tpu.memory_space<vmem>>, vector<1x128xf32>
    %280 = vector.broadcast %279 : vector<1x128xf32> to vector<2x128xf32>
    %281 = arith.addf %278, %280 : vector<2x128xf32>
    %c0_108 = arith.constant 0 : index
    %c0_109 = arith.constant 0 : index
    %282 = vector.load %arg28[%c0_108, %c0_109] : memref<2x128xf32, #tpu.memory_space<vmem>>, vector<2x128xf32>
    tpu.vector_store %arg28[%c0_108, %c0_109], %281 {strides = array<i32>} : memref<2x128xf32, #tpu.memory_space<vmem>>, vector<2x128xf32>,
    return
  }
}

</mosaic_0001>

<llo_original>
// kernel: classifier_forward.1
$region0: #{classifier_forward.1}
  #allocation0 [shape = 'u32[]', space=smem, size = 0x4, offset = 0x4, fixed_abs, tag = 'smem constant byte address 0x4 - core index']
  #allocation1 [shape = 'u32[144,128]{1,0:T(1,128)}', space=vmem, size = 0x12000, scoped, tag = 'internal scratch']
  %s0 = inlined_call_operand.vmem [shape: f32[16,128], index: 0, kind: input, shape index: {}]
  %s1 = inlined_call_operand.vmem [shape: f32[16,128], index: 1, kind: input, shape index: {}]
  %s2 = inlined_call_operand.vmem [shape: bf16[128,128], index: 2, kind: input, shape index: {}]
  %s3 = inlined_call_operand.vmem [shape: f32[1,128], index: 3, kind: input, shape index: {}]
  %s4 = inlined_call_operand.hbm [shape: bf16[128,128], index: 4, kind: input, shape index: {}]
  %s5 = inlined_call_operand.hbm [shape: f32[1,128], index: 5, kind: input, shape index: {}]
  %s6 = inlined_call_operand.hbm [shape: f32[16,128], index: 6, kind: input, shape index: {}]
  %s7 = inlined_call_operand.hbm [shape: f32[16,128], index: 7, kind: input, shape index: {}]
  %s8 = inlined_call_operand.hbm [shape: f32[1,128], index: 8, kind: input, shape index: {}]
  %s9 = inlined_call_operand.hbm [shape: f32[1,128], index: 9, kind: input, shape index: {}]
  %s10 = inlined_call_operand.hbm [shape: bf16[128,384], index: 10, kind: input, shape index: {}]
  %s11 = inlined_call_operand.hbm [shape: f32[1,384], index: 11, kind: input, shape index: {}]
  %s12 = inlined_call_operand.hbm [shape: bf16[128,128], index: 12, kind: input, shape index: {}]
  %s13 = inlined_call_operand.hbm [shape: f32[1,128], index: 13, kind: input, shape index: {}]
  %s14 = inlined_call_operand.hbm [shape: f32[1,128], index: 14, kind: input, shape index: {}]
  %s15 = inlined_call_operand.hbm [shape: f32[1,128], index: 15, kind: input, shape index: {}]
  %s16 = inlined_call_operand.hbm [shape: bf16[128,128], index: 16, kind: input, shape index: {}]
  %s17 = inlined_call_operand.hbm [shape: f32[1,128], index: 17, kind: input, shape index: {}]
  %s18 = inlined_call_operand.hbm [shape: bf16[128,128], index: 18, kind: input, shape index: {}]
  %s19 = inlined_call_operand.hbm [shape: f32[1,128], index: 19, kind: input, shape index: {}]
  %s20 = inlined_call_operand.hbm [shape: f32[1,128], index: 20, kind: input, shape index: {}]
  %s21 = inlined_call_operand.hbm [shape: f32[1,128], index: 21, kind: input, shape index: {}]
  %s22 = inlined_call_operand.vmem [shape: f32[32,32], index: 22, kind: input, shape index: {}]
  %s23 = inlined_call_operand.hbm [shape: bf16[2,32], index: 23, kind: input, shape index: {}]
  %s24 = inlined_call_operand.hbm [shape: bf16[2,32], index: 24, kind: input, shape index: {}]
  %s25 = inlined_call_operand.hbm [shape: bf16[128,128], index: 25, kind: input, shape index: {}]
  %s26 = inlined_call_operand.hbm [shape: bf16[128,128], index: 26, kind: input, shape index: {}]
  %s27 = inlined_call_operand.hbm [shape: f32[1,128], index: 27, kind: input, shape index: {}]
  %s28 = inlined_call_operand.hbm [shape: f32[2,128], index: 28, kind: output, shape index: {}]
  %s29 = sld [smem:[#allocation0]]
  $region214: #{classifier_forward.1} parent=0
    _
  %s31 = ssub.s32 1, %s29
  %s32 = scalar_select 0, %s31, %s29
  $region1: #{classifier_forward.1} parent=0
    #allocation2 [shape = 'u8[32768]{0}', space=vmem, size = 0x8000, scoped, tag = 'input window, operand 4, single buffered']
    #allocation3 [shape = 's32[1]{0}', space=sflag, size = 0x4, scoped, tag = 'scoped memory for classifier_forward.1']
    #allocation4 [shape = 's32[1]{0}', space=sflag, size = 0x4, scoped, tag = 'scoped memory for classifier_forward.1']
    #allocation5 [shape = 'u8[512]{0}', space=vmem, size = 0x400, scoped, tag = 'input window, operand 5, single buffered']
    #allocation6 [shape = 's32[1]{0}', space=sflag, size = 0x4, scoped, tag = 'scoped memory for classifier_forward.1']
    #allocation7 [shape = 'u8[8192]{0}', space=vmem, size = 0x2000, scoped, tag = 'input window, operand 6, single buffered']
    #allocation8 [shape = 'u8[8192]{0}', space=vmem, size = 0x2000, scoped, tag = 'input window, operand 7, single buffered']
    #allocation9 [shape = 's32[1]{0}', space=sflag, size = 0x4, scoped, tag = 'scoped memory for classifier_forward.1']
    #allocation10 [shape = 'u8[512]{0}', space=vmem, size = 0x400, scoped, tag = 'input window, operand 8, single buffered']
    #allocation11 [shape = 'u8[512]{0}', space=vmem, size = 0x400, scoped, tag = 'input window, operand 9, single buffered']
    #allocation12 [shape = 's32[1]{0}', space=sflag, size = 0x4, scoped, tag = 'scoped memory for classifier_forward.1']
    #allocation13 [shape = 'u8[98304]{0}', space=vmem, size = 0x18000, scoped, tag = 'input window, operand 10, single buffered']
    #allocation14 [shape = 'u8[1536]{0}', space=vmem, size = 0x800, scoped, tag = 'input window, operand 11, single buffered']
    #allocation15 [shape = 's32[1]{0}', space=sflag, size = 0x4, scoped, tag = 'scoped memory for classifier_forward.1']
    #allocation16 [shape = 'u8[32768]{0}', space=vmem, size = 0x8000, scoped, tag = 'input window, operand 12, single buffered']
    #allocation17 [shape = 'u8[512]{0}', space=vmem, size = 0x400, scoped, tag = 'input window, operand 13, single buffered']
    #allocation18 [shape = 's32[1]{0}', space=sflag, size = 0x4, scoped, tag = 'scoped memory for classifier_forward.1']
    #allocation19 [shape = 'u8[512]{0}', space=vmem, size = 0x400, scoped, tag = 'input window, operand 14, single buffered']
    #allocation20 [shape = 'u8[512]{0}', space=vmem, size = 0x400, scoped, tag = 'input window, operand 15, single buffered']
    #allocation21 [shape = 's32[1]{0}', space=sflag, size = 0x4, scoped, tag = 'scoped memory for classifier_forward.1']
    #allocation22 [shape = 'u8[32768]{0}', space=vmem, size = 0x8000, scoped, tag = 'input window, operand 16, single buffered']
    #allocation23 [shape = 'u8[512]{0}', space=vmem, size = 0x400, scoped, tag = 'input window, operand 17, single buffered']
    #allocation24 [shape = 's32[1]{0}', space=sflag, size = 0x4, scoped, tag = 'scoped memory for classifier_forward.1']
    #allocation25 [shape = 'u8[32768]{0}', space=vmem, size = 0x8000, scoped, tag = 'input window, operand 18, single buffered']
    #allocation26 [shape = 'u8[512]{0}', space=vmem, size = 0x400, scoped, tag = 'input window, operand 19, single buffered']
    #allocation27 [shape = 's32[1]{0}', space=sflag, size = 0x4, scoped, tag = 'scoped memory for classifier_forward.1']
    #allocation28 [shape = 'u8[512]{0}', space=vmem, size = 0x400, scoped, tag = 'input window, operand 20, single buffered']
    #allocation29 [shape = 'u8[512]{0}', space=vmem, size = 0x400, scoped, tag = 'input window, operand 21, single buffered']
    #allocation30 [shape = 's32[1]{0}', space=sflag, size = 0x4, scoped, tag = 'scoped memory for classifier_forward.1']
    #allocation31 [shape = 'u8[512]{0}', space=vmem, size = 0x400, scoped, tag = 'input window, operand 23, single buffered']
    #allocation32 [shape = 'u8[512]{0}', space=vmem, size = 0x400, scoped, tag = 'input window, operand 24, single buffered']
    #allocation33 [shape = 's32[1]{0}', space=sflag, size = 0x4, scoped, tag = 'scoped memory for classifier_forward.1']
    #allocation34 [shape = 'u8[32768]{0}', space=vmem, size = 0x8000, scoped, tag = 'input window, operand 25, single buffered']
    #allocation35 [shape = 'u8[32768]{0}', space=vmem, size = 0x8000, scoped, tag = 'input window, operand 26, single buffered']
    #allocation36 [shape = 's32[1]{0}', space=sflag, size = 0x4, scoped, tag = 'scoped memory for classifier_forward.1']
    #allocation37 [shape = 'u8[512]{0}', space=vmem, size = 0x400, scoped, tag = 'input window, operand 27, single buffered']
    #allocation38 [shape = 'u8[1024]{0}', space=vmem, size = 0x400, scoped, tag = 'output window, operand 0, single buffered']
    %33 = vsyncpa [#allocation3], 0
    %34 = vsyncpa [#allocation6], 0
    %35 = vsyncpa [#allocation9], 0
    %36 = vsyncpa [#allocation12], 0
    %37 = vsyncpa [#allocation15], 0
    %38 = vsyncpa [#allocation18], 0
    %39 = vsyncpa [#allocation21], 0
    %40 = vsyncpa [#allocation24], 0
    %41 = vsyncpa [#allocation27], 0
    %42 = vsyncpa [#allocation30], 0
    %43 = vsyncpa [#allocation33], 0
    %44 = vsyncpa [#allocation36], 0
    %45 = vsyncpa [#allocation4], 0
    // Predicated region
    $region2: #{classifier_forward.1} parent=1 // pred_check
      _
    $region3: #{classifier_forward.1} parent=1 // pred_check_branch
      %47 = sbr.rel (0) target = $region5
    $region4: #{classifier_forward.1} parent=1 // pred_region
      _
    $region5: #{classifier_forward.1} parent=1 // pred_fallthru
      _
    // Predicated region
    $region6: #{classifier_forward.1} parent=1 // pred_check
      _
    $region7: #{classifier_forward.1} parent=1 // pred_check_branch
      %49 = sbr.rel (0) target = $region9
    $region8: #{classifier_forward.1} parent=1 // pred_region
      _
    $region9: #{classifier_forward.1} parent=1 // pred_fallthru
      _
    // Predicated region
    $region10: #{classifier_forward.1} parent=1 // pred_check
      _
    $region11: #{classifier_forward.1} parent=1 // pred_check_branch
      %51 = sbr.rel (0) target = $region13
    $region12: #{classifier_forward.1} parent=1 // pred_region
      _
    $region13: #{classifier_forward.1} parent=1 // pred_fallthru
      _
    // Predicated region
    $region14: #{classifier_forward.1} parent=1 // pred_check
      _
    $region15: #{classifier_forward.1} parent=1 // pred_check_branch
      %53 = sbr.rel (0) target = $region17
    $region16: #{classifier_forward.1} parent=1 // pred_region
      _
    $region17: #{classifier_forward.1} parent=1 // pred_fallthru
      _
    // Predicated region
    $region18: #{classifier_forward.1} parent=1 // pred_check
      _
    $region19: #{classifier_forward.1} parent=1 // pred_check_branch
      %55 = sbr.rel (0) target = $region21
    $region20: #{classifier_forward.1} parent=1 // pred_region
      %s57 = ssub.s32 1024, 1024
      %58 = vsyncadd [#allocation3], %s57
      %s59 = sshll.u32 [#allocation2], 4
      %s60 = int_to_ptr.vmem [resolvable:$true] %s59
      %65 = dma.hbm_to_vmem [thread:$0]  %s4, 1024, %s60, [#allocation3], 64, 64, 4
    $region21: #{classifier_forward.1} parent=1 // pred_fallthru
      _
    // Predicated region
    $region22: #{classifier_forward.1} parent=1 // pred_check
      _
    $region23: #{classifier_forward.1} parent=1 // pred_check_branch
      %67 = sbr.rel (0) target = $region25
    $region24: #{classifier_forward.1} parent=1 // pred_region
      %s69 = ssub.s32 16, 16
      %70 = vsyncadd [#allocation6], %s69
      %s72 = sshll.u32 [#allocation5], 4
      %s73 = int_to_ptr.vmem [resolvable:$true] %s72
      %75 = dma.hbm_to_vmem [thread:$0]  %s5, 16, %s73, [#allocation6]
    $region25: #{classifier_forward.1} parent=1 // pred_fallthru
      _
    // Predicated region
    $region26: #{classifier_forward.1} parent=1 // pred_check
      _
    $region27: #{classifier_forward.1} parent=1 // pred_check_branch
      %77 = sbr.rel (0) target = $region29
    $region28: #{classifier_forward.1} parent=1 // pred_region
      %s79 = ssub.s32 256, 256
      %80 = vsyncadd [#allocation6], %s79
      %s81 = sshll.u32 [#allocation7], 4
      %s82 = int_to_ptr.vmem [resolvable:$true] %s81
      %87 = dma.hbm_to_vmem [thread:$0]  %s6, 256, %s82, [#allocation6], 128, 128, 8
    $region29: #{classifier_forward.1} parent=1 // pred_fallthru
      _
    // Predicated region
    $region30: #{classifier_forward.1} parent=1 // pred_check
      _
    $region31: #{classifier_forward.1} parent=1 // pred_check_branch
      %89 = sbr.rel (0) target = $region33
    $region32: #{classifier_forward.1} parent=1 // pred_region
      %s91 = ssub.s32 256, 256
      %92 = vsyncadd [#allocation9], %s91
      %s93 = sshll.u32 [#allocation8], 4
      %s94 = int_to_ptr.vmem [resolvable:$true] %s93
      %99 = dma.hbm_to_vmem [thread:$0]  %s7, 256, %s94, [#allocation9], 128, 128, 8
    $region33: #{classifier_forward.1} parent=1 // pred_fallthru
      _
    // Predicated region
    $region34: #{classifier_forward.1} parent=1 // pred_check
      _
    $region35: #{classifier_forward.1} parent=1 // pred_check_branch
      %101 = sbr.rel (0) target = $region37
    $region36: #{classifier_forward.1} parent=1 // pred_region
      %s103 = ssub.s32 16, 16
      %104 = vsyncadd [#allocation9], %s103
      %s106 = sshll.u32 [#allocation10], 4
      %s107 = int_to_ptr.vmem [resolvable:$true] %s106
      %109 = dma.hbm_to_vmem [thread:$0]  %s8, 16, %s107, [#allocation9]
    $region37: #{classifier_forward.1} parent=1 // pred_fallthru
      _
    // Predicated region
    $region38: #{classifier_forward.1} parent=1 // pred_check
      _
    $region39: #{classifier_forward.1} parent=1 // pred_check_branch
      %111 = sbr.rel (0) target = $region41
    $region40: #{classifier_forward.1} parent=1 // pred_region
      %s113 = ssub.s32 16, 16
      %114 = vsyncadd [#allocation12], %s113
      %s116 = sshll.u32 [#allocation11], 4
      %s117 = int_to_ptr.vmem [resolvable:$true] %s116
      %119 = dma.hbm_to_vmem [thread:$0]  %s9, 16, %s117, [#allocation12]
    $region41: #{classifier_forward.1} parent=1 // pred_fallthru
      _
    // Predicated region
    $region42: #{classifier_forward.1} parent=1 // pred_check
      _
    $region43: #{classifier_forward.1} parent=1 // pred_check_branch
      %121 = sbr.rel (0) target = $region45
    $region44: #{classifier_forward.1} parent=1 // pred_region
      %s123 = ssub.s32 3072, 3072
      %124 = vsyncadd [#allocation12], %s123
      %s125 = sshll.u32 [#allocation13], 4
      %s126 = int_to_ptr.vmem [resolvable:$true] %s125
      %131 = dma.hbm_to_vmem [thread:$0]  %s10, 3072, %s126, [#allocation12], 192, 192, 12
    $region45: #{classifier_forward.1} parent=1 // pred_fallthru
      _
    // Predicated region
    $region46: #{classifier_forward.1} parent=1 // pred_check
      _
    $region47: #{classifier_forward.1} parent=1 // pred_check_branch
      %133 = sbr.rel (0) target = $region49
    $region48: #{classifier_forward.1} parent=1 // pred_region
      %s135 = ssub.s32 48, 48
      %136 = vsyncadd [#allocation15], %s135
      %s138 = sshll.u32 [#allocation14], 4
      %s139 = int_to_ptr.vmem [resolvable:$true] %s138
      %141 = dma.hbm_to_vmem [thread:$0]  %s11, 48, %s139, [#allocation15]
    $region49: #{classifier_forward.1} parent=1 // pred_fallthru
      _
    // Predicated region
    $region50: #{classifier_forward.1} parent=1 // pred_check
      _
    $region51: #{classifier_forward.1} parent=1 // pred_check_branch
      %143 = sbr.rel (0) target = $region53
    $region52: #{classifier_forward.1} parent=1 // pred_region
      %s145 = ssub.s32 1024, 1024
      %146 = vsyncadd [#allocation15], %s145
      %s147 = sshll.u32 [#allocation16], 4
      %s148 = int_to_ptr.vmem [resolvable:$true] %s147
      %153 = dma.hbm_to_vmem [thread:$0]  %s12, 1024, %s148, [#allocation15], 64, 64, 4
    $region53: #{classifier_forward.1} parent=1 // pred_fallthru
      _
    // Predicated region
    $region54: #{classifier_forward.1} parent=1 // pred_check
      _
    $region55: #{classifier_forward.1} parent=1 // pred_check_branch
      %155 = sbr.rel (0) target = $region57
    $region56: #{classifier_forward.1} parent=1 // pred_region
      %s157 = ssub.s32 16, 16
      %158 = vsyncadd [#allocation18], %s157
      %s160 = sshll.u32 [#allocation17], 4
      %s161 = int_to_ptr.vmem [resolvable:$true] %s160
      %163 = dma.hbm_to_vmem [thread:$0]  %s13, 16, %s161, [#allocation18]
    $region57: #{classifier_forward.1} parent=1 // pred_fallthru
      _
    // Predicated region
    $region58: #{classifier_forward.1} parent=1 // pred_check
      _
    $region59: #{classifier_forward.1} parent=1 // pred_check_branch
      %165 = sbr.rel (0) target = $region61
    $region60: #{classifier_forward.1} parent=1 // pred_region
      %s167 = ssub.s32 16, 16
      %168 = vsyncadd [#allocation18], %s167
      %s170 = sshll.u32 [#allocation19], 4
      %s171 = int_to_ptr.vmem [resolvable:$true] %s170
      %173 = dma.hbm_to_vmem [thread:$0]  %s14, 16, %s171, [#allocation18]
    $region61: #{classifier_forward.1} parent=1 // pred_fallthru
      _
    // Predicated region
    $region62: #{classifier_forward.1} parent=1 // pred_check
      _
    $region63: #{classifier_forward.1} parent=1 // pred_check_branch
      %175 = sbr.rel (0) target = $region65
    $region64: #{classifier_forward.1} parent=1 // pred_region
      %s177 = ssub.s32 16, 16
      %178 = vsyncadd [#allocation21], %s177
      %s180 = sshll.u32 [#allocation20], 4
      %s181 = int_to_ptr.vmem [resolvable:$true] %s180
      %183 = dma.hbm_to_vmem [thread:$0]  %s15, 16, %s181, [#allocation21]
    $region65: #{classifier_forward.1} parent=1 // pred_fallthru
      _
    // Predicated region
    $region66: #{classifier_forward.1} parent=1 // pred_check
      _
    $region67: #{classifier_forward.1} parent=1 // pred_check_branch
      %185 = sbr.rel (0) target = $region69
    $region68: #{classifier_forward.1} parent=1 // pred_region
      %s187 = ssub.s32 1024, 1024
      %188 = vsyncadd [#allocation21], %s187
      %s189 = sshll.u32 [#allocation22], 4
      %s190 = int_to_ptr.vmem [resolvable:$true] %s189
      %195 = dma.hbm_to_vmem [thread:$0]  %s16, 1024, %s190, [#allocation21], 64, 64, 4
    $region69: #{classifier_forward.1} parent=1 // pred_fallthru
      _
    // Predicated region
    $region70: #{classifier_forward.1} parent=1 // pred_check
      _
    $region71: #{classifier_forward.1} parent=1 // pred_check_branch
      %197 = sbr.rel (0) target = $region73
    $region72: #{classifier_forward.1} parent=1 // pred_region
      %s199 = ssub.s32 16, 16
      %200 = vsyncadd [#allocation24], %s199
      %s202 = sshll.u32 [#allocation23], 4
      %s203 = int_to_ptr.vmem [resolvable:$true] %s202
      %205 = dma.hbm_to_vmem [thread:$0]  %s17, 16, %s203, [#allocation24]
    $region73: #{classifier_forward.1} parent=1 // pred_fallthru
      _
    // Predicated region
    $region74: #{classifier_forward.1} parent=1 // pred_check
      _
    $region75: #{classifier_forward.1} parent=1 // pred_check_branch
      %207 = sbr.rel (0) target = $region77
    $region76: #{classifier_forward.1} parent=1 // pred_region
      %s209 = ssub.s32 1024, 1024
      %210 = vsyncadd [#allocation24], %s209
      %s211 = sshll.u32 [#allocation25], 4
      %s212 = int_to_ptr.vmem [resolvable:$true] %s211
      %217 = dma.hbm_to_vmem [thread:$0]  %s18, 1024, %s212, [#allocation24], 64, 64, 4
    $region77: #{classifier_forward.1} parent=1 // pred_fallthru
      _
    // Predicated region
    $region78: #{classifier_forward.1} parent=1 // pred_check
      _
    $region79: #{classifier_forward.1} parent=1 // pred_check_branch
      %219 = sbr.rel (0) target = $region81
    $region80: #{classifier_forward.1} parent=1 // pred_region
      %s221 = ssub.s32 16, 16
      %222 = vsyncadd [#allocation27], %s221
      %s224 = sshll.u32 [#allocation26], 4
      %s225 = int_to_ptr.vmem [resolvable:$true] %s224
      %227 = dma.hbm_to_vmem [thread:$0]  %s19, 16, %s225, [#allocation27]
    $region81: #{classifier_forward.1} parent=1 // pred_fallthru
      _
    // Predicated region
    $region82: #{classifier_forward.1} parent=1 // pred_check
      _
    $region83: #{classifier_forward.1} parent=1 // pred_check_branch
      %229 = sbr.rel (0) target = $region85
    $region84: #{classifier_forward.1} parent=1 // pred_region
      %s231 = ssub.s32 16, 16
      %232 = vsyncadd [#allocation27], %s231
      %s234 = sshll.u32 [#allocation28], 4
      %s235 = int_to_ptr.vmem [resolvable:$true] %s234
      %237 = dma.hbm_to_vmem [thread:$0]  %s20, 16, %s235, [#allocation27]
    $region85: #{classifier_forward.1} parent=1 // pred_fallthru
      _
    // Predicated region
    $region86: #{classifier_forward.1} parent=1 // pred_check
      _
    $region87: #{classifier_forward.1} parent=1 // pred_check_branch
      %239 = sbr.rel (0) target = $region89
    $region88: #{classifier_forward.1} parent=1 // pred_region
      %s241 = ssub.s32 16, 16
      %242 = vsyncadd [#allocation30], %s241
      %s244 = sshll.u32 [#allocation29], 4
      %s245 = int_to_ptr.vmem [resolvable:$true] %s244
      %247 = dma.hbm_to_vmem [thread:$0]  %s21, 16, %s245, [#allocation30]
    $region89: #{classifier_forward.1} parent=1 // pred_fallthru
      _
    // Predicated region
    $region90: #{classifier_forward.1} parent=1 // pred_check
      _
    $region91: #{classifier_forward.1} parent=1 // pred_check_branch
      %249 = sbr.rel (0) target = $region93
    $region92: #{classifier_forward.1} parent=1 // pred_region
      _
    $region93: #{classifier_forward.1} parent=1 // pred_fallthru
      _
    // Predicated region
    $region94: #{classifier_forward.1} parent=1 // pred_check
      _
    $region95: #{classifier_forward.1} parent=1 // pred_check_branch
      %251 = sbr.rel (0) target = $region97
    $region96: #{classifier_forward.1} parent=1 // pred_region
      %s253 = ssub.s32 16, 16
      %254 = vsyncadd [#allocation30], %s253
      %s256 = sshll.u32 [#allocation31], 4
      %s257 = int_to_ptr.vmem [resolvable:$true] %s256
      %259 = dma.hbm_to_vmem [thread:$0]  %s23, 16, %s257, [#allocation30]
    $region97: #{classifier_forward.1} parent=1 // pred_fallthru
      _
    // Predicated region
    $region98: #{classifier_forward.1} parent=1 // pred_check
      _
    $region99: #{classifier_forward.1} parent=1 // pred_check_branch
      %261 = sbr.rel (0) target = $region101
    $region100: #{classifier_forward.1} parent=1 // pred_region
      %s263 = ssub.s32 16, 16
      %264 = vsyncadd [#allocation33], %s263
      %s266 = sshll.u32 [#allocation32], 4
      %s267 = int_to_ptr.vmem [resolvable:$true] %s266
      %269 = dma.hbm_to_vmem [thread:$0]  %s24, 16, %s267, [#allocation33]
    $region101: #{classifier_forward.1} parent=1 // pred_fallthru
      _
    // Predicated region
    $region102: #{classifier_forward.1} parent=1 // pred_check
      _
    $region103: #{classifier_forward.1} parent=1 // pred_check_branch
      %271 = sbr.rel (0) target = $region105
    $region104: #{classifier_forward.1} parent=1 // pred_region
      %s273 = ssub.s32 1024, 1024
      %274 = vsyncadd [#allocation33], %s273
      %s275 = sshll.u32 [#allocation34], 4
      %s276 = int_to_ptr.vmem [resolvable:$true] %s275
      %281 = dma.hbm_to_vmem [thread:$0]  %s25, 1024, %s276, [#allocation33], 64, 64, 4
    $region105: #{classifier_forward.1} parent=1 // pred_fallthru
      _
    // Predicated region
    $region106: #{classifier_forward.1} parent=1 // pred_check
      _
    $region107: #{classifier_forward.1} parent=1 // pred_check_branch
      %283 = sbr.rel (0) target = $region109
    $region108: #{classifier_forward.1} parent=1 // pred_region
      %s285 = ssub.s32 1024, 1024
      %286 = vsyncadd [#allocation36], %s285
      %s287 = sshll.u32 [#allocation35], 4
      %s288 = int_to_ptr.vmem [resolvable:$true] %s287
      %293 = dma.hbm_to_vmem [thread:$0]  %s26, 1024, %s288, [#allocation36], 64, 64, 4
    $region109: #{classifier_forward.1} parent=1 // pred_fallthru
      _
    // Predicated region
    $region110: #{classifier_forward.1} parent=1 // pred_check
      _
    $region111: #{classifier_forward.1} parent=1 // pred_check_branch
      %295 = sbr.rel (0) target = $region113
    $region112: #{classifier_forward.1} parent=1 // pred_region
      %s297 = ssub.s32 16, 16
      %298 = vsyncadd [#allocation36], %s297
      %s300 = sshll.u32 [#allocation37], 4
      %s301 = int_to_ptr.vmem [resolvable:$true] %s300
      %303 = dma.hbm_to_vmem [thread:$0]  %s27, 16, %s301, [#allocation36]
    $region113: #{classifier_forward.1} parent=1 // pred_fallthru
      _
    // Predicated region
    $region114: #{classifier_forward.1} parent=1 // pred_check
      _
    $region115: #{classifier_forward.1} parent=1 // pred_check_branch
      %305 = sbr.rel (0) target = $region117
    $region116: #{classifier_forward.1} parent=1 // pred_region
      %306 = dma.done [#allocation3], 1024
    $region117: #{classifier_forward.1} parent=1 // pred_fallthru
      _
    // Predicated region
    $region118: #{classifier_forward.1} parent=1 // pred_check
      _
    $region119: #{classifier_forward.1} parent=1 // pred_check_branch
      %308 = sbr.rel (0) target = $region121
    $region120: #{classifier_forward.1} parent=1 // pred_region
      %309 = dma.done [#allocation6], 16
    $region121: #{classifier_forward.1} parent=1 // pred_fallthru
      _
    // Predicated region
    $region122: #{classifier_forward.1} parent=1 // pred_check
      _
    $region123: #{classifier_forward.1} parent=1 // pred_check_branch
      %311 = sbr.rel (0) target = $region125
    $region124: #{classifier_forward.1} parent=1 // pred_region
      %312 = dma.done [#allocation6], 256
    $region125: #{classifier_forward.1} parent=1 // pred_fallthru
      _
    // Predicated region
    $region126: #{classifier_forward.1} parent=1 // pred_check
      _
    $region127: #{classifier_forward.1} parent=1 // pred_check_branch
      %314 = sbr.rel (0) target = $region129
    $region128: #{classifier_forward.1} parent=1 // pred_region
      %315 = dma.done [#allocation9], 256
    $region129: #{classifier_forward.1} parent=1 // pred_fallthru
      _
    // Predicated region
    $region130: #{classifier_forward.1} parent=1 // pred_check
      _
    $region131: #{classifier_forward.1} parent=1 // pred_check_branch
      %317 = sbr.rel (0) target = $region133
    $region132: #{classifier_forward.1} parent=1 // pred_region
      %318 = dma.done [#allocation9], 16
    $region133: #{classifier_forward.1} parent=1 // pred_fallthru
      _
    // Predicated region
    $region134: #{classifier_forward.1} parent=1 // pred_check
      _
    $region135: #{classifier_forward.1} parent=1 // pred_check_branch
      %320 = sbr.rel (0) target = $region137
    $region136: #{classifier_forward.1} parent=1 // pred_region
      %321 = dma.done [#allocation12], 16
    $region137: #{classifier_forward.1} parent=1 // pred_fallthru
      _
    // Predicated region
    $region138: #{classifier_forward.1} parent=1 // pred_check
      _
    $region139: #{classifier_forward.1} parent=1 // pred_check_branch
      %323 = sbr.rel (0) target = $region141
    $region140: #{classifier_forward.1} parent=1 // pred_region
      %324 = dma.done [#allocation12], 3072
    $region141: #{classifier_forward.1} parent=1 // pred_fallthru
      _
    // Predicated region
    $region142: #{classifier_forward.1} parent=1 // pred_check
      _
    $region143: #{classifier_forward.1} parent=1 // pred_check_branch
      %326 = sbr.rel (0) target = $region145
    $region144: #{classifier_forward.1} parent=1 // pred_region
      %327 = dma.done [#allocation15], 48
    $region145: #{classifier_forward.1} parent=1 // pred_fallthru
      _
    // Predicated region
    $region146: #{classifier_forward.1} parent=1 // pred_check
      _
    $region147: #{classifier_forward.1} parent=1 // pred_check_branch
      %329 = sbr.rel (0) target = $region149
    $region148: #{classifier_forward.1} parent=1 // pred_region
      %330 = dma.done [#allocation15], 1024
    $region149: #{classifier_forward.1} parent=1 // pred_fallthru
      _
    // Predicated region
    $region150: #{classifier_forward.1} parent=1 // pred_check
      _
    $region151: #{classifier_forward.1} parent=1 // pred_check_branch
      %332 = sbr.rel (0) target = $region153
    $region152: #{classifier_forward.1} parent=1 // pred_region
      %333 = dma.done [#allocation18], 16
    $region153: #{classifier_forward.1} parent=1 // pred_fallthru
      _
    // Predicated region
    $region154: #{classifier_forward.1} parent=1 // pred_check
      _
    $region155: #{classifier_forward.1} parent=1 // pred_check_branch
      %335 = sbr.rel (0) target = $region157
    $region156: #{classifier_forward.1} parent=1 // pred_region
      %336 = dma.done [#allocation18], 16
    $region157: #{classifier_forward.1} parent=1 // pred_fallthru
      _
    // Predicated region
    $region158: #{classifier_forward.1} parent=1 // pred_check
      _
    $region159: #{classifier_forward.1} parent=1 // pred_check_branch
      %338 = sbr.rel (0) target = $region161
    $region160: #{classifier_forward.1} parent=1 // pred_region
      %339 = dma.done [#allocation21], 16
    $region161: #{classifier_forward.1} parent=1 // pred_fallthru
      _
    // Predicated region
    $region162: #{classifier_forward.1} parent=1 // pred_check
      _
    $region163: #{classifier_forward.1} parent=1 // pred_check_branch
      %341 = sbr.rel (0) target = $region165
    $region164: #{classifier_forward.1} parent=1 // pred_region
      %342 = dma.done [#allocation21], 1024
    $region165: #{classifier_forward.1} parent=1 // pred_fallthru
      _
    // Predicated region
    $region166: #{classifier_forward.1} parent=1 // pred_check
      _
    $region167: #{classifier_forward.1} parent=1 // pred_check_branch
      %344 = sbr.rel (0) target = $region169
    $region168: #{classifier_forward.1} parent=1 // pred_region
      %345 = dma.done [#allocation24], 16
    $region169: #{classifier_forward.1} parent=1 // pred_fallthru
      _
    // Predicated region
    $region170: #{classifier_forward.1} parent=1 // pred_check
      _
    $region171: #{classifier_forward.1} parent=1 // pred_check_branch
      %347 = sbr.rel (0) target = $region173
    $region172: #{classifier_forward.1} parent=1 // pred_region
      %348 = dma.done [#allocation24], 1024
    $region173: #{classifier_forward.1} parent=1 // pred_fallthru
      _
    // Predicated region
    $region174: #{classifier_forward.1} parent=1 // pred_check
      _
    $region175: #{classifier_forward.1} parent=1 // pred_check_branch
      %350 = sbr.rel (0) target = $region177
    $region176: #{classifier_forward.1} parent=1 // pred_region
      %351 = dma.done [#allocation27], 16
    $region177: #{classifier_forward.1} parent=1 // pred_fallthru
      _
    // Predicated region
    $region178: #{classifier_forward.1} parent=1 // pred_check
      _
    $region179: #{classifier_forward.1} parent=1 // pred_check_branch
      %353 = sbr.rel (0) target = $region181
    $region180: #{classifier_forward.1} parent=1 // pred_region
      %354 = dma.done [#allocation27], 16
    $region181: #{classifier_forward.1} parent=1 // pred_fallthru
      _
    // Predicated region
    $region182: #{classifier_forward.1} parent=1 // pred_check
      _
    $region183: #{classifier_forward.1} parent=1 // pred_check_branch
      %356 = sbr.rel (0) target = $region185
    $region184: #{classifier_forward.1} parent=1 // pred_region
      %357 = dma.done [#allocation30], 16
    $region185: #{classifier_forward.1} parent=1 // pred_fallthru
      _
    // Predicated region
    $region186: #{classifier_forward.1} parent=1 // pred_check
      _
    $region187: #{classifier_forward.1} parent=1 // pred_check_branch
      %359 = sbr.rel (0) target = $region189
    $region188: #{classifier_forward.1} parent=1 // pred_region
      %360 = dma.done [#allocation30], 16
    $region189: #{classifier_forward.1} parent=1 // pred_fallthru
      _
    // Predicated region
    $region190: #{classifier_forward.1} parent=1 // pred_check
      _
    $region191: #{classifier_forward.1} parent=1 // pred_check_branch
      %362 = sbr.rel (0) target = $region193
    $region192: #{classifier_forward.1} parent=1 // pred_region
      %363 = dma.done [#allocation33], 16
    $region193: #{classifier_forward.1} parent=1 // pred_fallthru
      _
    // Predicated region
    $region194: #{classifier_forward.1} parent=1 // pred_check
      _
    $region195: #{classifier_forward.1} parent=1 // pred_check_branch
      %365 = sbr.rel (0) target = $region197
    $region196: #{classifier_forward.1} parent=1 // pred_region
      %366 = dma.done [#allocation33], 1024
    $region197: #{classifier_forward.1} parent=1 // pred_fallthru
      _
    // Predicated region
    $region198: #{classifier_forward.1} parent=1 // pred_check
      _
    $region199: #{classifier_forward.1} parent=1 // pred_check_branch
      %368 = sbr.rel (0) target = $region201
    $region200: #{classifier_forward.1} parent=1 // pred_region
      %369 = dma.done [#allocation36], 1024
    $region201: #{classifier_forward.1} parent=1 // pred_fallthru
      _
    // Predicated region
    $region202: #{classifier_forward.1} parent=1 // pred_check
      _
    $region203: #{classifier_forward.1} parent=1 // pred_check_branch
      %371 = sbr.rel (0) target = $region205
    $region204: #{classifier_forward.1} parent=1 // pred_region
      %372 = dma.done [#allocation36], 16
    $region205: #{classifier_forward.1} parent=1 // pred_fallthru
      _
    %v374 = vlaneseq
    %v375 = vand.u32 %v374, 127
    %vm376 = vcmp.lt.s32.totalorder %v375, 32
    %v377 = vsel %vm376, 1, 0
    %v378 = vcvt.s32.f32 %v377
    %v379 = vld [vmem:[%s0] sm:$0xff]
    %v380 = vld [vmem:[%s0 + $0x8] sm:$0xff]
    %v381 = vpack.c.bf16 %v380, %v379
    %v382 = vld [vmem:[%s2] sm:$0xf]
    %v383 = vld [vmem:[%s2 + $0x4] sm:$0xf]
    %v384 = vld [vmem:[%s2 + $0x8] sm:$0xf]
    %v385 = vld [vmem:[%s2 + $0xc] sm:$0xf]
    %v386 = vld [vmem:[%s2 + $0x10] sm:$0xf]
    %v387 = vld [vmem:[%s2 + $0x14] sm:$0xf]
    %v388 = vld [vmem:[%s2 + $0x18] sm:$0xf]
    %v389 = vld [vmem:[%s2 + $0x1c] sm:$0xf]
    %v390 = vld [vmem:[%s2 + $0x20] sm:$0xf]
    %v391 = vld [vmem:[%s2 + $0x24] sm:$0xf]
    %v392 = vld [vmem:[%s2 + $0x28] sm:$0xf]
    %v393 = vld [vmem:[%s2 + $0x2c] sm:$0xf]
    %v394 = vld [vmem:[%s2 + $0x30] sm:$0xf]
    %v395 = vld [vmem:[%s2 + $0x34] sm:$0xf]
    %v396 = vld [vmem:[%s2 + $0x38] sm:$0xf]
    %v397 = vld [vmem:[%s2 + $0x3c] sm:$0xf]
    %v398 = vld [vmem:[%s3] sm:$0x1]
    %v400 = vlaneseq
    %v401 = vshrl.u32 %v400, 7
    %v402 = vsub.s32 0, %v401
    %v403 = vrot.slane %v398, %v402
    %v421 = vunpack.c.l.b16 %v382
    %v422 = vunpack.c.l.b16 %v383
    %v423 = vunpack.c.l.b16 %v384
    %v424 = vunpack.c.l.b16 %v385
    %v425 = vunpack.c.l.b16 %v386
    %v426 = vunpack.c.l.b16 %v387
    %v427 = vunpack.c.l.b16 %v388
    %v428 = vunpack.c.l.b16 %v389
    %v429 = vunpack.c.l.b16 %v390
    %v430 = vunpack.c.l.b16 %v391
    %v431 = vunpack.c.l.b16 %v392
    %v432 = vunpack.c.l.b16 %v393
    %v433 = vunpack.c.l.b16 %v394
    %v434 = vunpack.c.l.b16 %v395
    %v435 = vunpack.c.l.b16 %v396
    %v436 = vunpack.c.l.b16 %v397
    %v437 = vpack.c.b16 %v422, %v421
    %v438 = vpack.c.b16 %v424, %v423
    %v439 = vpack.c.b16 %v426, %v425
    %v440 = vpack.c.b16 %v428, %v427
    %v441 = vpack.c.b16 %v430, %v429
    %v442 = vpack.c.b16 %v432, %v431
    %v443 = vpack.c.b16 %v434, %v433
    %v444 = vpack.c.b16 %v436, %v435
    %453 = vmatprep.subr.bf16.mxu0 0
    %454 = vmatpush1.bf16.msra.mxu0 %v444
    %455 = vmatprep.subr.bf16.mxu0 0
    %456 = vmatpush1.bf16.msra.mxu0 %v443
    %457 = vmatprep.subr.bf16.mxu0 0
    %458 = vmatpush1.bf16.msra.mxu0 %v442
    %459 = vmatprep.subr.bf16.mxu0 0
    %460 = vmatpush1.bf16.msra.mxu0 %v441
    %461 = vmatprep.subr.bf16.mxu0 0
    %462 = vmatpush1.bf16.msra.mxu0 %v440
    %463 = vmatprep.subr.bf16.mxu0 0
    %464 = vmatpush1.bf16.msra.mxu0 %v439
    %465 = vmatprep.subr.bf16.mxu0 0
    %466 = vmatpush1.bf16.msra.mxu0 %v438
    %467 = vmatprep.subr.bf16.mxu0 0
    %468 = vmatpush1.bf16.msra.mxu0 %v437
    %469 = vmatprep.subr.bf16.mxu0 0
    %470 = vmatpush2.bf16.msra.mxu0 0
    %471 = vmatprep.subr.bf16.mxu0 0
    %472 = vmatpush2.bf16.msra.mxu0 0
    %473 = vmatprep.subr.bf16.mxu0 0
    %474 = vmatpush2.bf16.msra.mxu0 0
    %475 = vmatprep.subr.bf16.mxu0 0
    %476 = vmatpush2.bf16.msra.mxu0 0
    %477 = vmatprep.subr.bf16.mxu0 0
    %478 = vmatpush2.bf16.msra.mxu0 0
    %479 = vmatprep.subr.bf16.mxu0 0
    %480 = vmatpush2.bf16.msra.mxu0 0
    %481 = vmatprep.subr.bf16.mxu0 0
    %482 = vmatpush2.bf16.msra.mxu0 0
    %483 = vmatprep.subr.bf16.mxu0 0
    %484 = vmatpush2.bf16.msra.mxu0 0
    %485 = vmatprep.mubr.bf16.mxu0 0
    %486 = vmatmul.mubr.bf16.gmra.mxu0 %v381
    %v487 = vpop.f32.mrf.mxu0
    %v488 = vadd.f32 %v403, %v487
    %v489 = vpop.f32.mrf.mxu0
    %v490 = vpop.f32.mrf.mxu0
    %v491 = vadd.f32 %v403, %v490
    %v492 = vpop.f32.mrf.mxu0
    %493 = vdwg.mxu0
    %v494 = vld [vmem:[#allocation7] sm:$0xff]
    %v495 = vld [vmem:[#allocation7 + $0x8] sm:$0xff]
    %v496 = vadd.f32 %v488, %v494
    %v497 = vadd.f32 %v491, %v495
    %v498 = vld [vmem:[%s1] sm:$0xff]
    %v499 = vld [vmem:[%s1 + $0x8] sm:$0xff]
    %v500 = vpack.c.bf16 %v499, %v498
    %v501 = vld [vmem:[#allocation2] sm:$0xf]
    %v502 = vld [vmem:[#allocation2 + $0x4] sm:$0xf]
    %v503 = vld [vmem:[#allocation2 + $0x8] sm:$0xf]
    %v504 = vld [vmem:[#allocation2 + $0xc] sm:$0xf]
    %v505 = vld [vmem:[#allocation2 + $0x10] sm:$0xf]
    %v506 = vld [vmem:[#allocation2 + $0x14] sm:$0xf]
    %v507 = vld [vmem:[#allocation2 + $0x18] sm:$0xf]
    %v508 = vld [vmem:[#allocation2 + $0x1c] sm:$0xf]
    %v509 = vld [vmem:[#allocation2 + $0x20] sm:$0xf]
    %v510 = vld [vmem:[#allocation2 + $0x24] sm:$0xf]
    %v511 = vld [vmem:[#allocation2 + $0x28] sm:$0xf]
    %v512 = vld [vmem:[#allocation2 + $0x2c] sm:$0xf]
    %v513 = vld [vmem:[#allocation2 + $0x30] sm:$0xf]
    %v514 = vld [vmem:[#allocation2 + $0x34] sm:$0xf]
    %v515 = vld [vmem:[#allocation2 + $0x38] sm:$0xf]
    %v516 = vld [vmem:[#allocation2 + $0x3c] sm:$0xf]
    %v517 = vld [vmem:[#allocation5] sm:$0x1]
    %v519 = vlaneseq
    %v520 = vshrl.u32 %v519, 7
    %v521 = vsub.s32 0, %v520
    %v522 = vrot.slane %v517, %v521
    %v540 = vunpack.c.l.b16 %v501
    %v541 = vunpack.c.l.b16 %v502
    %v542 = vunpack.c.l.b16 %v503
    %v543 = vunpack.c.l.b16 %v504
    %v544 = vunpack.c.l.b16 %v505
    %v545 = vunpack.c.l.b16 %v506
    %v546 = vunpack.c.l.b16 %v507
    %v547 = vunpack.c.l.b16 %v508
    %v548 = vunpack.c.l.b16 %v509
    %v549 = vunpack.c.l.b16 %v510
    %v550 = vunpack.c.l.b16 %v511
    %v551 = vunpack.c.l.b16 %v512
    %v552 = vunpack.c.l.b16 %v513
    %v553 = vunpack.c.l.b16 %v514
    %v554 = vunpack.c.l.b16 %v515
    %v555 = vunpack.c.l.b16 %v516
    %v556 = vpack.c.b16 %v541, %v540
    %v557 = vpack.c.b16 %v543, %v542
    %v558 = vpack.c.b16 %v545, %v544
    %v559 = vpack.c.b16 %v547, %v546
    %v560 = vpack.c.b16 %v549, %v548
    %v561 = vpack.c.b16 %v551, %v550
    %v562 = vpack.c.b16 %v553, %v552
    %v563 = vpack.c.b16 %v555, %v554
    %572 = vmatprep.subr.bf16.mxu0 0
    %573 = vmatpush1.bf16.msra.mxu0 %v563
    %574 = vmatprep.subr.bf16.mxu0 0
    %575 = vmatpush1.bf16.msra.mxu0 %v562
    %576 = vmatprep.subr.bf16.mxu0 0
    %577 = vmatpush1.bf16.msra.mxu0 %v561
    %578 = vmatprep.subr.bf16.mxu0 0
    %579 = vmatpush1.bf16.msra.mxu0 %v560
    %580 = vmatprep.subr.bf16.mxu0 0
    %581 = vmatpush1.bf16.msra.mxu0 %v559
    %582 = vmatprep.subr.bf16.mxu0 0
    %583 = vmatpush1.bf16.msra.mxu0 %v558
    %584 = vmatprep.subr.bf16.mxu0 0
    %585 = vmatpush1.bf16.msra.mxu0 %v557
    %586 = vmatprep.subr.bf16.mxu0 0
    %587 = vmatpush1.bf16.msra.mxu0 %v556
    %588 = vmatprep.subr.bf16.mxu0 0
    %589 = vmatpush2.bf16.msra.mxu0 0
    %590 = vmatprep.subr.bf16.mxu0 0
    %591 = vmatpush2.bf16.msra.mxu0 0
    %592 = vmatprep.subr.bf16.mxu0 0
    %593 = vmatpush2.bf16.msra.mxu0 0
    %594 = vmatprep.subr.bf16.mxu0 0
    %595 = vmatpush2.bf16.msra.mxu0 0
    %596 = vmatprep.subr.bf16.mxu0 0
    %597 = vmatpush2.bf16.msra.mxu0 0
    %598 = vmatprep.subr.bf16.mxu0 0
    %599 = vmatpush2.bf16.msra.mxu0 0
    %600 = vmatprep.subr.bf16.mxu0 0
    %601 = vmatpush2.bf16.msra.mxu0 0
    %602 = vmatprep.subr.bf16.mxu0 0
    %603 = vmatpush2.bf16.msra.mxu0 0
    %604 = vmatprep.mubr.bf16.mxu0 0
    %605 = vmatmul.mubr.bf16.gmra.mxu0 %v500
    %v606 = vpop.f32.mrf.mxu0
    %v607 = vadd.f32 %v522, %v606
    %v608 = vpop.f32.mrf.mxu0
    %v609 = vpop.f32.mrf.mxu0
    %v610 = vadd.f32 %v522, %v609
    %v611 = vpop.f32.mrf.mxu0
    %612 = vdwg.mxu0
    %v613 = vld [vmem:[#allocation8] sm:$0xff]
    %v614 = vld [vmem:[#allocation8 + $0x8] sm:$0xff]
    %v615 = vadd.f32 %v607, %v613
    %v616 = vadd.f32 %v610, %v614
    %v617 = vld [vmem:[#allocation10] sm:$0x1]
    %v618 = vld [vmem:[#allocation11] sm:$0x1]
    %v619 = vmul.f32 %v496, %v378
    %v620 = vmul.f32 %v497, %v378
    %v621 = vmul.f32 %v615, %v378
    %v622 = vmul.f32 %v616, %v378
    %623 = vadd.xlane.f32.xlu0 %v619
    %v624 = vpop.xlane.xlu0 %623
    %625 = vadd.xlane.f32.xlu0 %v620
    %v626 = vpop.xlane.xlu0 %625
    %627 = vadd.xlane.f32.xlu0 %v621
    %v628 = vpop.xlane.xlu0 %627
    %629 = vadd.xlane.f32.xlu0 %v622
    %v630 = vpop.xlane.xlu0 %629
    %v631 = vmul.f32 %v624, 0.03125
    %v632 = vmul.f32 %v626, 0.03125
    %v633 = vmul.f32 %v628, 0.03125
    %v634 = vmul.f32 %v630, 0.03125
    %v635 = vsub.f32 %v496, %v631
    %v636 = vsub.f32 %v497, %v632
    %v637 = vsub.f32 %v615, %v633
    %v638 = vsub.f32 %v616, %v634
    %v639 = vmul.f32 %v635, %v378
    %v640 = vmul.f32 %v636, %v378
    %v641 = vmul.f32 %v637, %v378
    %v642 = vmul.f32 %v638, %v378
    %v643 = vmul.f32 %v639, %v639
    %v644 = vmul.f32 %v640, %v640
    %v645 = vmul.f32 %v641, %v641
    %v646 = vmul.f32 %v642, %v642
    %647 = vadd.xlane.f32.xlu0 %v643
    %v648 = vpop.xlane.xlu0 %647
    %649 = vadd.xlane.f32.xlu0 %v644
    %v650 = vpop.xlane.xlu0 %649
    %651 = vadd.xlane.f32.xlu0 %v645
    %v652 = vpop.xlane.xlu0 %651
    %653 = vadd.xlane.f32.xlu0 %v646
    %v654 = vpop.xlane.xlu0 %653
    %v655 = vmul.f32 %v648, 0.03125
    %v656 = vmul.f32 %v650, 0.03125
    %v657 = vmul.f32 %v652, 0.03125
    %v658 = vmul.f32 %v654, 0.03125
    %v659 = vadd.f32 %v655, 1e-05
    %v660 = vadd.f32 %v656, 1e-05
    %v661 = vadd.f32 %v657, 1e-05
    %v662 = vadd.f32 %v658, 1e-05
    %v663 = vrsqrt.pop %v659
    %v664 = vrsqrt.pop %v660
    %v665 = vrsqrt.pop %v661
    %v666 = vrsqrt.pop %v662
    %v667 = vmul.f32 %v639, %v663
    %v668 = vmul.f32 %v640, %v664
    %v669 = vmul.f32 %v641, %v665
    %v670 = vmul.f32 %v642, %v666
    %v672 = vlaneseq
    %v673 = vshrl.u32 %v672, 7
    %v674 = vsub.s32 0, %v673
    %v675 = vrot.slane %v617, %v674
    %v677 = vmul.f32 %v667, %v675
    %v678 = vmul.f32 %v668, %v675
    %v679 = vmul.f32 %v669, %v675
    %v680 = vmul.f32 %v670, %v675
    %v682 = vlaneseq
    %v683 = vshrl.u32 %v682, 7
    %v684 = vsub.s32 0, %v683
    %v685 = vrot.slane %v618, %v684
    %v687 = vadd.f32 %v677, %v685
    %v688 = vadd.f32 %v678, %v685
    %v689 = vadd.f32 %v679, %v685
    %v690 = vadd.f32 %v680, %v685
    %v691 = vpack.c.bf16 %v688, %v687
    %v692 = vpack.c.bf16 %v690, %v689
    %v693 = vld [vmem:[#allocation13] sm:$0xff]
    %v694 = vld [vmem:[#allocation13 + $0x8] sm:$0xf]
    %v695 = vld [vmem:[#allocation13 + $0xc] sm:$0xff]
    %v696 = vld [vmem:[#allocation13 + $0x14] sm:$0xf]
    %v697 = vld [vmem:[#allocation13 + $0x18] sm:$0xff]
    %v698 = vld [vmem:[#allocation13 + $0x20] sm:$0xf]
    %v699 = vld [vmem:[#allocation13 + $0x24] sm:$0xff]
    %v700 = vld [vmem:[#allocation13 + $0x2c] sm:$0xf]
    %v701 = vld [vmem:[#allocation13 + $0x30] sm:$0xff]
    %v702 = vld [vmem:[#allocation13 + $0x38] sm:$0xf]
    %v703 = vld [vmem:[#allocation13 + $0x3c] sm:$0xff]
    %v704 = vld [vmem:[#allocation13 + $0x44] sm:$0xf]
    %v705 = vld [vmem:[#allocation13 + $0x48] sm:$0xff]
    %v706 = vld [vmem:[#allocation13 + $0x50] sm:$0xf]
    %v707 = vld [vmem:[#allocation13 + $0x54] sm:$0xff]
    %v708 = vld [vmem:[#allocation13 + $0x5c] sm:$0xf]
    %v709 = vld [vmem:[#allocation13 + $0x60] sm:$0xff]
    %v710 = vld [vmem:[#allocation13 + $0x68] sm:$0xf]
    %v711 = vld [vmem:[#allocation13 + $0x6c] sm:$0xff]
    %v712 = vld [vmem:[#allocation13 + $0x74] sm:$0xf]
    %v713 = vld [vmem:[#allocation13 + $0x78] sm:$0xff]
    %v714 = vld [vmem:[#allocation13 + $0x80] sm:$0xf]
    %v715 = vld [vmem:[#allocation13 + $0x84] sm:$0xff]
    %v716 = vld [vmem:[#allocation13 + $0x8c] sm:$0xf]
    %v717 = vld [vmem:[#allocation13 + $0x90] sm:$0xff]
    %v718 = vld [vmem:[#allocation13 + $0x98] sm:$0xf]
    %v719 = vld [vmem:[#allocation13 + $0x9c] sm:$0xff]
    %v720 = vld [vmem:[#allocation13 + $0xa4] sm:$0xf]
    %v721 = vld [vmem:[#allocation13 + $0xa8] sm:$0xff]
    %v722 = vld [vmem:[#allocation13 + $0xb0] sm:$0xf]
    %v723 = vld [vmem:[#allocation13 + $0xb4] sm:$0xff]
    %v724 = vld [vmem:[#allocation13 + $0xbc] sm:$0xf]
    %v725 = vld [vmem:[#allocation14] sm:$0x7]
    %v727 = vlaneseq
    %v728 = vshrl.u32 %v727, 7
    %v729 = vsub.s32 0, %v728
    %v730 = vrot.slane %v725, %v729
    %v731 = vlaneseq
    %v732 = vshrl.u32 %v731, 7
    %v733 = vsub.s32 1, %v732
    %v734 = vrot.slane %v725, %v733
    %v735 = vlaneseq
    %v736 = vshrl.u32 %v735, 7
    %v737 = vsub.s32 2, %v736
    %v738 = vrot.slane %v725, %v737
    %v774 = vunpack.c.l.b16 %v693
    %v775 = vunpack.c.h.b16 %v693
    %v776 = vunpack.c.l.b16 %v694
    %v777 = vunpack.c.l.b16 %v695
    %v778 = vunpack.c.h.b16 %v695
    %v779 = vunpack.c.l.b16 %v696
    %v780 = vunpack.c.l.b16 %v697
    %v781 = vunpack.c.h.b16 %v697
    %v782 = vunpack.c.l.b16 %v698
    %v783 = vunpack.c.l.b16 %v699
    %v784 = vunpack.c.h.b16 %v699
    %v785 = vunpack.c.l.b16 %v700
    %v786 = vunpack.c.l.b16 %v701
    %v787 = vunpack.c.h.b16 %v701
    %v788 = vunpack.c.l.b16 %v702
    %v789 = vunpack.c.l.b16 %v703
    %v790 = vunpack.c.h.b16 %v703
    %v791 = vunpack.c.l.b16 %v704
    %v792 = vunpack.c.l.b16 %v705
    %v793 = vunpack.c.h.b16 %v705
    %v794 = vunpack.c.l.b16 %v706
    %v795 = vunpack.c.l.b16 %v707
    %v796 = vunpack.c.h.b16 %v707
    %v797 = vunpack.c.l.b16 %v708
    %v798 = vunpack.c.l.b16 %v709
    %v799 = vunpack.c.h.b16 %v709
    %v800 = vunpack.c.l.b16 %v710
    %v801 = vunpack.c.l.b16 %v711
    %v802 = vunpack.c.h.b16 %v711
    %v803 = vunpack.c.l.b16 %v712
    %v804 = vunpack.c.l.b16 %v713
    %v805 = vunpack.c.h.b16 %v713
    %v806 = vunpack.c.l.b16 %v714
    %v807 = vunpack.c.l.b16 %v715
    %v808 = vunpack.c.h.b16 %v715
    %v809 = vunpack.c.l.b16 %v716
    %v810 = vunpack.c.l.b16 %v717
    %v811 = vunpack.c.h.b16 %v717
    %v812 = vunpack.c.l.b16 %v718
    %v813 = vunpack.c.l.b16 %v719
    %v814 = vunpack.c.h.b16 %v719
    %v815 = vunpack.c.l.b16 %v720
    %v816 = vunpack.c.l.b16 %v721
    %v817 = vunpack.c.h.b16 %v721
    %v818 = vunpack.c.l.b16 %v722
    %v819 = vunpack.c.l.b16 %v723
    %v820 = vunpack.c.h.b16 %v723
    %v821 = vunpack.c.l.b16 %v724
    %v822 = vpack.c.b16 %v777, %v774
    %v823 = vpack.c.b16 %v778, %v775
    %v824 = vpack.c.b16 %v779, %v776
    %v825 = vpack.c.b16 %v783, %v780
    %v826 = vpack.c.b16 %v784, %v781
    %v827 = vpack.c.b16 %v785, %v782
    %v828 = vpack.c.b16 %v789, %v786
    %v829 = vpack.c.b16 %v790, %v787
    %v830 = vpack.c.b16 %v791, %v788
    %v831 = vpack.c.b16 %v795, %v792
    %v832 = vpack.c.b16 %v796, %v793
    %v833 = vpack.c.b16 %v797, %v794
    %v834 = vpack.c.b16 %v801, %v798
    %v835 = vpack.c.b16 %v802, %v799
    %v836 = vpack.c.b16 %v803, %v800
    %v837 = vpack.c.b16 %v807, %v804
    %v838 = vpack.c.b16 %v808, %v805
    %v839 = vpack.c.b16 %v809, %v806
    %v840 = vpack.c.b16 %v813, %v810
    %v841 = vpack.c.b16 %v814, %v811
    %v842 = vpack.c.b16 %v815, %v812
    %v843 = vpack.c.b16 %v819, %v816
    %v844 = vpack.c.b16 %v820, %v817
    %v845 = vpack.c.b16 %v821, %v818
    %870 = vmatprep.subr.bf16.mxu0 %v844
    %871 = vmatpush1.bf16.msra.mxu0 %v843
    %872 = vmatprep.subr.bf16.mxu0 %v841
    %873 = vmatpush1.bf16.msra.mxu0 %v840
    %874 = vmatprep.subr.bf16.mxu0 %v838
    %875 = vmatpush1.bf16.msra.mxu0 %v837
    %876 = vmatprep.subr.bf16.mxu0 %v835
    %877 = vmatpush1.bf16.msra.mxu0 %v834
    %878 = vmatprep.subr.bf16.mxu0 %v832
    %879 = vmatpush1.bf16.msra.mxu0 %v831
    %880 = vmatprep.subr.bf16.mxu0 %v829
    %881 = vmatpush1.bf16.msra.mxu0 %v828
    %882 = vmatprep.subr.bf16.mxu0 %v826
    %883 = vmatpush1.bf16.msra.mxu0 %v825
    %884 = vmatprep.subr.bf16.mxu0 %v823
    %885 = vmatpush1.bf16.msra.mxu0 %v822
    %886 = vmatprep.subr.bf16.mxu0 0
    %887 = vmatpush2.bf16.msra.mxu0 0
    %888 = vmatprep.subr.bf16.mxu0 0
    %889 = vmatpush2.bf16.msra.mxu0 0
    %890 = vmatprep.subr.bf16.mxu0 0
    %891 = vmatpush2.bf16.msra.mxu0 0
    %892 = vmatprep.subr.bf16.mxu0 0
    %893 = vmatpush2.bf16.msra.mxu0 0
    %894 = vmatprep.subr.bf16.mxu0 0
    %895 = vmatpush2.bf16.msra.mxu0 0
    %896 = vmatprep.subr.bf16.mxu0 0
    %897 = vmatpush2.bf16.msra.mxu0 0
    %898 = vmatprep.subr.bf16.mxu0 0
    %899 = vmatpush2.bf16.msra.mxu0 0
    %900 = vmatprep.subr.bf16.mxu0 0
    %901 = vmatpush2.bf16.msra.mxu0 0
    %902 = vmatprep.mubr.bf16.mxu0 0
    %903 = vmatmul.mubr.bf16.gmra.mxu0 %v691
    %v904 = vpop.f32.mrf.mxu0
    %v905 = vadd.f32 %v730, %v904
    %v906 = vpop.f32.mrf.mxu0
    %v907 = vadd.f32 %v734, %v906
    %v908 = vpop.f32.mrf.mxu0
    %v909 = vadd.f32 %v730, %v908
    %v910 = vpop.f32.mrf.mxu0
    %v911 = vadd.f32 %v734, %v910
    %912 = vmatprep.mubr.bf16.mxu0 0
    %913 = vmatmul.mubr.bf16.gmra.mxu0 %v692
    %v914 = vpop.f32.mrf.mxu0
    %v915 = vadd.f32 %v730, %v914
    %v916 = vpop.f32.mrf.mxu0
    %v917 = vadd.f32 %v734, %v916
    %v918 = vpop.f32.mrf.mxu0
    %v919 = vadd.f32 %v730, %v918
    %v920 = vpop.f32.mrf.mxu0
    %v921 = vadd.f32 %v734, %v920
    %922 = vdwg.mxu0
    %923 = vmatprep.subr.bf16.mxu0 0
    %924 = vmatpush1.bf16.msra.mxu0 %v845
    %925 = vmatprep.subr.bf16.mxu0 0
    %926 = vmatpush1.bf16.msra.mxu0 %v842
    %927 = vmatprep.subr.bf16.mxu0 0
    %928 = vmatpush1.bf16.msra.mxu0 %v839
    %929 = vmatprep.subr.bf16.mxu0 0
    %930 = vmatpush1.bf16.msra.mxu0 %v836
    %931 = vmatprep.subr.bf16.mxu0 0
    %932 = vmatpush1.bf16.msra.mxu0 %v833
    %933 = vmatprep.subr.bf16.mxu0 0
    %934 = vmatpush1.bf16.msra.mxu0 %v830
    %935 = vmatprep.subr.bf16.mxu0 0
    %936 = vmatpush1.bf16.msra.mxu0 %v827
    %937 = vmatprep.subr.bf16.mxu0 0
    %938 = vmatpush1.bf16.msra.mxu0 %v824
    %939 = vmatprep.subr.bf16.mxu0 0
    %940 = vmatpush2.bf16.msra.mxu0 0
    %941 = vmatprep.subr.bf16.mxu0 0
    %942 = vmatpush2.bf16.msra.mxu0 0
    %943 = vmatprep.subr.bf16.mxu0 0
    %944 = vmatpush2.bf16.msra.mxu0 0
    %945 = vmatprep.subr.bf16.mxu0 0
    %946 = vmatpush2.bf16.msra.mxu0 0
    %947 = vmatprep.subr.bf16.mxu0 0
    %948 = vmatpush2.bf16.msra.mxu0 0
    %949 = vmatprep.subr.bf16.mxu0 0
    %950 = vmatpush2.bf16.msra.mxu0 0
    %951 = vmatprep.subr.bf16.mxu0 0
    %952 = vmatpush2.bf16.msra.mxu0 0
    %953 = vmatprep.subr.bf16.mxu0 0
    %954 = vmatpush2.bf16.msra.mxu0 0
    %955 = vmatprep.mubr.bf16.mxu0 0
    %956 = vmatmul.mubr.bf16.gmra.mxu0 %v691
    %v957 = vpop.f32.mrf.mxu0
    %v958 = vadd.f32 %v738, %v957
    %v959 = vpop.f32.mrf.mxu0
    %v960 = vpop.f32.mrf.mxu0
    %v961 = vadd.f32 %v738, %v960
    %v962 = vpop.f32.mrf.mxu0
    %963 = vmatprep.mubr.bf16.mxu0 0
    %964 = vmatmul.mubr.bf16.gmra.mxu0 %v692
    %v965 = vpop.f32.mrf.mxu0
    %v966 = vadd.f32 %v738, %v965
    %v967 = vpop.f32.mrf.mxu0
    %v968 = vpop.f32.mrf.mxu0
    %v969 = vadd.f32 %v738, %v968
    %v970 = vpop.f32.mrf.mxu0
    %971 = vdwg.mxu0
    %v972 = vpack.c.bf16 %v909, %v905
    %v973 = vpack.c.bf16 %v919, %v915
    %v974 = vld [vmem:[%s22] sm:$0xff]
    %v975 = vld [vmem:[%s22 + $0x8] sm:$0xff]
    %v976 = vld [vmem:[%s22 + $0x10] sm:$0xff]
    %v977 = vld [vmem:[%s22 + $0x18] sm:$0xff]
    %vm978 = vcmp.ge.s32.totalorder %v375, 0
    %vm979 = vcmp.lt.s32.totalorder %v375, 8
    %vm980 = vmand %vm978, %vm979
    %v981 = vsel %vm980, 1, 0
    %v982 = vcvt.s32.f32 %v981
    %v983 = vmul.f32 %v907, %v982
    %v984 = vmul.f32 %v911, %v982
    %v985 = vmul.f32 %v917, %v982
    %v986 = vmul.f32 %v921, %v982
    %v987 = vpack.c.bf16 %v984, %v983
    %v988 = vpack.c.bf16 %v986, %v985
    %v989 = vmul.f32 %v958, %v982
    %v990 = vmul.f32 %v961, %v982
    %v991 = vmul.f32 %v966, %v982
    %v992 = vmul.f32 %v969, %v982
    %v993 = vpack.c.bf16 %v990, %v989
    %v994 = vpack.c.bf16 %v992, %v991
    %995 = vmatprep.subr.bf16.mxu0 0
    %996 = vmatpush1.bf16.xpose.msra.mxu0 0
    %997 = vmatprep.subr.bf16.mxu0 0
    %998 = vmatpush1.bf16.xpose.msra.mxu0 0
    %999 = vmatprep.subr.bf16.mxu0 0
    %1000 = vmatpush1.bf16.xpose.msra.mxu0 0
    %1001 = vmatprep.subr.bf16.mxu0 0
    %1002 = vmatpush1.bf16.xpose.msra.mxu0 0
    %1003 = vmatprep.subr.bf16.mxu0 0
    %1004 = vmatpush1.bf16.xpose.msra.mxu0 0
    %1005 = vmatprep.subr.bf16.mxu0 0
    %1006 = vmatpush1.bf16.xpose.msra.mxu0 0
    %1007 = vmatprep.subr.bf16.mxu0 0
    %1008 = vmatpush1.bf16.xpose.msra.mxu0 %v988
    %1009 = vmatprep.subr.bf16.mxu0 0
    %1010 = vmatpush1.bf16.xpose.msra.mxu0 %v987
    %1011 = vmatprep.subr.bf16.mxu0 0
    %1012 = vmatpush2.bf16.xpose.msra.mxu0 0
    %1013 = vmatprep.subr.bf16.mxu0 0
    %1014 = vmatpush2.bf16.xpose.msra.mxu0 0
    %1015 = vmatprep.subr.bf16.mxu0 0
    %1016 = vmatpush2.bf16.xpose.msra.mxu0 0
    %1017 = vmatprep.subr.bf16.mxu0 0
    %1018 = vmatpush2.bf16.xpose.msra.mxu0 0
    %1019 = vmatprep.subr.bf16.mxu0 0
    %1020 = vmatpush2.bf16.xpose.msra.mxu0 0
    %1021 = vmatprep.subr.bf16.mxu0 0
    %1022 = vmatpush2.bf16.xpose.msra.mxu0 0
    %1023 = vmatprep.subr.bf16.mxu0 0
    %1024 = vmatpush2.bf16.xpose.msra.mxu0 0
    %1025 = vmatprep.subr.bf16.mxu0 0
    %1026 = vmatpush2.bf16.xpose.msra.mxu0 0
    %1027 = vmatprep.mubr.bf16.mxu0 0
    %1028 = vmatmul.mubr.bf16.gmra.mxu0 %v972
    %v1029 = vpop.f32.mrf.mxu0
    %v1030 = vadd.f32 0.0, %v1029
    %v1031 = vpop.f32.mrf.mxu0
    %v1032 = vpop.f32.mrf.mxu0
    %v1033 = vadd.f32 0.0, %v1032
    %v1034 = vpop.f32.mrf.mxu0
    %1035 = vmatprep.mubr.bf16.mxu0 0
    %1036 = vmatmul.mubr.bf16.gmra.mxu0 %v973
    %v1037 = vpop.f32.mrf.mxu0
    %v1038 = vadd.f32 0.0, %v1037
    %v1039 = vpop.f32.mrf.mxu0
    %v1040 = vpop.f32.mrf.mxu0
    %v1041 = vadd.f32 0.0, %v1040
    %v1042 = vpop.f32.mrf.mxu0
    %1043 = vdwg.mxu0
    %v1044 = vmul.f32 %v1030, 0.35355338
    %v1045 = vmul.f32 %v1033, 0.35355338
    %v1046 = vmul.f32 %v1038, 0.35355338
    %v1047 = vmul.f32 %v1041, 0.35355338
    %v1048 = vadd.f32 %v1044, %v974
    %v1049 = vadd.f32 %v1045, %v975
    %v1050 = vadd.f32 %v1046, %v976
    %v1051 = vadd.f32 %v1047, %v977
    %vm1052 = vcmask 261120
    %v1053 = vsel %vm1052, %v1048, -inf
    %1054 = vmax.xlane.f32.xlu0 %v1053
    %v1055 = vpop.xlane.xlu0 %1054
    %v1056 = vsel %vm1052, %v1049, -inf
    %1057 = vmax.xlane.f32.xlu0 %v1056
    %v1058 = vpop.xlane.xlu0 %1057
    %v1059 = vsel %vm1052, %v1050, -inf
    %1060 = vmax.xlane.f32.xlu0 %v1059
    %v1061 = vpop.xlane.xlu0 %1060
    %v1062 = vsel %vm1052, %v1051, -inf
    %1063 = vmax.xlane.f32.xlu0 %v1062
    %v1064 = vpop.xlane.xlu0 %1063
    %v1065 = vsub.f32 %v1048, %v1055
    %v1066 = vsub.f32 %v1049, %v1058
    %v1067 = vsub.f32 %v1050, %v1061
    %v1068 = vsub.f32 %v1051, %v1064
    %v1069 = vmul.f32 %v1065, 1.442695
    %v1070 = vpow.pop %v1069
    %v1071 = vmul.f32 %v1066, 1.442695
    %v1072 = vpow.pop %v1071
    %v1073 = vmul.f32 %v1067, 1.442695
    %v1074 = vpow.pop %v1073
    %v1075 = vmul.f32 %v1068, 1.442695
    %v1076 = vpow.pop %v1075
    %v1077 = vsel %vm1052, %v1070, 0.0
    %1078 = vadd.xlane.f32.xlu0 %v1077
    %v1079 = vpop.xlane.xlu0 %1078
    %v1080 = vsel %vm1052, %v1072, 0.0
    %1081 = vadd.xlane.f32.xlu0 %v1080
    %v1082 = vpop.xlane.xlu0 %1081
    %v1083 = vsel %vm1052, %v1074, 0.0
    %1084 = vadd.xlane.f32.xlu0 %v1083
    %v1085 = vpop.xlane.xlu0 %1084
    %v1086 = vsel %vm1052, %v1076, 0.0
    %1087 = vadd.xlane.f32.xlu0 %v1086
    %v1088 = vpop.xlane.xlu0 %1087
    %v1089 = vrcp.pop %v1079
    %v1090 = vrcp.pop %v1082
    %v1091 = vrcp.pop %v1085
    %v1092 = vrcp.pop %v1088
    %v1093 = vmul.f32 %v1070, %v1089
    %v1094 = vmul.f32 %v1072, %v1090
    %v1095 = vmul.f32 %v1074, %v1091
    %v1096 = vmul.f32 %v1076, %v1092
    %v1097 = vpack.c.bf16 %v1094, %v1093
    %v1098 = vpack.c.bf16 %v1096, %v1095
    %vm1099 = vcmp.ge.s32.totalorder %v375, 8
    %vm1100 = vcmp.lt.s32.totalorder %v375, 16
    %vm1101 = vmand %vm1099, %vm1100
    %v1102 = vsel %vm1101, 1, 0
    %v1103 = vcvt.s32.f32 %v1102
    %v1104 = vmul.f32 %v907, %v1103
    %v1105 = vmul.f32 %v911, %v1103
    %v1106 = vmul.f32 %v917, %v1103
    %v1107 = vmul.f32 %v921, %v1103
    %v1108 = vpack.c.bf16 %v1105, %v1104
    %v1109 = vpack.c.bf16 %v1107, %v1106
    %v1110 = vmul.f32 %v958, %v1103
    %v1111 = vmul.f32 %v961, %v1103
    %v1112 = vmul.f32 %v966, %v1103
    %v1113 = vmul.f32 %v969, %v1103
    %v1114 = vpack.c.bf16 %v1111, %v1110
    %v1115 = vpack.c.bf16 %v1113, %v1112
    %1116 = vmatprep.subr.bf16.mxu0 0
    %1117 = vmatpush1.bf16.xpose.msra.mxu0 0
    %1118 = vmatprep.subr.bf16.mxu0 0
    %1119 = vmatpush1.bf16.xpose.msra.mxu0 0
    %1120 = vmatprep.subr.bf16.mxu0 0
    %1121 = vmatpush1.bf16.xpose.msra.mxu0 0
    %1122 = vmatprep.subr.bf16.mxu0 0
    %1123 = vmatpush1.bf16.xpose.msra.mxu0 0
    %1124 = vmatprep.subr.bf16.mxu0 0
    %1125 = vmatpush1.bf16.xpose.msra.mxu0 0
    %1126 = vmatprep.subr.bf16.mxu0 0
    %1127 = vmatpush1.bf16.xpose.msra.mxu0 0
    %1128 = vmatprep.subr.bf16.mxu0 0
    %1129 = vmatpush1.bf16.xpose.msra.mxu0 %v1109
    %1130 = vmatprep.subr.bf16.mxu0 0
    %1131 = vmatpush1.bf16.xpose.msra.mxu0 %v1108
    %1132 = vmatprep.subr.bf16.mxu0 0
    %1133 = vmatpush2.bf16.xpose.msra.mxu0 0
    %1134 = vmatprep.subr.bf16.mxu0 0
    %1135 = vmatpush2.bf16.xpose.msra.mxu0 0
    %1136 = vmatprep.subr.bf16.mxu0 0
    %1137 = vmatpush2.bf16.xpose.msra.mxu0 0
    %1138 = vmatprep.subr.bf16.mxu0 0
    %1139 = vmatpush2.bf16.xpose.msra.mxu0 0
    %1140 = vmatprep.subr.bf16.mxu0 0
    %1141 = vmatpush2.bf16.xpose.msra.mxu0 0
    %1142 = vmatprep.subr.bf16.mxu0 0
    %1143 = vmatpush2.bf16.xpose.msra.mxu0 0
    %1144 = vmatprep.subr.bf16.mxu0 0
    %1145 = vmatpush2.bf16.xpose.msra.mxu0 0
    %1146 = vmatprep.subr.bf16.mxu0 0
    %1147 = vmatpush2.bf16.xpose.msra.mxu0 0
    %1148 = vmatprep.mubr.bf16.mxu0 0
    %1149 = vmatmul.mubr.bf16.gmra.mxu0 %v972
    %v1150 = vpop.f32.mrf.mxu0
    %v1151 = vadd.f32 0.0, %v1150
    %v1152 = vpop.f32.mrf.mxu0
    %v1153 = vpop.f32.mrf.mxu0
    %v1154 = vadd.f32 0.0, %v1153
    %v1155 = vpop.f32.mrf.mxu0
    %1156 = vmatprep.mubr.bf16.mxu0 0
    %1157 = vmatmul.mubr.bf16.gmra.mxu0 %v973
    %v1158 = vpop.f32.mrf.mxu0
    %v1159 = vadd.f32 0.0, %v1158
    %v1160 = vpop.f32.mrf.mxu0
    %v1161 = vpop.f32.mrf.mxu0
    %v1162 = vadd.f32 0.0, %v1161
    %v1163 = vpop.f32.mrf.mxu0
    %1164 = vdwg.mxu0
    %v1165 = vmul.f32 %v1151, 0.35355338
    %v1166 = vmul.f32 %v1154, 0.35355338
    %v1167 = vmul.f32 %v1159, 0.35355338
    %v1168 = vmul.f32 %v1162, 0.35355338
    %v1169 = vadd.f32 %v1165, %v974
    %v1170 = vadd.f32 %v1166, %v975
    %v1171 = vadd.f32 %v1167, %v976
    %v1172 = vadd.f32 %v1168, %v977
    %v1173 = vsel %vm1052, %v1169, -inf
    %1174 = vmax.xlane.f32.xlu0 %v1173
    %v1175 = vpop.xlane.xlu0 %1174
    %v1176 = vsel %vm1052, %v1170, -inf
    %1177 = vmax.xlane.f32.xlu0 %v1176
    %v1178 = vpop.xlane.xlu0 %1177
    %v1179 = vsel %vm1052, %v1171, -inf
    %1180 = vmax.xlane.f32.xlu0 %v1179
    %v1181 = vpop.xlane.xlu0 %1180
    %v1182 = vsel %vm1052, %v1172, -inf
    %1183 = vmax.xlane.f32.xlu0 %v1182
    %v1184 = vpop.xlane.xlu0 %1183
    %v1185 = vsub.f32 %v1169, %v1175
    %v1186 = vsub.f32 %v1170, %v1178
    %v1187 = vsub.f32 %v1171, %v1181
    %v1188 = vsub.f32 %v1172, %v1184
    %v1189 = vmul.f32 %v1185, 1.442695
    %v1190 = vpow.pop %v1189
    %v1191 = vmul.f32 %v1186, 1.442695
    %v1192 = vpow.pop %v1191
    %v1193 = vmul.f32 %v1187, 1.442695
    %v1194 = vpow.pop %v1193
    %v1195 = vmul.f32 %v1188, 1.442695
    %v1196 = vpow.pop %v1195
    %v1197 = vsel %vm1052, %v1190, 0.0
    %1198 = vadd.xlane.f32.xlu0 %v1197
    %v1199 = vpop.xlane.xlu0 %1198
    %v1200 = vsel %vm1052, %v1192, 0.0
    %1201 = vadd.xlane.f32.xlu0 %v1200
    %v1202 = vpop.xlane.xlu0 %1201
    %v1203 = vsel %vm1052, %v1194, 0.0
    %1204 = vadd.xlane.f32.xlu0 %v1203
    %v1205 = vpop.xlane.xlu0 %1204
    %v1206 = vsel %vm1052, %v1196, 0.0
    %1207 = vadd.xlane.f32.xlu0 %v1206
    %v1208 = vpop.xlane.xlu0 %1207
    %v1209 = vrcp.pop %v1199
    %v1210 = vrcp.pop %v1202
    %v1211 = vrcp.pop %v1205
    %v1212 = vrcp.pop %v1208
    %v1213 = vmul.f32 %v1190, %v1209
    %v1214 = vmul.f32 %v1192, %v1210
    %v1215 = vmul.f32 %v1194, %v1211
    %v1216 = vmul.f32 %v1196, %v1212
    %v1217 = vpack.c.bf16 %v1214, %v1213
    %v1218 = vpack.c.bf16 %v1216, %v1215
    %v1220 = vsel %vm1052, %v1217, 0
    %v1223 = vsel %vm1052, %v1218, 0
    %1225 = vmatprep.subr.bf16.mxu0 0
    %1226 = vmatpush1.bf16.msra.mxu0 0
    %1227 = vmatprep.subr.bf16.mxu0 0
    %1228 = vmatpush1.bf16.msra.mxu0 0
    %1229 = vmatprep.subr.bf16.mxu0 0
    %1230 = vmatpush1.bf16.msra.mxu0 0
    %1231 = vmatprep.subr.bf16.mxu0 0
    %1232 = vmatpush1.bf16.msra.mxu0 0
    %1233 = vmatprep.subr.bf16.mxu0 0
    %1234 = vmatpush1.bf16.msra.mxu0 0
    %1235 = vmatprep.subr.bf16.mxu0 0
    %1236 = vmatpush1.bf16.msra.mxu0 0
    %1237 = vmatprep.subr.bf16.mxu0 0
    %1238 = vmatpush1.bf16.msra.mxu0 %v1115
    %1239 = vmatprep.subr.bf16.mxu0 0
    %1240 = vmatpush1.bf16.msra.mxu0 %v1114
    %1241 = vmatprep.subr.bf16.mxu0 0
    %1242 = vmatpush2.bf16.msra.mxu0 0
    %1243 = vmatprep.subr.bf16.mxu0 0
    %1244 = vmatpush2.bf16.msra.mxu0 0
    %1245 = vmatprep.subr.bf16.mxu0 0
    %1246 = vmatpush2.bf16.msra.mxu0 0
    %1247 = vmatprep.subr.bf16.mxu0 0
    %1248 = vmatpush2.bf16.msra.mxu0 0
    %1249 = vmatprep.subr.bf16.mxu0 0
    %1250 = vmatpush2.bf16.msra.mxu0 0
    %1251 = vmatprep.subr.bf16.mxu0 0
    %1252 = vmatpush2.bf16.msra.mxu0 0
    %1253 = vmatprep.subr.bf16.mxu0 0
    %1254 = vmatpush2.bf16.msra.mxu0 0
    %1255 = vmatprep.subr.bf16.mxu0 0
    %1256 = vmatpush2.bf16.msra.mxu0 0
    %1257 = vmatprep.mubr.bf16.mxu0 0
    %1258 = vmatmul.mubr.bf16.gmra.mxu0 %v1220
    %v1259 = vpop.f32.mrf.mxu0
    %v1260 = vadd.f32 0.0, %v1259
    %v1261 = vpop.f32.mrf.mxu0
    %v1262 = vpop.f32.mrf.mxu0
    %v1263 = vadd.f32 0.0, %v1262
    %v1264 = vpop.f32.mrf.mxu0
    %1265 = vmatprep.mubr.bf16.mxu0 0
    %1266 = vmatmul.mubr.bf16.gmra.mxu0 %v1223
    %v1267 = vpop.f32.mrf.mxu0
    %v1268 = vadd.f32 0.0, %v1267
    %v1269 = vpop.f32.mrf.mxu0
    %v1270 = vpop.f32.mrf.mxu0
    %v1271 = vadd.f32 0.0, %v1270
    %v1272 = vpop.f32.mrf.mxu0
    %1273 = vdwg.mxu0
    %v1275 = vsel %vm1052, %v1097, 0
    %v1278 = vsel %vm1052, %v1098, 0
    %1280 = vmatprep.subr.bf16.mxu0 0
    %1281 = vmatpush1.bf16.msra.mxu0 0
    %1282 = vmatprep.subr.bf16.mxu0 0
    %1283 = vmatpush1.bf16.msra.mxu0 0
    %1284 = vmatprep.subr.bf16.mxu0 0
    %1285 = vmatpush1.bf16.msra.mxu0 0
    %1286 = vmatprep.subr.bf16.mxu0 0
    %1287 = vmatpush1.bf16.msra.mxu0 0
    %1288 = vmatprep.subr.bf16.mxu0 0
    %1289 = vmatpush1.bf16.msra.mxu0 0
    %1290 = vmatprep.subr.bf16.mxu0 0
    %1291 = vmatpush1.bf16.msra.mxu0 0
    %1292 = vmatprep.subr.bf16.mxu0 0
    %1293 = vmatpush1.bf16.msra.mxu0 %v994
    %1294 = vmatprep.subr.bf16.mxu0 0
    %1295 = vmatpush1.bf16.msra.mxu0 %v993
    %1296 = vmatprep.subr.bf16.mxu0 0
    %1297 = vmatpush2.bf16.msra.mxu0 0
    %1298 = vmatprep.subr.bf16.mxu0 0
    %1299 = vmatpush2.bf16.msra.mxu0 0
    %1300 = vmatprep.subr.bf16.mxu0 0
    %1301 = vmatpush2.bf16.msra.mxu0 0
    %1302 = vmatprep.subr.bf16.mxu0 0
    %1303 = vmatpush2.bf16.msra.mxu0 0
    %1304 = vmatprep.subr.bf16.mxu0 0
    %1305 = vmatpush2.bf16.msra.mxu0 0
    %1306 = vmatprep.subr.bf16.mxu0 0
    %1307 = vmatpush2.bf16.msra.mxu0 0
    %1308 = vmatprep.subr.bf16.mxu0 0
    %1309 = vmatpush2.bf16.msra.mxu0 0
    %1310 = vmatprep.subr.bf16.mxu0 0
    %1311 = vmatpush2.bf16.msra.mxu0 0
    %1312 = vmatprep.mubr.bf16.mxu0 0
    %1313 = vmatmul.mubr.bf16.gmra.mxu0 %v1275
    %v1314 = vpop.f32.mrf.mxu0
    %v1315 = vadd.f32 %v1260, %v1314
    %v1316 = vpop.f32.mrf.mxu0
    %v1317 = vpop.f32.mrf.mxu0
    %v1318 = vadd.f32 %v1263, %v1317
    %v1319 = vpop.f32.mrf.mxu0
    %1320 = vmatprep.mubr.bf16.mxu0 0
    %1321 = vmatmul.mubr.bf16.gmra.mxu0 %v1278
    %v1322 = vpop.f32.mrf.mxu0
    %v1323 = vadd.f32 %v1268, %v1322
    %v1324 = vpop.f32.mrf.mxu0
    %v1325 = vpop.f32.mrf.mxu0
    %v1326 = vadd.f32 %v1271, %v1325
    %v1327 = vpop.f32.mrf.mxu0
    %1328 = vdwg.mxu0
    %vm1329 = vcmp.ge.s32.totalorder %v375, 16
    %vm1330 = vcmp.lt.s32.totalorder %v375, 24
    %vm1331 = vmand %vm1329, %vm1330
    %v1332 = vsel %vm1331, 1, 0
    %v1333 = vcvt.s32.f32 %v1332
    %v1334 = vmul.f32 %v907, %v1333
    %v1335 = vmul.f32 %v911, %v1333
    %v1336 = vmul.f32 %v917, %v1333
    %v1337 = vmul.f32 %v921, %v1333
    %v1338 = vpack.c.bf16 %v1335, %v1334
    %v1339 = vpack.c.bf16 %v1337, %v1336
    %v1340 = vmul.f32 %v958, %v1333
    %v1341 = vmul.f32 %v961, %v1333
    %v1342 = vmul.f32 %v966, %v1333
    %v1343 = vmul.f32 %v969, %v1333
    %v1344 = vpack.c.bf16 %v1341, %v1340
    %v1345 = vpack.c.bf16 %v1343, %v1342
    %1346 = vmatprep.subr.bf16.mxu0 0
    %1347 = vmatpush1.bf16.xpose.msra.mxu0 0
    %1348 = vmatprep.subr.bf16.mxu0 0
    %1349 = vmatpush1.bf16.xpose.msra.mxu0 0
    %1350 = vmatprep.subr.bf16.mxu0 0
    %1351 = vmatpush1.bf16.xpose.msra.mxu0 0
    %1352 = vmatprep.subr.bf16.mxu0 0
    %1353 = vmatpush1.bf16.xpose.msra.mxu0 0
    %1354 = vmatprep.subr.bf16.mxu0 0
    %1355 = vmatpush1.bf16.xpose.msra.mxu0 0
    %1356 = vmatprep.subr.bf16.mxu0 0
    %1357 = vmatpush1.bf16.xpose.msra.mxu0 0
    %1358 = vmatprep.subr.bf16.mxu0 0
    %1359 = vmatpush1.bf16.xpose.msra.mxu0 %v1339
    %1360 = vmatprep.subr.bf16.mxu0 0
    %1361 = vmatpush1.bf16.xpose.msra.mxu0 %v1338
    %1362 = vmatprep.subr.bf16.mxu0 0
    %1363 = vmatpush2.bf16.xpose.msra.mxu0 0
    %1364 = vmatprep.subr.bf16.mxu0 0
    %1365 = vmatpush2.bf16.xpose.msra.mxu0 0
    %1366 = vmatprep.subr.bf16.mxu0 0
    %1367 = vmatpush2.bf16.xpose.msra.mxu0 0
    %1368 = vmatprep.subr.bf16.mxu0 0
    %1369 = vmatpush2.bf16.xpose.msra.mxu0 0
    %1370 = vmatprep.subr.bf16.mxu0 0
    %1371 = vmatpush2.bf16.xpose.msra.mxu0 0
    %1372 = vmatprep.subr.bf16.mxu0 0
    %1373 = vmatpush2.bf16.xpose.msra.mxu0 0
    %1374 = vmatprep.subr.bf16.mxu0 0
    %1375 = vmatpush2.bf16.xpose.msra.mxu0 0
    %1376 = vmatprep.subr.bf16.mxu0 0
    %1377 = vmatpush2.bf16.xpose.msra.mxu0 0
    %1378 = vmatprep.mubr.bf16.mxu0 0
    %1379 = vmatmul.mubr.bf16.gmra.mxu0 %v972
    %v1380 = vpop.f32.mrf.mxu0
    %v1381 = vadd.f32 0.0, %v1380
    %v1382 = vpop.f32.mrf.mxu0
    %v1383 = vpop.f32.mrf.mxu0
    %v1384 = vadd.f32 0.0, %v1383
    %v1385 = vpop.f32.mrf.mxu0
    %1386 = vmatprep.mubr.bf16.mxu0 0
    %1387 = vmatmul.mubr.bf16.gmra.mxu0 %v973
    %v1388 = vpop.f32.mrf.mxu0
    %v1389 = vadd.f32 0.0, %v1388
    %v1390 = vpop.f32.mrf.mxu0
    %v1391 = vpop.f32.mrf.mxu0
    %v1392 = vadd.f32 0.0, %v1391
    %v1393 = vpop.f32.mrf.mxu0
    %1394 = vdwg.mxu0
    %v1395 = vmul.f32 %v1381, 0.35355338
    %v1396 = vmul.f32 %v1384, 0.35355338
    %v1397 = vmul.f32 %v1389, 0.35355338
    %v1398 = vmul.f32 %v1392, 0.35355338
    %v1399 = vadd.f32 %v1395, %v974
    %v1400 = vadd.f32 %v1396, %v975
    %v1401 = vadd.f32 %v1397, %v976
    %v1402 = vadd.f32 %v1398, %v977
    %v1403 = vsel %vm1052, %v1399, -inf
    %1404 = vmax.xlane.f32.xlu0 %v1403
    %v1405 = vpop.xlane.xlu0 %1404
    %v1406 = vsel %vm1052, %v1400, -inf
    %1407 = vmax.xlane.f32.xlu0 %v1406
    %v1408 = vpop.xlane.xlu0 %1407
    %v1409 = vsel %vm1052, %v1401, -inf
    %1410 = vmax.xlane.f32.xlu0 %v1409
    %v1411 = vpop.xlane.xlu0 %1410
    %v1412 = vsel %vm1052, %v1402, -inf
    %1413 = vmax.xlane.f32.xlu0 %v1412
    %v1414 = vpop.xlane.xlu0 %1413
    %v1415 = vsub.f32 %v1399, %v1405
    %v1416 = vsub.f32 %v1400, %v1408
    %v1417 = vsub.f32 %v1401, %v1411
    %v1418 = vsub.f32 %v1402, %v1414
    %v1419 = vmul.f32 %v1415, 1.442695
    %v1420 = vpow.pop %v1419
    %v1421 = vmul.f32 %v1416, 1.442695
    %v1422 = vpow.pop %v1421
    %v1423 = vmul.f32 %v1417, 1.442695
    %v1424 = vpow.pop %v1423
    %v1425 = vmul.f32 %v1418, 1.442695
    %v1426 = vpow.pop %v1425
    %v1427 = vsel %vm1052, %v1420, 0.0
    %1428 = vadd.xlane.f32.xlu0 %v1427
    %v1429 = vpop.xlane.xlu0 %1428
    %v1430 = vsel %vm1052, %v1422, 0.0
    %1431 = vadd.xlane.f32.xlu0 %v1430
    %v1432 = vpop.xlane.xlu0 %1431
    %v1433 = vsel %vm1052, %v1424, 0.0
    %1434 = vadd.xlane.f32.xlu0 %v1433
    %v1435 = vpop.xlane.xlu0 %1434
    %v1436 = vsel %vm1052, %v1426, 0.0
    %1437 = vadd.xlane.f32.xlu0 %v1436
    %v1438 = vpop.xlane.xlu0 %1437
    %v1439 = vrcp.pop %v1429
    %v1440 = vrcp.pop %v1432
    %v1441 = vrcp.pop %v1435
    %v1442 = vrcp.pop %v1438
    %v1443 = vmul.f32 %v1420, %v1439
    %v1444 = vmul.f32 %v1422, %v1440
    %v1445 = vmul.f32 %v1424, %v1441
    %v1446 = vmul.f32 %v1426, %v1442
    %v1447 = vpack.c.bf16 %v1444, %v1443
    %v1448 = vpack.c.bf16 %v1446, %v1445
    %v1450 = vsel %vm1052, %v1447, 0
    %v1453 = vsel %vm1052, %v1448, 0
    %1455 = vmatprep.subr.bf16.mxu0 0
    %1456 = vmatpush1.bf16.msra.mxu0 0
    %1457 = vmatprep.subr.bf16.mxu0 0
    %1458 = vmatpush1.bf16.msra.mxu0 0
    %1459 = vmatprep.subr.bf16.mxu0 0
    %1460 = vmatpush1.bf16.msra.mxu0 0
    %1461 = vmatprep.subr.bf16.mxu0 0
    %1462 = vmatpush1.bf16.msra.mxu0 0
    %1463 = vmatprep.subr.bf16.mxu0 0
    %1464 = vmatpush1.bf16.msra.mxu0 0
    %1465 = vmatprep.subr.bf16.mxu0 0
    %1466 = vmatpush1.bf16.msra.mxu0 0
    %1467 = vmatprep.subr.bf16.mxu0 0
    %1468 = vmatpush1.bf16.msra.mxu0 %v1345
    %1469 = vmatprep.subr.bf16.mxu0 0
    %1470 = vmatpush1.bf16.msra.mxu0 %v1344
    %1471 = vmatprep.subr.bf16.mxu0 0
    %1472 = vmatpush2.bf16.msra.mxu0 0
    %1473 = vmatprep.subr.bf16.mxu0 0
    %1474 = vmatpush2.bf16.msra.mxu0 0
    %1475 = vmatprep.subr.bf16.mxu0 0
    %1476 = vmatpush2.bf16.msra.mxu0 0
    %1477 = vmatprep.subr.bf16.mxu0 0
    %1478 = vmatpush2.bf16.msra.mxu0 0
    %1479 = vmatprep.subr.bf16.mxu0 0
    %1480 = vmatpush2.bf16.msra.mxu0 0
    %1481 = vmatprep.subr.bf16.mxu0 0
    %1482 = vmatpush2.bf16.msra.mxu0 0
    %1483 = vmatprep.subr.bf16.mxu0 0
    %1484 = vmatpush2.bf16.msra.mxu0 0
    %1485 = vmatprep.subr.bf16.mxu0 0
    %1486 = vmatpush2.bf16.msra.mxu0 0
    %1487 = vmatprep.mubr.bf16.mxu0 0
    %1488 = vmatmul.mubr.bf16.gmra.mxu0 %v1450
    %v1489 = vpop.f32.mrf.mxu0
    %v1490 = vadd.f32 0.0, %v1489
    %v1491 = vpop.f32.mrf.mxu0
    %v1492 = vpop.f32.mrf.mxu0
    %v1493 = vadd.f32 0.0, %v1492
    %v1494 = vpop.f32.mrf.mxu0
    %1495 = vmatprep.mubr.bf16.mxu0 0
    %1496 = vmatmul.mubr.bf16.gmra.mxu0 %v1453
    %v1497 = vpop.f32.mrf.mxu0
    %v1498 = vadd.f32 0.0, %v1497
    %v1499 = vpop.f32.mrf.mxu0
    %v1500 = vpop.f32.mrf.mxu0
    %v1501 = vadd.f32 0.0, %v1500
    %v1502 = vpop.f32.mrf.mxu0
    %1503 = vdwg.mxu0
    %v1504 = vadd.f32 %v1315, %v1490
    %v1505 = vadd.f32 %v1318, %v1493
    %v1506 = vadd.f32 %v1323, %v1498
    %v1507 = vadd.f32 %v1326, %v1501
    %vm1508 = vcmp.ge.s32.totalorder %v375, 24
    %vm1509 = vmand %vm1508, %vm376
    %v1510 = vsel %vm1509, 1, 0
    %v1511 = vcvt.s32.f32 %v1510
    %v1512 = vmul.f32 %v907, %v1511
    %v1513 = vmul.f32 %v911, %v1511
    %v1514 = vmul.f32 %v917, %v1511
    %v1515 = vmul.f32 %v921, %v1511
    %v1516 = vpack.c.bf16 %v1513, %v1512
    %v1517 = vpack.c.bf16 %v1515, %v1514
    %v1518 = vmul.f32 %v958, %v1511
    %v1519 = vmul.f32 %v961, %v1511
    %v1520 = vmul.f32 %v966, %v1511
    %v1521 = vmul.f32 %v969, %v1511
    %v1522 = vpack.c.bf16 %v1519, %v1518
    %v1523 = vpack.c.bf16 %v1521, %v1520
    %1524 = vmatprep.subr.bf16.mxu0 0
    %1525 = vmatpush1.bf16.xpose.msra.mxu0 0
    %1526 = vmatprep.subr.bf16.mxu0 0
    %1527 = vmatpush1.bf16.xpose.msra.mxu0 0
    %1528 = vmatprep.subr.bf16.mxu0 0
    %1529 = vmatpush1.bf16.xpose.msra.mxu0 0
    %1530 = vmatprep.subr.bf16.mxu0 0
    %1531 = vmatpush1.bf16.xpose.msra.mxu0 0
    %1532 = vmatprep.subr.bf16.mxu0 0
    %1533 = vmatpush1.bf16.xpose.msra.mxu0 0
    %1534 = vmatprep.subr.bf16.mxu0 0
    %1535 = vmatpush1.bf16.xpose.msra.mxu0 0
    %1536 = vmatprep.subr.bf16.mxu0 0
    %1537 = vmatpush1.bf16.xpose.msra.mxu0 %v1517
    %1538 = vmatprep.subr.bf16.mxu0 0
    %1539 = vmatpush1.bf16.xpose.msra.mxu0 %v1516
    %1540 = vmatprep.subr.bf16.mxu0 0
    %1541 = vmatpush2.bf16.xpose.msra.mxu0 0
    %1542 = vmatprep.subr.bf16.mxu0 0
    %1543 = vmatpush2.bf16.xpose.msra.mxu0 0
    %1544 = vmatprep.subr.bf16.mxu0 0
    %1545 = vmatpush2.bf16.xpose.msra.mxu0 0
    %1546 = vmatprep.subr.bf16.mxu0 0
    %1547 = vmatpush2.bf16.xpose.msra.mxu0 0
    %1548 = vmatprep.subr.bf16.mxu0 0
    %1549 = vmatpush2.bf16.xpose.msra.mxu0 0
    %1550 = vmatprep.subr.bf16.mxu0 0
    %1551 = vmatpush2.bf16.xpose.msra.mxu0 0
    %1552 = vmatprep.subr.bf16.mxu0 0
    %1553 = vmatpush2.bf16.xpose.msra.mxu0 0
    %1554 = vmatprep.subr.bf16.mxu0 0
    %1555 = vmatpush2.bf16.xpose.msra.mxu0 0
    %1556 = vmatprep.mubr.bf16.mxu0 0
    %1557 = vmatmul.mubr.bf16.gmra.mxu0 %v972
    %v1558 = vpop.f32.mrf.mxu0
    %v1559 = vadd.f32 0.0, %v1558
    %v1560 = vpop.f32.mrf.mxu0
    %v1561 = vpop.f32.mrf.mxu0
    %v1562 = vadd.f32 0.0, %v1561
    %v1563 = vpop.f32.mrf.mxu0
    %1564 = vmatprep.mubr.bf16.mxu0 0
    %1565 = vmatmul.mubr.bf16.gmra.mxu0 %v973
    %v1566 = vpop.f32.mrf.mxu0
    %v1567 = vadd.f32 0.0, %v1566
    %v1568 = vpop.f32.mrf.mxu0
    %v1569 = vpop.f32.mrf.mxu0
    %v1570 = vadd.f32 0.0, %v1569
    %v1571 = vpop.f32.mrf.mxu0
    %1572 = vdwg.mxu0
    %v1573 = vmul.f32 %v1559, 0.35355338
    %v1574 = vmul.f32 %v1562, 0.35355338
    %v1575 = vmul.f32 %v1567, 0.35355338
    %v1576 = vmul.f32 %v1570, 0.35355338
    %v1577 = vadd.f32 %v1573, %v974
    %v1578 = vadd.f32 %v1574, %v975
    %v1579 = vadd.f32 %v1575, %v976
    %v1580 = vadd.f32 %v1576, %v977
    %v1581 = vsel %vm1052, %v1577, -inf
    %1582 = vmax.xlane.f32.xlu0 %v1581
    %v1583 = vpop.xlane.xlu0 %1582
    %v1584 = vsel %vm1052, %v1578, -inf
    %1585 = vmax.xlane.f32.xlu0 %v1584
    %v1586 = vpop.xlane.xlu0 %1585
    %v1587 = vsel %vm1052, %v1579, -inf
    %1588 = vmax.xlane.f32.xlu0 %v1587
    %v1589 = vpop.xlane.xlu0 %1588
    %v1590 = vsel %vm1052, %v1580, -inf
    %1591 = vmax.xlane.f32.xlu0 %v1590
    %v1592 = vpop.xlane.xlu0 %1591
    %v1593 = vsub.f32 %v1577, %v1583
    %v1594 = vsub.f32 %v1578, %v1586
    %v1595 = vsub.f32 %v1579, %v1589
    %v1596 = vsub.f32 %v1580, %v1592
    %v1597 = vmul.f32 %v1593, 1.442695
    %v1598 = vpow.pop %v1597
    %v1599 = vmul.f32 %v1594, 1.442695
    %v1600 = vpow.pop %v1599
    %v1601 = vmul.f32 %v1595, 1.442695
    %v1602 = vpow.pop %v1601
    %v1603 = vmul.f32 %v1596, 1.442695
    %v1604 = vpow.pop %v1603
    %v1605 = vsel %vm1052, %v1598, 0.0
    %1606 = vadd.xlane.f32.xlu0 %v1605
    %v1607 = vpop.xlane.xlu0 %1606
    %v1608 = vsel %vm1052, %v1600, 0.0
    %1609 = vadd.xlane.f32.xlu0 %v1608
    %v1610 = vpop.xlane.xlu0 %1609
    %v1611 = vsel %vm1052, %v1602, 0.0
    %1612 = vadd.xlane.f32.xlu0 %v1611
    %v1613 = vpop.xlane.xlu0 %1612
    %v1614 = vsel %vm1052, %v1604, 0.0
    %1615 = vadd.xlane.f32.xlu0 %v1614
    %v1616 = vpop.xlane.xlu0 %1615
    %v1617 = vrcp.pop %v1607
    %v1618 = vrcp.pop %v1610
    %v1619 = vrcp.pop %v1613
    %v1620 = vrcp.pop %v1616
    %v1621 = vmul.f32 %v1598, %v1617
    %v1622 = vmul.f32 %v1600, %v1618
    %v1623 = vmul.f32 %v1602, %v1619
    %v1624 = vmul.f32 %v1604, %v1620
    %v1625 = vpack.c.bf16 %v1622, %v1621
    %v1626 = vpack.c.bf16 %v1624, %v1623
    %v1628 = vsel %vm1052, %v1625, 0
    %v1631 = vsel %vm1052, %v1626, 0
    %1633 = vmatprep.subr.bf16.mxu0 0
    %1634 = vmatpush1.bf16.msra.mxu0 0
    %1635 = vmatprep.subr.bf16.mxu0 0
    %1636 = vmatpush1.bf16.msra.mxu0 0
    %1637 = vmatprep.subr.bf16.mxu0 0
    %1638 = vmatpush1.bf16.msra.mxu0 0
    %1639 = vmatprep.subr.bf16.mxu0 0
    %1640 = vmatpush1.bf16.msra.mxu0 0
    %1641 = vmatprep.subr.bf16.mxu0 0
    %1642 = vmatpush1.bf16.msra.mxu0 0
    %1643 = vmatprep.subr.bf16.mxu0 0
    %1644 = vmatpush1.bf16.msra.mxu0 0
    %1645 = vmatprep.subr.bf16.mxu0 0
    %1646 = vmatpush1.bf16.msra.mxu0 %v1523
    %1647 = vmatprep.subr.bf16.mxu0 0
    %1648 = vmatpush1.bf16.msra.mxu0 %v1522
    %1649 = vmatprep.subr.bf16.mxu0 0
    %1650 = vmatpush2.bf16.msra.mxu0 0
    %1651 = vmatprep.subr.bf16.mxu0 0
    %1652 = vmatpush2.bf16.msra.mxu0 0
    %1653 = vmatprep.subr.bf16.mxu0 0
    %1654 = vmatpush2.bf16.msra.mxu0 0
    %1655 = vmatprep.subr.bf16.mxu0 0
    %1656 = vmatpush2.bf16.msra.mxu0 0
    %1657 = vmatprep.subr.bf16.mxu0 0
    %1658 = vmatpush2.bf16.msra.mxu0 0
    %1659 = vmatprep.subr.bf16.mxu0 0
    %1660 = vmatpush2.bf16.msra.mxu0 0
    %1661 = vmatprep.subr.bf16.mxu0 0
    %1662 = vmatpush2.bf16.msra.mxu0 0
    %1663 = vmatprep.subr.bf16.mxu0 0
    %1664 = vmatpush2.bf16.msra.mxu0 0
    %1665 = vmatprep.mubr.bf16.mxu0 0
    %1666 = vmatmul.mubr.bf16.gmra.mxu0 %v1628
    %v1667 = vpop.f32.mrf.mxu0
    %v1668 = vadd.f32 0.0, %v1667
    %v1669 = vpop.f32.mrf.mxu0
    %v1670 = vpop.f32.mrf.mxu0
    %v1671 = vadd.f32 0.0, %v1670
    %v1672 = vpop.f32.mrf.mxu0
    %1673 = vmatprep.mubr.bf16.mxu0 0
    %1674 = vmatmul.mubr.bf16.gmra.mxu0 %v1631
    %v1675 = vpop.f32.mrf.mxu0
    %v1676 = vadd.f32 0.0, %v1675
    %v1677 = vpop.f32.mrf.mxu0
    %v1678 = vpop.f32.mrf.mxu0
    %v1679 = vadd.f32 0.0, %v1678
    %v1680 = vpop.f32.mrf.mxu0
    %1681 = vdwg.mxu0
    %v1682 = vadd.f32 %v1504, %v1668
    %v1683 = vadd.f32 %v1505, %v1671
    %v1684 = vadd.f32 %v1506, %v1676
    %v1685 = vadd.f32 %v1507, %v1679
    %v1686 = vpack.c.bf16 %v1683, %v1682
    %v1687 = vpack.c.bf16 %v1685, %v1684
    %v1688 = vld [vmem:[#allocation16] sm:$0xf]
    %v1689 = vld [vmem:[#allocation16 + $0x4] sm:$0xf]
    %v1690 = vld [vmem:[#allocation16 + $0x8] sm:$0xf]
    %v1691 = vld [vmem:[#allocation16 + $0xc] sm:$0xf]
    %v1692 = vld [vmem:[#allocation16 + $0x10] sm:$0xf]
    %v1693 = vld [vmem:[#allocation16 + $0x14] sm:$0xf]
    %v1694 = vld [vmem:[#allocation16 + $0x18] sm:$0xf]
    %v1695 = vld [vmem:[#allocation16 + $0x1c] sm:$0xf]
    %v1696 = vld [vmem:[#allocation16 + $0x20] sm:$0xf]
    %v1697 = vld [vmem:[#allocation16 + $0x24] sm:$0xf]
    %v1698 = vld [vmem:[#allocation16 + $0x28] sm:$0xf]
    %v1699 = vld [vmem:[#allocation16 + $0x2c] sm:$0xf]
    %v1700 = vld [vmem:[#allocation16 + $0x30] sm:$0xf]
    %v1701 = vld [vmem:[#allocation16 + $0x34] sm:$0xf]
    %v1702 = vld [vmem:[#allocation16 + $0x38] sm:$0xf]
    %v1703 = vld [vmem:[#allocation16 + $0x3c] sm:$0xf]
    %v1704 = vld [vmem:[#allocation17] sm:$0x1]
    %v1706 = vlaneseq
    %v1707 = vshrl.u32 %v1706, 7
    %v1708 = vsub.s32 0, %v1707
    %v1709 = vrot.slane %v1704, %v1708
    %v1727 = vunpack.c.l.b16 %v1688
    %v1728 = vunpack.c.l.b16 %v1689
    %v1729 = vunpack.c.l.b16 %v1690
    %v1730 = vunpack.c.l.b16 %v1691
    %v1731 = vunpack.c.l.b16 %v1692
    %v1732 = vunpack.c.l.b16 %v1693
    %v1733 = vunpack.c.l.b16 %v1694
    %v1734 = vunpack.c.l.b16 %v1695
    %v1735 = vunpack.c.l.b16 %v1696
    %v1736 = vunpack.c.l.b16 %v1697
    %v1737 = vunpack.c.l.b16 %v1698
    %v1738 = vunpack.c.l.b16 %v1699
    %v1739 = vunpack.c.l.b16 %v1700
    %v1740 = vunpack.c.l.b16 %v1701
    %v1741 = vunpack.c.l.b16 %v1702
    %v1742 = vunpack.c.l.b16 %v1703
    %v1743 = vpack.c.b16 %v1728, %v1727
    %v1744 = vpack.c.b16 %v1730, %v1729
    %v1745 = vpack.c.b16 %v1732, %v1731
    %v1746 = vpack.c.b16 %v1734, %v1733
    %v1747 = vpack.c.b16 %v1736, %v1735
    %v1748 = vpack.c.b16 %v1738, %v1737
    %v1749 = vpack.c.b16 %v1740, %v1739
    %v1750 = vpack.c.b16 %v1742, %v1741
    %1759 = vmatprep.subr.bf16.mxu0 0
    %1760 = vmatpush1.bf16.msra.mxu0 %v1750
    %1761 = vmatprep.subr.bf16.mxu0 0
    %1762 = vmatpush1.bf16.msra.mxu0 %v1749
    %1763 = vmatprep.subr.bf16.mxu0 0
    %1764 = vmatpush1.bf16.msra.mxu0 %v1748
    %1765 = vmatprep.subr.bf16.mxu0 0
    %1766 = vmatpush1.bf16.msra.mxu0 %v1747
    %1767 = vmatprep.subr.bf16.mxu0 0
    %1768 = vmatpush1.bf16.msra.mxu0 %v1746
    %1769 = vmatprep.subr.bf16.mxu0 0
    %1770 = vmatpush1.bf16.msra.mxu0 %v1745
    %1771 = vmatprep.subr.bf16.mxu0 0
    %1772 = vmatpush1.bf16.msra.mxu0 %v1744
    %1773 = vmatprep.subr.bf16.mxu0 0
    %1774 = vmatpush1.bf16.msra.mxu0 %v1743
    %1775 = vmatprep.subr.bf16.mxu0 0
    %1776 = vmatpush2.bf16.msra.mxu0 0
    %1777 = vmatprep.subr.bf16.mxu0 0
    %1778 = vmatpush2.bf16.msra.mxu0 0
    %1779 = vmatprep.subr.bf16.mxu0 0
    %1780 = vmatpush2.bf16.msra.mxu0 0
    %1781 = vmatprep.subr.bf16.mxu0 0
    %1782 = vmatpush2.bf16.msra.mxu0 0
    %1783 = vmatprep.subr.bf16.mxu0 0
    %1784 = vmatpush2.bf16.msra.mxu0 0
    %1785 = vmatprep.subr.bf16.mxu0 0
    %1786 = vmatpush2.bf16.msra.mxu0 0
    %1787 = vmatprep.subr.bf16.mxu0 0
    %1788 = vmatpush2.bf16.msra.mxu0 0
    %1789 = vmatprep.subr.bf16.mxu0 0
    %1790 = vmatpush2.bf16.msra.mxu0 0
    %1791 = vmatprep.mubr.bf16.mxu0 0
    %1792 = vmatmul.mubr.bf16.gmra.mxu0 %v1686
    %v1793 = vpop.f32.mrf.mxu0
    %v1794 = vadd.f32 %v1709, %v1793
    %v1795 = vpop.f32.mrf.mxu0
    %v1796 = vpop.f32.mrf.mxu0
    %v1797 = vadd.f32 %v1709, %v1796
    %v1798 = vpop.f32.mrf.mxu0
    %1799 = vmatprep.mubr.bf16.mxu0 0
    %1800 = vmatmul.mubr.bf16.gmra.mxu0 %v1687
    %v1801 = vpop.f32.mrf.mxu0
    %v1802 = vadd.f32 %v1709, %v1801
    %v1803 = vpop.f32.mrf.mxu0
    %v1804 = vpop.f32.mrf.mxu0
    %v1805 = vadd.f32 %v1709, %v1804
    %v1806 = vpop.f32.mrf.mxu0
    %1807 = vdwg.mxu0
    %v1808 = vadd.f32 %v496, %v1794
    %v1809 = vadd.f32 %v497, %v1797
    %v1810 = vadd.f32 %v615, %v1802
    %v1811 = vadd.f32 %v616, %v1805
    %v1812 = vld [vmem:[#allocation19] sm:$0x1]
    %v1813 = vld [vmem:[#allocation20] sm:$0x1]
    %v1814 = vmul.f32 %v1808, %v378
    %v1815 = vmul.f32 %v1809, %v378
    %v1816 = vmul.f32 %v1810, %v378
    %v1817 = vmul.f32 %v1811, %v378
    %1818 = vadd.xlane.f32.xlu0 %v1814
    %v1819 = vpop.xlane.xlu0 %1818
    %1820 = vadd.xlane.f32.xlu0 %v1815
    %v1821 = vpop.xlane.xlu0 %1820
    %1822 = vadd.xlane.f32.xlu0 %v1816
    %v1823 = vpop.xlane.xlu0 %1822
    %1824 = vadd.xlane.f32.xlu0 %v1817
    %v1825 = vpop.xlane.xlu0 %1824
    %v1826 = vmul.f32 %v1819, 0.03125
    %v1827 = vmul.f32 %v1821, 0.03125
    %v1828 = vmul.f32 %v1823, 0.03125
    %v1829 = vmul.f32 %v1825, 0.03125
    %v1830 = vsub.f32 %v1808, %v1826
    %v1831 = vsub.f32 %v1809, %v1827
    %v1832 = vsub.f32 %v1810, %v1828
    %v1833 = vsub.f32 %v1811, %v1829
    %v1834 = vmul.f32 %v1830, %v378
    %v1835 = vmul.f32 %v1831, %v378
    %v1836 = vmul.f32 %v1832, %v378
    %v1837 = vmul.f32 %v1833, %v378
    %v1838 = vmul.f32 %v1834, %v1834
    %v1839 = vmul.f32 %v1835, %v1835
    %v1840 = vmul.f32 %v1836, %v1836
    %v1841 = vmul.f32 %v1837, %v1837
    %1842 = vadd.xlane.f32.xlu0 %v1838
    %v1843 = vpop.xlane.xlu0 %1842
    %1844 = vadd.xlane.f32.xlu0 %v1839
    %v1845 = vpop.xlane.xlu0 %1844
    %1846 = vadd.xlane.f32.xlu0 %v1840
    %v1847 = vpop.xlane.xlu0 %1846
    %1848 = vadd.xlane.f32.xlu0 %v1841
    %v1849 = vpop.xlane.xlu0 %1848
    %v1850 = vmul.f32 %v1843, 0.03125
    %v1851 = vmul.f32 %v1845, 0.03125
    %v1852 = vmul.f32 %v1847, 0.03125
    %v1853 = vmul.f32 %v1849, 0.03125
    %v1854 = vadd.f32 %v1850, 1e-05
    %v1855 = vadd.f32 %v1851, 1e-05
    %v1856 = vadd.f32 %v1852, 1e-05
    %v1857 = vadd.f32 %v1853, 1e-05
    %v1858 = vrsqrt.pop %v1854
    %v1859 = vrsqrt.pop %v1855
    %v1860 = vrsqrt.pop %v1856
    %v1861 = vrsqrt.pop %v1857
    %v1862 = vmul.f32 %v1834, %v1858
    %v1863 = vmul.f32 %v1835, %v1859
    %v1864 = vmul.f32 %v1836, %v1860
    %v1865 = vmul.f32 %v1837, %v1861
    %v1867 = vlaneseq
    %v1868 = vshrl.u32 %v1867, 7
    %v1869 = vsub.s32 0, %v1868
    %v1870 = vrot.slane %v1812, %v1869
    %v1872 = vmul.f32 %v1862, %v1870
    %v1873 = vmul.f32 %v1863, %v1870
    %v1874 = vmul.f32 %v1864, %v1870
    %v1875 = vmul.f32 %v1865, %v1870
    %v1877 = vlaneseq
    %v1878 = vshrl.u32 %v1877, 7
    %v1879 = vsub.s32 0, %v1878
    %v1880 = vrot.slane %v1813, %v1879
    %v1882 = vadd.f32 %v1872, %v1880
    %v1883 = vadd.f32 %v1873, %v1880
    %v1884 = vadd.f32 %v1874, %v1880
    %v1885 = vadd.f32 %v1875, %v1880
    %v1886 = vpack.c.bf16 %v1883, %v1882
    %v1887 = vpack.c.bf16 %v1885, %v1884
    %v1888 = vld [vmem:[#allocation22] sm:$0xf]
    %v1889 = vld [vmem:[#allocation22 + $0x4] sm:$0xf]
    %v1890 = vld [vmem:[#allocation22 + $0x8] sm:$0xf]
    %v1891 = vld [vmem:[#allocation22 + $0xc] sm:$0xf]
    %v1892 = vld [vmem:[#allocation22 + $0x10] sm:$0xf]
    %v1893 = vld [vmem:[#allocation22 + $0x14] sm:$0xf]
    %v1894 = vld [vmem:[#allocation22 + $0x18] sm:$0xf]
    %v1895 = vld [vmem:[#allocation22 + $0x1c] sm:$0xf]
    %v1896 = vld [vmem:[#allocation22 + $0x20] sm:$0xf]
    %v1897 = vld [vmem:[#allocation22 + $0x24] sm:$0xf]
    %v1898 = vld [vmem:[#allocation22 + $0x28] sm:$0xf]
    %v1899 = vld [vmem:[#allocation22 + $0x2c] sm:$0xf]
    %v1900 = vld [vmem:[#allocation22 + $0x30] sm:$0xf]
    %v1901 = vld [vmem:[#allocation22 + $0x34] sm:$0xf]
    %v1902 = vld [vmem:[#allocation22 + $0x38] sm:$0xf]
    %v1903 = vld [vmem:[#allocation22 + $0x3c] sm:$0xf]
    %v1904 = vld [vmem:[#allocation23] sm:$0x1]
    %v1906 = vlaneseq
    %v1907 = vshrl.u32 %v1906, 7
    %v1908 = vsub.s32 0, %v1907
    %v1909 = vrot.slane %v1904, %v1908
    %v1927 = vunpack.c.l.b16 %v1888
    %v1928 = vunpack.c.l.b16 %v1889
    %v1929 = vunpack.c.l.b16 %v1890
    %v1930 = vunpack.c.l.b16 %v1891
    %v1931 = vunpack.c.l.b16 %v1892
    %v1932 = vunpack.c.l.b16 %v1893
    %v1933 = vunpack.c.l.b16 %v1894
    %v1934 = vunpack.c.l.b16 %v1895
    %v1935 = vunpack.c.l.b16 %v1896
    %v1936 = vunpack.c.l.b16 %v1897
    %v1937 = vunpack.c.l.b16 %v1898
    %v1938 = vunpack.c.l.b16 %v1899
    %v1939 = vunpack.c.l.b16 %v1900
    %v1940 = vunpack.c.l.b16 %v1901
    %v1941 = vunpack.c.l.b16 %v1902
    %v1942 = vunpack.c.l.b16 %v1903
    %v1943 = vpack.c.b16 %v1928, %v1927
    %v1944 = vpack.c.b16 %v1930, %v1929
    %v1945 = vpack.c.b16 %v1932, %v1931
    %v1946 = vpack.c.b16 %v1934, %v1933
    %v1947 = vpack.c.b16 %v1936, %v1935
    %v1948 = vpack.c.b16 %v1938, %v1937
    %v1949 = vpack.c.b16 %v1940, %v1939
    %v1950 = vpack.c.b16 %v1942, %v1941
    %1959 = vmatprep.subr.bf16.mxu0 0
    %1960 = vmatpush1.bf16.msra.mxu0 %v1950
    %1961 = vmatprep.subr.bf16.mxu0 0
    %1962 = vmatpush1.bf16.msra.mxu0 %v1949
    %1963 = vmatprep.subr.bf16.mxu0 0
    %1964 = vmatpush1.bf16.msra.mxu0 %v1948
    %1965 = vmatprep.subr.bf16.mxu0 0
    %1966 = vmatpush1.bf16.msra.mxu0 %v1947
    %1967 = vmatprep.subr.bf16.mxu0 0
    %1968 = vmatpush1.bf16.msra.mxu0 %v1946
    %1969 = vmatprep.subr.bf16.mxu0 0
    %1970 = vmatpush1.bf16.msra.mxu0 %v1945
    %1971 = vmatprep.subr.bf16.mxu0 0
    %1972 = vmatpush1.bf16.msra.mxu0 %v1944
    %1973 = vmatprep.subr.bf16.mxu0 0
    %1974 = vmatpush1.bf16.msra.mxu0 %v1943
    %1975 = vmatprep.subr.bf16.mxu0 0
    %1976 = vmatpush2.bf16.msra.mxu0 0
    %1977 = vmatprep.subr.bf16.mxu0 0
    %1978 = vmatpush2.bf16.msra.mxu0 0
    %1979 = vmatprep.subr.bf16.mxu0 0
    %1980 = vmatpush2.bf16.msra.mxu0 0
    %1981 = vmatprep.subr.bf16.mxu0 0
    %1982 = vmatpush2.bf16.msra.mxu0 0
    %1983 = vmatprep.subr.bf16.mxu0 0
    %1984 = vmatpush2.bf16.msra.mxu0 0
    %1985 = vmatprep.subr.bf16.mxu0 0
    %1986 = vmatpush2.bf16.msra.mxu0 0
    %1987 = vmatprep.subr.bf16.mxu0 0
    %1988 = vmatpush2.bf16.msra.mxu0 0
    %1989 = vmatprep.subr.bf16.mxu0 0
    %1990 = vmatpush2.bf16.msra.mxu0 0
    %1991 = vmatprep.mubr.bf16.mxu0 0
    %1992 = vmatmul.mubr.bf16.gmra.mxu0 %v1886
    %v1993 = vpop.f32.mrf.mxu0
    %v1994 = vadd.f32 %v1909, %v1993
    %v1995 = vpop.f32.mrf.mxu0
    %v1996 = vpop.f32.mrf.mxu0
    %v1997 = vadd.f32 %v1909, %v1996
    %v1998 = vpop.f32.mrf.mxu0
    %1999 = vmatprep.mubr.bf16.mxu0 0
    %2000 = vmatmul.mubr.bf16.gmra.mxu0 %v1887
    %v2001 = vpop.f32.mrf.mxu0
    %v2002 = vadd.f32 %v1909, %v2001
    %v2003 = vpop.f32.mrf.mxu0
    %v2004 = vpop.f32.mrf.mxu0
    %v2005 = vadd.f32 %v1909, %v2004
    %v2006 = vpop.f32.mrf.mxu0
    %2007 = vdwg.mxu0
    %v2008 = vmul.f32 %v1994, %v1994
    %v2009 = vmul.f32 %v1997, %v1997
    %v2010 = vmul.f32 %v2002, %v2002
    %v2011 = vmul.f32 %v2005, %v2005
    %v2012 = vmul.f32 %v1994, %v2008
    %v2013 = vmul.f32 %v1997, %v2009
    %v2014 = vmul.f32 %v2002, %v2010
    %v2015 = vmul.f32 %v2005, %v2011
    %v2016 = vmul.f32 %v2012, 0.044715
    %v2017 = vmul.f32 %v2013, 0.044715
    %v2018 = vmul.f32 %v2014, 0.044715
    %v2019 = vmul.f32 %v2015, 0.044715
    %v2020 = vadd.f32 %v1994, %v2016
    %v2021 = vadd.f32 %v1997, %v2017
    %v2022 = vadd.f32 %v2002, %v2018
    %v2023 = vadd.f32 %v2005, %v2019
    %v2024 = vmul.f32 %v2020, 0.7978846
    %v2025 = vmul.f32 %v2021, 0.7978846
    %v2026 = vmul.f32 %v2022, 0.7978846
    %v2027 = vmul.f32 %v2023, 0.7978846
    %v2028 = vtanh.pop %v2024
    %v2029 = vtanh.pop %v2025
    %v2030 = vtanh.pop %v2026
    %v2031 = vtanh.pop %v2027
    %v2032 = vadd.f32 %v2028, 1.0
    %v2033 = vadd.f32 %v2029, 1.0
    %v2034 = vadd.f32 %v2030, 1.0
    %v2035 = vadd.f32 %v2031, 1.0
    %v2036 = vmul.f32 %v2032, 0.5
    %v2037 = vmul.f32 %v2033, 0.5
    %v2038 = vmul.f32 %v2034, 0.5
    %v2039 = vmul.f32 %v2035, 0.5
    %v2040 = vmul.f32 %v1994, %v2036
    %v2041 = vmul.f32 %v1997, %v2037
    %v2042 = vmul.f32 %v2002, %v2038
    %v2043 = vmul.f32 %v2005, %v2039
    %v2044 = vpack.c.bf16 %v2041, %v2040
    %v2045 = vpack.c.bf16 %v2043, %v2042
    %v2046 = vld [vmem:[#allocation25] sm:$0xf]
    %v2047 = vld [vmem:[#allocation25 + $0x4] sm:$0xf]
    %v2048 = vld [vmem:[#allocation25 + $0x8] sm:$0xf]
    %v2049 = vld [vmem:[#allocation25 + $0xc] sm:$0xf]
    %v2050 = vld [vmem:[#allocation25 + $0x10] sm:$0xf]
    %v2051 = vld [vmem:[#allocation25 + $0x14] sm:$0xf]
    %v2052 = vld [vmem:[#allocation25 + $0x18] sm:$0xf]
    %v2053 = vld [vmem:[#allocation25 + $0x1c] sm:$0xf]
    %v2054 = vld [vmem:[#allocation25 + $0x20] sm:$0xf]
    %v2055 = vld [vmem:[#allocation25 + $0x24] sm:$0xf]
    %v2056 = vld [vmem:[#allocation25 + $0x28] sm:$0xf]
    %v2057 = vld [vmem:[#allocation25 + $0x2c] sm:$0xf]
    %v2058 = vld [vmem:[#allocation25 + $0x30] sm:$0xf]
    %v2059 = vld [vmem:[#allocation25 + $0x34] sm:$0xf]
    %v2060 = vld [vmem:[#allocation25 + $0x38] sm:$0xf]
    %v2061 = vld [vmem:[#allocation25 + $0x3c] sm:$0xf]
    %v2062 = vld [vmem:[#allocation26] sm:$0x1]
    %v2064 = vlaneseq
    %v2065 = vshrl.u32 %v2064, 7
    %v2066 = vsub.s32 0, %v2065
    %v2067 = vrot.slane %v2062, %v2066
    %v2085 = vunpack.c.l.b16 %v2046
    %v2086 = vunpack.c.l.b16 %v2047
    %v2087 = vunpack.c.l.b16 %v2048
    %v2088 = vunpack.c.l.b16 %v2049
    %v2089 = vunpack.c.l.b16 %v2050
    %v2090 = vunpack.c.l.b16 %v2051
    %v2091 = vunpack.c.l.b16 %v2052
    %v2092 = vunpack.c.l.b16 %v2053
    %v2093 = vunpack.c.l.b16 %v2054
    %v2094 = vunpack.c.l.b16 %v2055
    %v2095 = vunpack.c.l.b16 %v2056
    %v2096 = vunpack.c.l.b16 %v2057
    %v2097 = vunpack.c.l.b16 %v2058
    %v2098 = vunpack.c.l.b16 %v2059
    %v2099 = vunpack.c.l.b16 %v2060
    %v2100 = vunpack.c.l.b16 %v2061
    %v2101 = vpack.c.b16 %v2086, %v2085
    %v2102 = vpack.c.b16 %v2088, %v2087
    %v2103 = vpack.c.b16 %v2090, %v2089
    %v2104 = vpack.c.b16 %v2092, %v2091
    %v2105 = vpack.c.b16 %v2094, %v2093
    %v2106 = vpack.c.b16 %v2096, %v2095
    %v2107 = vpack.c.b16 %v2098, %v2097
    %v2108 = vpack.c.b16 %v2100, %v2099
    %2117 = vmatprep.subr.bf16.mxu0 0
    %2118 = vmatpush1.bf16.msra.mxu0 %v2108
    %2119 = vmatprep.subr.bf16.mxu0 0
    %2120 = vmatpush1.bf16.msra.mxu0 %v2107
    %2121 = vmatprep.subr.bf16.mxu0 0
    %2122 = vmatpush1.bf16.msra.mxu0 %v2106
    %2123 = vmatprep.subr.bf16.mxu0 0
    %2124 = vmatpush1.bf16.msra.mxu0 %v2105
    %2125 = vmatprep.subr.bf16.mxu0 0
    %2126 = vmatpush1.bf16.msra.mxu0 %v2104
    %2127 = vmatprep.subr.bf16.mxu0 0
    %2128 = vmatpush1.bf16.msra.mxu0 %v2103
    %2129 = vmatprep.subr.bf16.mxu0 0
    %2130 = vmatpush1.bf16.msra.mxu0 %v2102
    %2131 = vmatprep.subr.bf16.mxu0 0
    %2132 = vmatpush1.bf16.msra.mxu0 %v2101
    %2133 = vmatprep.subr.bf16.mxu0 0
    %2134 = vmatpush2.bf16.msra.mxu0 0
    %2135 = vmatprep.subr.bf16.mxu0 0
    %2136 = vmatpush2.bf16.msra.mxu0 0
    %2137 = vmatprep.subr.bf16.mxu0 0
    %2138 = vmatpush2.bf16.msra.mxu0 0
    %2139 = vmatprep.subr.bf16.mxu0 0
    %2140 = vmatpush2.bf16.msra.mxu0 0
    %2141 = vmatprep.subr.bf16.mxu0 0
    %2142 = vmatpush2.bf16.msra.mxu0 0
    %2143 = vmatprep.subr.bf16.mxu0 0
    %2144 = vmatpush2.bf16.msra.mxu0 0
    %2145 = vmatprep.subr.bf16.mxu0 0
    %2146 = vmatpush2.bf16.msra.mxu0 0
    %2147 = vmatprep.subr.bf16.mxu0 0
    %2148 = vmatpush2.bf16.msra.mxu0 0
    %2149 = vmatprep.mubr.bf16.mxu0 0
    %2150 = vmatmul.mubr.bf16.gmra.mxu0 %v2044
    %v2151 = vpop.f32.mrf.mxu0
    %v2152 = vadd.f32 %v2067, %v2151
    %v2153 = vpop.f32.mrf.mxu0
    %v2154 = vpop.f32.mrf.mxu0
    %v2155 = vadd.f32 %v2067, %v2154
    %v2156 = vpop.f32.mrf.mxu0
    %2157 = vmatprep.mubr.bf16.mxu0 0
    %2158 = vmatmul.mubr.bf16.gmra.mxu0 %v2045
    %v2159 = vpop.f32.mrf.mxu0
    %v2160 = vadd.f32 %v2067, %v2159
    %v2161 = vpop.f32.mrf.mxu0
    %v2162 = vpop.f32.mrf.mxu0
    %v2163 = vadd.f32 %v2067, %v2162
    %v2164 = vpop.f32.mrf.mxu0
    %2165 = vdwg.mxu0
    %v2166 = vadd.f32 %v1808, %v2152
    %v2167 = vadd.f32 %v1809, %v2155
    %v2168 = vadd.f32 %v1810, %v2160
    %v2169 = vadd.f32 %v1811, %v2163
    %v2170 = vld [vmem:[#allocation28] sm:$0x1]
    %v2171 = vld [vmem:[#allocation29] sm:$0x1]
    %v2172 = vmul.f32 %v2166, %v378
    %v2173 = vmul.f32 %v2167, %v378
    %v2174 = vmul.f32 %v2168, %v378
    %v2175 = vmul.f32 %v2169, %v378
    %2176 = vadd.xlane.f32.xlu0 %v2172
    %v2177 = vpop.xlane.xlu0 %2176
    %2178 = vadd.xlane.f32.xlu0 %v2173
    %v2179 = vpop.xlane.xlu0 %2178
    %2180 = vadd.xlane.f32.xlu0 %v2174
    %v2181 = vpop.xlane.xlu0 %2180
    %2182 = vadd.xlane.f32.xlu0 %v2175
    %v2183 = vpop.xlane.xlu0 %2182
    %v2184 = vmul.f32 %v2177, 0.03125
    %v2185 = vmul.f32 %v2179, 0.03125
    %v2186 = vmul.f32 %v2181, 0.03125
    %v2187 = vmul.f32 %v2183, 0.03125
    %v2188 = vsub.f32 %v2166, %v2184
    %v2189 = vsub.f32 %v2167, %v2185
    %v2190 = vsub.f32 %v2168, %v2186
    %v2191 = vsub.f32 %v2169, %v2187
    %v2192 = vmul.f32 %v2188, %v378
    %v2193 = vmul.f32 %v2189, %v378
    %v2194 = vmul.f32 %v2190, %v378
    %v2195 = vmul.f32 %v2191, %v378
    %v2196 = vmul.f32 %v2192, %v2192
    %v2197 = vmul.f32 %v2193, %v2193
    %v2198 = vmul.f32 %v2194, %v2194
    %v2199 = vmul.f32 %v2195, %v2195
    %2200 = vadd.xlane.f32.xlu0 %v2196
    %v2201 = vpop.xlane.xlu0 %2200
    %2202 = vadd.xlane.f32.xlu0 %v2197
    %v2203 = vpop.xlane.xlu0 %2202
    %2204 = vadd.xlane.f32.xlu0 %v2198
    %v2205 = vpop.xlane.xlu0 %2204
    %2206 = vadd.xlane.f32.xlu0 %v2199
    %v2207 = vpop.xlane.xlu0 %2206
    %v2208 = vmul.f32 %v2201, 0.03125
    %v2209 = vmul.f32 %v2203, 0.03125
    %v2210 = vmul.f32 %v2205, 0.03125
    %v2211 = vmul.f32 %v2207, 0.03125
    %v2212 = vadd.f32 %v2208, 1e-05
    %v2213 = vadd.f32 %v2209, 1e-05
    %v2214 = vadd.f32 %v2210, 1e-05
    %v2215 = vadd.f32 %v2211, 1e-05
    %v2216 = vrsqrt.pop %v2212
    %v2217 = vrsqrt.pop %v2213
    %v2218 = vrsqrt.pop %v2214
    %v2219 = vrsqrt.pop %v2215
    %v2220 = vmul.f32 %v2192, %v2216
    %v2221 = vmul.f32 %v2193, %v2217
    %v2222 = vmul.f32 %v2194, %v2218
    %v2223 = vmul.f32 %v2195, %v2219
    %v2225 = vlaneseq
    %v2226 = vshrl.u32 %v2225, 7
    %v2227 = vsub.s32 0, %v2226
    %v2228 = vrot.slane %v2170, %v2227
    %v2230 = vmul.f32 %v2220, %v2228
    %v2231 = vmul.f32 %v2221, %v2228
    %v2232 = vmul.f32 %v2222, %v2228
    %v2233 = vmul.f32 %v2223, %v2228
    %v2235 = vlaneseq
    %v2236 = vshrl.u32 %v2235, 7
    %v2237 = vsub.s32 0, %v2236
    %v2238 = vrot.slane %v2171, %v2237
    %v2240 = vadd.f32 %v2230, %v2238
    %v2241 = vadd.f32 %v2231, %v2238
    %v2242 = vadd.f32 %v2232, %v2238
    %v2243 = vadd.f32 %v2233, %v2238
    %v2244 = vpack.c.bf16 %v2241, %v2240
    %v2245 = vpack.c.bf16 %v2243, %v2242
    %v2246 = vld [vmem:[#allocation31] sm:$0x1]
    %v2248 = vsel %vm1052, %v2246, 0
    %2250 = vmatprep.subr.bf16.mxu0 0
    %2251 = vmatpush1.bf16.msra.mxu0 0
    %2252 = vmatprep.subr.bf16.mxu0 0
    %2253 = vmatpush1.bf16.msra.mxu0 0
    %2254 = vmatprep.subr.bf16.mxu0 0
    %2255 = vmatpush1.bf16.msra.mxu0 0
    %2256 = vmatprep.subr.bf16.mxu0 0
    %2257 = vmatpush1.bf16.msra.mxu0 0
    %2258 = vmatprep.subr.bf16.mxu0 0
    %2259 = vmatpush1.bf16.msra.mxu0 0
    %2260 = vmatprep.subr.bf16.mxu0 0
    %2261 = vmatpush1.bf16.msra.mxu0 0
    %2262 = vmatprep.subr.bf16.mxu0 0
    %2263 = vmatpush1.bf16.msra.mxu0 %v2245
    %2264 = vmatprep.subr.bf16.mxu0 0
    %2265 = vmatpush1.bf16.msra.mxu0 %v2244
    %2266 = vmatprep.subr.bf16.mxu0 0
    %2267 = vmatpush2.bf16.msra.mxu0 0
    %2268 = vmatprep.subr.bf16.mxu0 0
    %2269 = vmatpush2.bf16.msra.mxu0 0
    %2270 = vmatprep.subr.bf16.mxu0 0
    %2271 = vmatpush2.bf16.msra.mxu0 0
    %2272 = vmatprep.subr.bf16.mxu0 0
    %2273 = vmatpush2.bf16.msra.mxu0 0
    %2274 = vmatprep.subr.bf16.mxu0 0
    %2275 = vmatpush2.bf16.msra.mxu0 0
    %2276 = vmatprep.subr.bf16.mxu0 0
    %2277 = vmatpush2.bf16.msra.mxu0 0
    %2278 = vmatprep.subr.bf16.mxu0 0
    %2279 = vmatpush2.bf16.msra.mxu0 0
    %2280 = vmatprep.subr.bf16.mxu0 0
    %2281 = vmatpush2.bf16.msra.mxu0 0
    %2282 = vmatprep.mubr.bf16.mxu0 0
    %2283 = vmatmul.mubr.bf16.gmra.mxu0 %v2248
    %v2284 = vpop.f32.mrf.mxu0
    %v2285 = vadd.f32 0.0, %v2284
    %v2286 = vpop.f32.mrf.mxu0
    %v2287 = vpop.f32.mrf.mxu0
    %v2288 = vpop.f32.mrf.mxu0
    %2289 = vdwg.mxu0
    %v2290 = vld [vmem:[#allocation32] sm:$0x1]
    %v2292 = vsel %vm1052, %v2290, 0
    %2294 = vmatprep.subr.bf16.mxu0 0
    %2295 = vmatpush1.bf16.msra.mxu0 0
    %2296 = vmatprep.subr.bf16.mxu0 0
    %2297 = vmatpush1.bf16.msra.mxu0 0
    %2298 = vmatprep.subr.bf16.mxu0 0
    %2299 = vmatpush1.bf16.msra.mxu0 0
    %2300 = vmatprep.subr.bf16.mxu0 0
    %2301 = vmatpush1.bf16.msra.mxu0 0
    %2302 = vmatprep.subr.bf16.mxu0 0
    %2303 = vmatpush1.bf16.msra.mxu0 0
    %2304 = vmatprep.subr.bf16.mxu0 0
    %2305 = vmatpush1.bf16.msra.mxu0 0
    %2306 = vmatprep.subr.bf16.mxu0 0
    %2307 = vmatpush1.bf16.msra.mxu0 %v2245
    %2308 = vmatprep.subr.bf16.mxu0 0
    %2309 = vmatpush1.bf16.msra.mxu0 %v2244
    %2310 = vmatprep.subr.bf16.mxu0 0
    %2311 = vmatpush2.bf16.msra.mxu0 0
    %2312 = vmatprep.subr.bf16.mxu0 0
    %2313 = vmatpush2.bf16.msra.mxu0 0
    %2314 = vmatprep.subr.bf16.mxu0 0
    %2315 = vmatpush2.bf16.msra.mxu0 0
    %2316 = vmatprep.subr.bf16.mxu0 0
    %2317 = vmatpush2.bf16.msra.mxu0 0
    %2318 = vmatprep.subr.bf16.mxu0 0
    %2319 = vmatpush2.bf16.msra.mxu0 0
    %2320 = vmatprep.subr.bf16.mxu0 0
    %2321 = vmatpush2.bf16.msra.mxu0 0
    %2322 = vmatprep.subr.bf16.mxu0 0
    %2323 = vmatpush2.bf16.msra.mxu0 0
    %2324 = vmatprep.subr.bf16.mxu0 0
    %2325 = vmatpush2.bf16.msra.mxu0 0
    %2326 = vmatprep.mubr.bf16.mxu0 0
    %2327 = vmatmul.mubr.bf16.gmra.mxu0 %v2292
    %v2328 = vpop.f32.mrf.mxu0
    %v2329 = vadd.f32 0.0, %v2328
    %v2330 = vpop.f32.mrf.mxu0
    %v2331 = vpop.f32.mrf.mxu0
    %v2332 = vpop.f32.mrf.mxu0
    %2333 = vdwg.mxu0
    %v2334 = vpack.c.bf16 %v2329, %v2329
    %v2335 = vld [vmem:[#allocation34] sm:$0xf]
    %v2336 = vld [vmem:[#allocation34 + $0x4] sm:$0xf]
    %v2337 = vld [vmem:[#allocation34 + $0x8] sm:$0xf]
    %v2338 = vld [vmem:[#allocation34 + $0xc] sm:$0xf]
    %v2339 = vld [vmem:[#allocation34 + $0x10] sm:$0xf]
    %v2340 = vld [vmem:[#allocation34 + $0x14] sm:$0xf]
    %v2341 = vld [vmem:[#allocation34 + $0x18] sm:$0xf]
    %v2342 = vld [vmem:[#allocation34 + $0x1c] sm:$0xf]
    %v2343 = vld [vmem:[#allocation34 + $0x20] sm:$0xf]
    %v2344 = vld [vmem:[#allocation34 + $0x24] sm:$0xf]
    %v2345 = vld [vmem:[#allocation34 + $0x28] sm:$0xf]
    %v2346 = vld [vmem:[#allocation34 + $0x2c] sm:$0xf]
    %v2347 = vld [vmem:[#allocation34 + $0x30] sm:$0xf]
    %v2348 = vld [vmem:[#allocation34 + $0x34] sm:$0xf]
    %v2349 = vld [vmem:[#allocation34 + $0x38] sm:$0xf]
    %v2350 = vld [vmem:[#allocation34 + $0x3c] sm:$0xf]
    %v2351 = vpack.c.bf16 %v2285, %v2285
    %v2352 = vld [vmem:[#allocation35] sm:$0xf]
    %v2353 = vld [vmem:[#allocation35 + $0x4] sm:$0xf]
    %v2354 = vld [vmem:[#allocation35 + $0x8] sm:$0xf]
    %v2355 = vld [vmem:[#allocation35 + $0xc] sm:$0xf]
    %v2356 = vld [vmem:[#allocation35 + $0x10] sm:$0xf]
    %v2357 = vld [vmem:[#allocation35 + $0x14] sm:$0xf]
    %v2358 = vld [vmem:[#allocation35 + $0x18] sm:$0xf]
    %v2359 = vld [vmem:[#allocation35 + $0x1c] sm:$0xf]
    %v2360 = vld [vmem:[#allocation35 + $0x20] sm:$0xf]
    %v2361 = vld [vmem:[#allocation35 + $0x24] sm:$0xf]
    %v2362 = vld [vmem:[#allocation35 + $0x28] sm:$0xf]
    %v2363 = vld [vmem:[#allocation35 + $0x2c] sm:$0xf]
    %v2364 = vld [vmem:[#allocation35 + $0x30] sm:$0xf]
    %v2365 = vld [vmem:[#allocation35 + $0x34] sm:$0xf]
    %v2366 = vld [vmem:[#allocation35 + $0x38] sm:$0xf]
    %v2367 = vld [vmem:[#allocation35 + $0x3c] sm:$0xf]
    %v2384 = vunpack.c.l.b16 %v2352
    %v2385 = vunpack.c.l.b16 %v2353
    %v2386 = vunpack.c.l.b16 %v2354
    %v2387 = vunpack.c.l.b16 %v2355
    %v2388 = vunpack.c.l.b16 %v2356
    %v2389 = vunpack.c.l.b16 %v2357
    %v2390 = vunpack.c.l.b16 %v2358
    %v2391 = vunpack.c.l.b16 %v2359
    %v2392 = vunpack.c.l.b16 %v2360
    %v2393 = vunpack.c.l.b16 %v2361
    %v2394 = vunpack.c.l.b16 %v2362
    %v2395 = vunpack.c.l.b16 %v2363
    %v2396 = vunpack.c.l.b16 %v2364
    %v2397 = vunpack.c.l.b16 %v2365
    %v2398 = vunpack.c.l.b16 %v2366
    %v2399 = vunpack.c.l.b16 %v2367
    %v2400 = vpack.c.b16 %v2385, %v2384
    %v2401 = vpack.c.b16 %v2387, %v2386
    %v2402 = vpack.c.b16 %v2389, %v2388
    %v2403 = vpack.c.b16 %v2391, %v2390
    %v2404 = vpack.c.b16 %v2393, %v2392
    %v2405 = vpack.c.b16 %v2395, %v2394
    %v2406 = vpack.c.b16 %v2397, %v2396
    %v2407 = vpack.c.b16 %v2399, %v2398
    %2416 = vmatprep.subr.bf16.mxu0 0
    %2417 = vmatpush1.bf16.msra.mxu0 %v2407
    %2418 = vmatprep.subr.bf16.mxu0 0
    %2419 = vmatpush1.bf16.msra.mxu0 %v2406
    %2420 = vmatprep.subr.bf16.mxu0 0
    %2421 = vmatpush1.bf16.msra.mxu0 %v2405
    %2422 = vmatprep.subr.bf16.mxu0 0
    %2423 = vmatpush1.bf16.msra.mxu0 %v2404
    %2424 = vmatprep.subr.bf16.mxu0 0
    %2425 = vmatpush1.bf16.msra.mxu0 %v2403
    %2426 = vmatprep.subr.bf16.mxu0 0
    %2427 = vmatpush1.bf16.msra.mxu0 %v2402
    %2428 = vmatprep.subr.bf16.mxu0 0
    %2429 = vmatpush1.bf16.msra.mxu0 %v2401
    %2430 = vmatprep.subr.bf16.mxu0 0
    %2431 = vmatpush1.bf16.msra.mxu0 %v2400
    %2432 = vmatprep.subr.bf16.mxu0 0
    %2433 = vmatpush2.bf16.msra.mxu0 0
    %2434 = vmatprep.subr.bf16.mxu0 0
    %2435 = vmatpush2.bf16.msra.mxu0 0
    %2436 = vmatprep.subr.bf16.mxu0 0
    %2437 = vmatpush2.bf16.msra.mxu0 0
    %2438 = vmatprep.subr.bf16.mxu0 0
    %2439 = vmatpush2.bf16.msra.mxu0 0
    %2440 = vmatprep.subr.bf16.mxu0 0
    %2441 = vmatpush2.bf16.msra.mxu0 0
    %2442 = vmatprep.subr.bf16.mxu0 0
    %2443 = vmatpush2.bf16.msra.mxu0 0
    %2444 = vmatprep.subr.bf16.mxu0 0
    %2445 = vmatpush2.bf16.msra.mxu0 0
    %2446 = vmatprep.subr.bf16.mxu0 0
    %2447 = vmatpush2.bf16.msra.mxu0 0
    %2448 = vmatprep.mubr.bf16.mxu0 0
    %2449 = vmatmul.mubr.bf16.gmra.mxu0 %v2351
    %v2450 = vpop.f32.mrf.mxu0
    %v2451 = vadd.f32 0.0, %v2450
    %v2452 = vpop.f32.mrf.mxu0
    %v2453 = vpop.f32.mrf.mxu0
    %v2454 = vpop.f32.mrf.mxu0
    %2455 = vdwg.mxu0
    %v2472 = vunpack.c.l.b16 %v2335
    %v2473 = vunpack.c.l.b16 %v2336
    %v2474 = vunpack.c.l.b16 %v2337
    %v2475 = vunpack.c.l.b16 %v2338
    %v2476 = vunpack.c.l.b16 %v2339
    %v2477 = vunpack.c.l.b16 %v2340
    %v2478 = vunpack.c.l.b16 %v2341
    %v2479 = vunpack.c.l.b16 %v2342
    %v2480 = vunpack.c.l.b16 %v2343
    %v2481 = vunpack.c.l.b16 %v2344
    %v2482 = vunpack.c.l.b16 %v2345
    %v2483 = vunpack.c.l.b16 %v2346
    %v2484 = vunpack.c.l.b16 %v2347
    %v2485 = vunpack.c.l.b16 %v2348
    %v2486 = vunpack.c.l.b16 %v2349
    %v2487 = vunpack.c.l.b16 %v2350
    %v2488 = vpack.c.b16 %v2473, %v2472
    %v2489 = vpack.c.b16 %v2475, %v2474
    %v2490 = vpack.c.b16 %v2477, %v2476
    %v2491 = vpack.c.b16 %v2479, %v2478
    %v2492 = vpack.c.b16 %v2481, %v2480
    %v2493 = vpack.c.b16 %v2483, %v2482
    %v2494 = vpack.c.b16 %v2485, %v2484
    %v2495 = vpack.c.b16 %v2487, %v2486
    %2504 = vmatprep.subr.bf16.mxu0 0
    %2505 = vmatpush1.bf16.msra.mxu0 %v2495
    %2506 = vmatprep.subr.bf16.mxu0 0
    %2507 = vmatpush1.bf16.msra.mxu0 %v2494
    %2508 = vmatprep.subr.bf16.mxu0 0
    %2509 = vmatpush1.bf16.msra.mxu0 %v2493
    %2510 = vmatprep.subr.bf16.mxu0 0
    %2511 = vmatpush1.bf16.msra.mxu0 %v2492
    %2512 = vmatprep.subr.bf16.mxu0 0
    %2513 = vmatpush1.bf16.msra.mxu0 %v2491
    %2514 = vmatprep.subr.bf16.mxu0 0
    %2515 = vmatpush1.bf16.msra.mxu0 %v2490
    %2516 = vmatprep.subr.bf16.mxu0 0
    %2517 = vmatpush1.bf16.msra.mxu0 %v2489
    %2518 = vmatprep.subr.bf16.mxu0 0
    %2519 = vmatpush1.bf16.msra.mxu0 %v2488
    %2520 = vmatprep.subr.bf16.mxu0 0
    %2521 = vmatpush2.bf16.msra.mxu0 0
    %2522 = vmatprep.subr.bf16.mxu0 0
    %2523 = vmatpush2.bf16.msra.mxu0 0
    %2524 = vmatprep.subr.bf16.mxu0 0
    %2525 = vmatpush2.bf16.msra.mxu0 0
    %2526 = vmatprep.subr.bf16.mxu0 0
    %2527 = vmatpush2.bf16.msra.mxu0 0
    %2528 = vmatprep.subr.bf16.mxu0 0
    %2529 = vmatpush2.bf16.msra.mxu0 0
    %2530 = vmatprep.subr.bf16.mxu0 0
    %2531 = vmatpush2.bf16.msra.mxu0 0
    %2532 = vmatprep.subr.bf16.mxu0 0
    %2533 = vmatpush2.bf16.msra.mxu0 0
    %2534 = vmatprep.subr.bf16.mxu0 0
    %2535 = vmatpush2.bf16.msra.mxu0 0
    %2536 = vmatprep.mubr.bf16.mxu0 0
    %2537 = vmatmul.mubr.bf16.gmra.mxu0 %v2334
    %v2538 = vpop.f32.mrf.mxu0
    %v2539 = vadd.f32 %v2451, %v2538
    %v2540 = vpop.f32.mrf.mxu0
    %v2541 = vpop.f32.mrf.mxu0
    %v2542 = vpop.f32.mrf.mxu0
    %2543 = vdwg.mxu0
    %v2544 = vld [vmem:[#allocation37] sm:$0x1]
    %v2546 = vlaneseq
    %v2547 = vshrl.u32 %v2546, 7
    %v2548 = vsub.s32 0, %v2547
    %v2549 = vrot.slane %v2544, %v2548
    %v2551 = vadd.f32 %v2539, %v2549
    %2552 = vst [vmem:[#allocation38] sm:$0x3] %v2551
    // Predicated region
    $region206: #{classifier_forward.1} parent=1 // pred_check
      _
    $region207: #{classifier_forward.1} parent=1 // pred_check_branch
      %2554 = sbr.rel (0) target = $region209
    $region208: #{classifier_forward.1} parent=1 // pred_region
      %s2556 = ssub.s32 32, 32
      %2557 = vsyncadd [#allocation4], %s2556
      %s2559 = sshll.u32 [#allocation38], 4
      %s2560 = int_to_ptr.vmem [resolvable:$true] %s2559
      %2562 = dma.vmem_to_hbm [thread:$0]  %s2560, 32, %s28, [#allocation4]
    $region209: #{classifier_forward.1} parent=1 // pred_fallthru
      _
    // Predicated region
    $region210: #{classifier_forward.1} parent=1 // pred_check
      _
    $region211: #{classifier_forward.1} parent=1 // pred_check_branch
      %2564 = sbr.rel (0) target = $region213
    $region212: #{classifier_forward.1} parent=1 // pred_region
      %2565 = dma.done [#allocation4], 32
    $region213: #{classifier_forward.1} parent=1 // pred_fallthru
      _
    %2566 = vsyncpa [#allocation3], 1
    %2567 = vsyncpa [#allocation6], 1
    %2568 = vsyncpa [#allocation9], 1
    %2569 = vsyncpa [#allocation12], 1
    %2570 = vsyncpa [#allocation15], 1
    %2571 = vsyncpa [#allocation18], 1
    %2572 = vsyncpa [#allocation21], 1
    %2573 = vsyncpa [#allocation24], 1
    %2574 = vsyncpa [#allocation27], 1
    %2575 = vsyncpa [#allocation30], 1
    %2576 = vsyncpa [#allocation33], 1
    %2577 = vsyncpa [#allocation36], 1
    %2578 = vsyncpa [#allocation4], 1

</llo_original>
